<compile_context>
chip_gen: v6e
topology: v6e:2x2x1
jax: 0.10.0
libtpu: 0.0.40
codegen_flags: <defaults>
</compile_context>

<pallas_src>
from functools import partial

import jax
import jax.numpy as jnp
from jax.experimental import pallas as pl
from jax.experimental.pallas import tpu as pltpu


# ----------------------------- config -------------------------------------- #
class Config:
    vocab_size = 128
    hidden_size = 32
    num_hidden_layers = 2
    num_attention_heads = 4
    intermediate_size = 64
    max_position_embeddings = 32
    type_vocab_size = 2
    layer_norm_eps = 1e-12


# ----------------------------- in-kernel helpers ---------------------------- #
def _mm(a, b):
    """A @ B with bf16 MXU operands, f32 accumulation."""
    return jax.lax.dot_general(
        a.astype(jnp.bfloat16), b.astype(jnp.bfloat16),
        (((1,), (0,)), ((), ())), preferred_element_type=jnp.float32)


def _mm_nt(a, b):
    """A @ B.T (contract last dims) without materializing a transpose."""
    return jax.lax.dot_general(
        a.astype(jnp.bfloat16), b.astype(jnp.bfloat16),
        (((1,), (1,)), ((), ())), preferred_element_type=jnp.float32)


def _gelu(x):
    # TODO(synk): tanh-approx GELU (reference uses exact erf-GELU).
    return 0.5 * x * (1.0 + jnp.tanh(0.7978845608028654 * (x + 0.044715 * x * x * x)))


# ----------------------------- fused per-sequence kernel -------------------- #
def _bert_seq_kernel(
    emb_ref, kb_ref, lbl_ref, nsp_ref,
    qkv_w_ref, qkv_b_ref, ao_w_ref, inter_w_ref, out_w_ref, lvec_ref,
    head_w_ref, hvec_ref, wemb_ref,
    out_ref,
    *, num_layers, num_heads, head_dim, inter_size, eps,
):
    H = num_heads * head_dim
    I = inter_size
    S = emb_ref.shape[1]
    V = wemb_ref.shape[0]
    scale = 1.0 / (head_dim ** 0.5)

    def layer_norm(x, g, b):
        mu = jnp.mean(x, axis=-1, keepdims=True)
        xc = x - mu
        var = jnp.mean(xc * xc, axis=-1, keepdims=True)
        return xc * jax.lax.rsqrt(var + eps) * g + b

    def softmax_rows(s):
        s = s - jnp.max(s, axis=-1, keepdims=True)
        e = jnp.exp(s)
        return e * pl.reciprocal(jnp.sum(e, axis=-1, keepdims=True), approx=True)

    def ce_sum(logits, lbl):
        # CrossEntropyLoss(ignore_index=-1, reduction='sum')
        m = jnp.max(logits, axis=-1, keepdims=True)
        lse = jnp.log(jnp.sum(jnp.exp(logits - m), axis=-1, keepdims=True)) + m
        col = jax.lax.broadcasted_iota(jnp.int32, logits.shape, 1)
        picked = jnp.sum(jnp.where(col == lbl, logits, 0.0), axis=-1, keepdims=True)
        valid = (lbl != -1).astype(jnp.float32)
        return jnp.sum((lse - picked) * valid)

    # Packed small-vector slabs (rows padded; prefix lane slices from offset 0).
    hv = hvec_ref[...]                  # (8, >=128): emb_ln_g/b, pooler_b, mlm_b,
                                        #             mlm_ln_g/b, nsp_b, dec_b
    key_bias = kb_ref[0]                # (1, S) additive (1-mask)*-10000 bias

    # --- embeddings LayerNorm (gathers + sum are JAX glue in the wrapper) ---
    x = layer_norm(emb_ref[0], hv[0:1, :H], hv[1:2, :H])            # (S, H)

    # --- encoder layers (Python-unrolled; everything stays in vregs/VMEM) ---
    for l in range(num_layers):
        lv = lvec_ref[l]                 # (7, VEC_W): ao_b, aln_g, aln_b,
                                         #             inter_b, out_b, oln_g, oln_b
        x_bf = x.astype(jnp.bfloat16)    # single cast per layer (hoisted)
        attn = jnp.zeros((S, H), jnp.float32)
        for h in range(num_heads):
            qi = (l * 3 + 0) * num_heads + h
            ki = (l * 3 + 1) * num_heads + h
            vi = (l * 3 + 2) * num_heads + h
            # per-head contiguous (H, dh) weight blocks -> no lane relayouts
            q = _mm(x_bf, qkv_w_ref[qi]) + qkv_b_ref[qi]             # (S, dh)
            k = _mm(x_bf, qkv_w_ref[ki]) + qkv_b_ref[ki]
            v = _mm(x_bf, qkv_w_ref[vi]) + qkv_b_ref[vi]
            s = _mm_nt(q * scale, k) + key_bias                      # (S, S)
            p = softmax_rows(s)
            ctx = _mm(p, v)                                          # (S, dh)
            # fold per-head output projection in directly (no concat)
            attn = attn + _mm(ctx, ao_w_ref[l * num_heads + h])      # (S, H)
        attn = attn + lv[0:1, :H]
        x = layer_norm(attn + x, lv[1:2, :H], lv[2:3, :H])

        inter = _gelu(_mm(x, inter_w_ref[l]) + lv[3:4, :I])          # (S, I)
        ffn = _mm(inter, out_w_ref[l]) + lv[4:5, :H]                 # (S, H)
        x = layer_norm(ffn + x, lv[5:6, :H], lv[6:7, :H])

    # --- pooler (first token = plain row slice) + NSP head ---
    pooled = jnp.tanh(_mm(x[0:1, :], head_w_ref[0]) + hv[2:3, :H])   # (1, H)
    nsp_logits = _mm(pooled, head_w_ref[2][:, :2]) + hv[6:7, :2]     # (1, 2)

    # --- MLM head (transform + LN + tied decoder), fused with CE ---
    t = _gelu(_mm(x, head_w_ref[1]) + hv[3:4, :H])
    t = layer_norm(t, hv[4:5, :H], hv[5:6, :H])
    logits = _mm_nt(t, wemb_ref[...]) + hv[7:8, :V]                  # (S, V) lane-dense

    lbl = lbl_ref[0]                                                 # (S, 1) int32
    mlm_loss = ce_sum(logits, lbl)
    nsp_loss = ce_sum(nsp_logits, nsp_ref[0])
    valid = jnp.sum((lbl != -1).astype(jnp.float32))

    # lane-dense (8, 128) output block: [mlm_sum, nsp_sum, valid, 0, ...]
    col = jax.lax.broadcasted_iota(jnp.int32, out_ref.shape[1:], 1)
    out_ref[0] = (jnp.where(col == 0, mlm_loss, 0.0)
                  + jnp.where(col == 1, nsp_loss, 0.0)
                  + jnp.where(col == 2, valid, 0.0))


# ----------------------------- parameters ---------------------------------- #
def init_params(key, cfg):
    H, I, V, L = (cfg.hidden_size, cfg.intermediate_size,
                  cfg.vocab_size, cfg.num_hidden_layers)
    keys = iter(jax.random.split(key, 64))

    def w(shape):
        return 0.02 * jax.random.normal(next(keys), shape, jnp.float32)

    f32 = jnp.float32
    p = {}
    p["word_emb"] = w((V, H))
    p["pos_emb"] = w((cfg.max_position_embeddings, H))
    p["type_emb"] = w((cfg.type_vocab_size, H))
    p["emb_ln_g"], p["emb_ln_b"] = jnp.ones((H,), f32), jnp.zeros((H,), f32)

    p["qkv_w"], p["qkv_b"] = w((L, H, 3 * H)), jnp.zeros((L, 3 * H), f32)
    p["ao_w"], p["ao_b"] = w((L, H, H)), jnp.zeros((L, H), f32)
    p["attn_ln_g"], p["attn_ln_b"] = jnp.ones((L, H), f32), jnp.zeros((L, H), f32)
    p["inter_w"], p["inter_b"] = w((L, H, I)), jnp.zeros((L, I), f32)
    p["out_w"], p["out_b"] = w((L, I, H)), jnp.zeros((L, H), f32)
    p["out_ln_g"], p["out_ln_b"] = jnp.ones((L, H), f32), jnp.zeros((L, H), f32)

    p["pooler_w"], p["pooler_b"] = w((H, H)), jnp.zeros((H,), f32)
    p["mlm_w"], p["mlm_b"] = w((H, H)), jnp.zeros((H,), f32)
    p["mlm_ln_g"], p["mlm_ln_b"] = jnp.ones((H,), f32), jnp.zeros((H,), f32)
    p["dec_b"] = jnp.zeros((V,), f32)       # decoder weight tied to word_emb
    p["nsp_w"], p["nsp_b"] = w((H, 2)), jnp.zeros((2,), f32)
    return p


def _pack_params(p, cfg):
    """Pack parameters into a handful of DMA-friendly slabs."""
    H, I, V, L = (cfg.hidden_size, cfg.intermediate_size,
                  cfg.vocab_size, cfg.num_hidden_layers)
    nh = cfg.num_attention_heads
    dh = H // nh
    bf16 = jnp.bfloat16

    # per-head contiguous QKV weight blocks: (L*3*nh, H, dh), bf16 (MXU dtype)
    qkv_w = (p["qkv_w"].reshape(L, H, 3, nh, dh)
             .transpose(0, 2, 3, 1, 4).reshape(L * 3 * nh, H, dh).astype(bf16))
    qkv_b = p["qkv_b"].reshape(L * 3 * nh, 1, dh)                    # f32
    ao_w = p["ao_w"].reshape(L * nh, dh, H).astype(bf16)
    inter_w = p["inter_w"].astype(bf16)
    out_w = p["out_w"].astype(bf16)

    VEC_W = max(H, I)

    def padl(v):                                     # (L, n) -> (L, VEC_W)
        return jnp.pad(v, ((0, 0), (0, VEC_W - v.shape[-1])))

    layer_vecs = jnp.stack(
        [padl(p["ao_b"]), padl(p["attn_ln_g"]), padl(p["attn_ln_b"]),
         padl(p["inter_b"]), padl(p["out_b"]),
         padl(p["out_ln_g"]), padl(p["out_ln_b"])], axis=1).astype(jnp.float32)

    head_w = jnp.stack(
        [p["pooler_w"], p["mlm_w"], jnp.pad(p["nsp_w"], ((0, 0), (0, H - 2)))],
        axis=0).astype(bf16)                                         # (3, H, H)

    HVW = max(128, V)

    def padh(v):                                     # (n,) -> (HVW,)
        return jnp.pad(v, ((0, HVW - v.shape[-1]),))

    head_vecs = jnp.stack(
        [padh(p["emb_ln_g"]), padh(p["emb_ln_b"]), padh(p["pooler_b"]),
         padh(p["mlm_b"]), padh(p["mlm_ln_g"]), padh(p["mlm_ln_b"]),
         padh(p["nsp_b"]), padh(p["dec_b"])], axis=0).astype(jnp.float32)  # (8, HVW)

    word_emb = p["word_emb"].astype(bf16)
    return qkv_w, qkv_b, ao_w, inter_w, out_w, layer_vecs, head_w, head_vecs, word_emb


# ----------------------------- forward pass --------------------------------- #
def bert_forward(params, cfg, input_ids, token_type_ids, attention_mask,
                 masked_lm_labels, labels, next_sentence_labels):
    del masked_lm_labels  # criterion in the reference uses `labels`
    B, S = input_ids.shape
    H, I, V, L = (cfg.hidden_size, cfg.intermediate_size,
                  cfg.vocab_size, cfg.num_hidden_layers)
    nh = cfg.num_attention_heads
    dh = H // nh

    # --- BertEmbeddings gathers (JAX glue); embedding LayerNorm is in-kernel.
    pos_ids = jnp.arange(S)
    emb = (params["word_emb"][input_ids]
           + params["pos_emb"][pos_ids][None, :, :]
           + params["type_emb"][token_type_ids]).astype(jnp.float32)   # (B,S,H)

    # (1 - mask) * -10000 additive key bias (reference casts to fp16; f32 here).
    key_bias = ((1.0 - attention_mask.astype(jnp.float32)) * -10000.0).reshape(B, 1, S)
    labels3 = labels.astype(jnp.int32).reshape(B, S, 1)
    nsp3 = next_sentence_labels.astype(jnp.int32).reshape(B, 1, 1)

    (qkv_w, qkv_b, ao_w, inter_w, out_w,
     layer_vecs, head_w, head_vecs, word_emb) = _pack_params(params, cfg)

    kernel = partial(_bert_seq_kernel, num_layers=L, num_heads=nh,
                     head_dim=dh, inter_size=I, eps=cfg.layer_norm_eps)

    args = (emb, key_bias, labels3, nsp3, qkv_w, qkv_b, ao_w, inter_w, out_w,
            layer_vecs, head_w, head_vecs, word_emb)

    def full(a):   # full-array resident block, constant index_map (no re-DMA)
        return pl.BlockSpec(a.shape, lambda b, _nd=a.ndim: (0,) * _nd)

    in_specs = [
        pl.BlockSpec((1, S, H), lambda b: (b, 0, 0)),   # emb
        pl.BlockSpec((1, 1, S), lambda b: (b, 0, 0)),   # key bias row
        pl.BlockSpec((1, S, 1), lambda b: (b, 0, 0)),   # mlm labels
        pl.BlockSpec((1, 1, 1), lambda b: (b, 0, 0)),   # nsp label
        full(qkv_w), full(qkv_b), full(ao_w), full(inter_w), full(out_w),
        full(layer_vecs), full(head_w), full(head_vecs), full(word_emb),
    ]
    out_specs = pl.BlockSpec((1, 8, 128), lambda b: (b, 0, 0))
    out_shape = jax.ShapeDtypeStruct((B, 8, 128), jnp.float32)

    # Rough cost hint for the XLA scheduler (flops / transcendentals / bytes).
    flops_per_seq = (L * (2 * S * H * 3 * H            # QKV projections
                          + 2 * 2 * nh * S * S * dh    # scores + context
                          + 2 * S * H * H              # attention output proj
                          + 2 * 2 * S * H * I)         # FFN
                     + 2 * S * H * H + 2 * S * H * V   # MLM transform + decoder
                     + 2 * H * H + 2 * H * 2)          # pooler + NSP
    trans_per_seq = L * nh * S * S + L * S * I + 2 * S * H + S * V + H
    bytes_accessed = sum(int(a.size) * a.dtype.itemsize for a in args) + B * 8 * 128 * 4
    cost = pl.CostEstimate(flops=B * flops_per_seq,
                           transcendentals=B * trans_per_seq,
                           bytes_accessed=int(bytes_accessed))

    res = pl.pallas_call(
        kernel,
        out_shape=out_shape,
        grid=(B,),
        in_specs=in_specs,
        out_specs=out_specs,
        compiler_params=pltpu.CompilerParams(dimension_semantics=("parallel",)),
        cost_estimate=cost,
    )(*args)

    mlm_sum = jnp.sum(res[:, 0, 0])
    nsp_sum = jnp.sum(res[:, 0, 1])
    valid = jnp.sum(res[:, 0, 2])
    # Reference: total_loss = sum(MLM CE) + sum(NSP CE); loss = total / #(labels != -1)
    return (mlm_sum + nsp_sum) / valid


# ----------------------------- main ----------------------------------------- #
if __name__ == "__main__":
    cfg = Config()
    B, S = 2, 8
    key = jax.random.PRNGKey(0)
    kp, k1, k2, k3, k4, k5 = jax.random.split(key, 6)
    params = init_params(kp, cfg)

    input_ids = jax.random.randint(k1, (B, S), 0, cfg.vocab_size)
    token_type_ids = jax.random.randint(k2, (B, S), 0, cfg.type_vocab_size)
    attention_mask = jnp.ones((B, S), jnp.float32).at[:, -2:].set(0.0)

    labels = jax.random.randint(k3, (B, S), 0, cfg.vocab_size)
    mask_positions = jax.random.bernoulli(k4, 0.25, (B, S))
    labels = jnp.where(mask_positions, labels, -1)
    labels = labels.at[0, 0].set(5)                     # guarantee >=1 valid label
    masked_lm_labels = labels
    next_sentence_labels = jax.random.randint(k5, (B,), 0, 2)

    loss = bert_forward(params, cfg, input_ids, token_type_ids, attention_mask,
                        masked_lm_labels, labels, next_sentence_labels)
    loss = jax.block_until_ready(loss)
    assert jnp.isfinite(loss)
    print("KERNEL_OK")
</pallas_src>

<mosaic_0001>
module attributes {stable_mosaic.version = 11 : i64} {
  func.func @_bert_seq_kernel(%arg0: i32, %arg1: memref<1x8x32xf32, #tpu.memory_space<vmem>>, %arg2: memref<1x1x8xf32, #tpu.memory_space<vmem>>, %arg3: memref<1x8x1xi32, #tpu.memory_space<vmem>>, %arg4: memref<1x1x1xi32, #tpu.memory_space<vmem>>, %arg5: memref<24x32x8xbf16, #tpu.memory_space<vmem>>, %arg6: memref<24x1x8xf32, #tpu.memory_space<vmem>>, %arg7: memref<8x8x32xbf16, #tpu.memory_space<vmem>>, %arg8: memref<2x32x64xbf16, #tpu.memory_space<vmem>>, %arg9: memref<2x64x32xbf16, #tpu.memory_space<vmem>>, %arg10: memref<2x7x64xf32, #tpu.memory_space<vmem>>, %arg11: memref<3x32x32xbf16, #tpu.memory_space<vmem>>, %arg12: memref<8x128xf32, #tpu.memory_space<vmem>>, %arg13: memref<128x32xbf16, #tpu.memory_space<vmem>>, %arg14: memref<1x8x128xf32, #tpu.memory_space<vmem>>) attributes {dimension_semantics = [#tpu.dimension_semantics<parallel>], iteration_bounds = array<i64: 2>, scalar_prefetch = 0 : i64, scratch_operands = 0 : i64, tpu.core_type = #tpu.core_type<tc>, window_params = [{transform_indices = @transform_0, window_bounds = array<i64: 1, 8, 32>}, {transform_indices = @transform_1, window_bounds = array<i64: 1, 1, 8>}, {transform_indices = @transform_2, window_bounds = array<i64: 1, 8, 1>}, {transform_indices = @transform_3, window_bounds = array<i64: 1, 1, 1>}, {pipeline_mode = #tpu.pipeline_mode<synchronous>, transform_indices = @transform_4, window_bounds = array<i64: 24, 32, 8>}, {pipeline_mode = #tpu.pipeline_mode<synchronous>, transform_indices = @transform_5, window_bounds = array<i64: 24, 1, 8>}, {pipeline_mode = #tpu.pipeline_mode<synchronous>, transform_indices = @transform_6, window_bounds = array<i64: 8, 8, 32>}, {pipeline_mode = #tpu.pipeline_mode<synchronous>, transform_indices = @transform_7, window_bounds = array<i64: 2, 32, 64>}, {pipeline_mode = #tpu.pipeline_mode<synchronous>, transform_indices = @transform_8, window_bounds = array<i64: 2, 64, 32>}, {pipeline_mode = #tpu.pipeline_mode<synchronous>, transform_indices = @transform_9, window_bounds = array<i64: 2, 7, 64>}, {pipeline_mode = #tpu.pipeline_mode<synchronous>, transform_indices = @transform_10, window_bounds = array<i64: 3, 32, 32>}, {pipeline_mode = #tpu.pipeline_mode<synchronous>, transform_indices = @transform_11, window_bounds = array<i64: 8, 128>}, {pipeline_mode = #tpu.pipeline_mode<synchronous>, transform_indices = @transform_12, window_bounds = array<i64: 128, 32>}, {transform_indices = @transform_13, window_bounds = array<i64: 1, 8, 128>}]} {
    %c0 = arith.constant 0 : index
    %c0_0 = arith.constant 0 : index
    %0 = vector.load %arg12[%c0, %c0_0] : memref<8x128xf32, #tpu.memory_space<vmem>>, vector<8x128xf32>
    %c0_1 = arith.constant 0 : index
    %c0_2 = arith.constant 0 : index
    %c0_3 = arith.constant 0 : index
    %1 = vector.load %arg2[%c0_1, %c0_2, %c0_3] : memref<1x1x8xf32, #tpu.memory_space<vmem>>, vector<1x1x8xf32>
    %2 = vector.shape_cast %1 : vector<1x1x8xf32> to vector<1x8xf32>
    %c0_4 = arith.constant 0 : index
    %c0_5 = arith.constant 0 : index
    %c0_6 = arith.constant 0 : index
    %3 = vector.load %arg1[%c0_4, %c0_5, %c0_6] : memref<1x8x32xf32, #tpu.memory_space<vmem>>, vector<1x8x32xf32>
    %4 = vector.shape_cast %3 : vector<1x8x32xf32> to vector<8x32xf32>
    %5 = vector.extract_strided_slice %0 {offsets = [0, 0], sizes = [1, 32], strides = [1, 1]} : vector<8x128xf32> to vector<1x32xf32>
    %6 = vector.extract_strided_slice %0 {offsets = [1, 0], sizes = [1, 32], strides = [1, 1]} : vector<8x128xf32> to vector<1x32xf32>
    %cst = arith.constant dense<0.000000e+00> : vector<8xf32>
    %7 = vector.multi_reduction <add>, %4, %cst [1] : vector<8x32xf32> to vector<8xf32>
    %8 = vector.shape_cast %7 : vector<8xf32> to vector<8x1xf32>
    %cst_7 = arith.constant 3.200000e+01 : f32
    %9 = vector.broadcast %cst_7 : f32 to vector<8x1xf32>
    %10 = arith.divf %8, %9 : vector<8x1xf32>
    %11 = vector.broadcast %10 : vector<8x1xf32> to vector<8x32xf32>
    %12 = arith.subf %4, %11 : vector<8x32xf32>
    %13 = arith.mulf %12, %12 : vector<8x32xf32>
    %cst_8 = arith.constant dense<0.000000e+00> : vector<8xf32>
    %14 = vector.multi_reduction <add>, %13, %cst_8 [1] : vector<8x32xf32> to vector<8xf32>
    %15 = vector.shape_cast %14 : vector<8xf32> to vector<8x1xf32>
    %cst_9 = arith.constant 3.200000e+01 : f32
    %16 = vector.broadcast %cst_9 : f32 to vector<8x1xf32>
    %17 = arith.divf %15, %16 : vector<8x1xf32>
    %cst_10 = arith.constant 9.99999996E-13 : f32
    %18 = vector.broadcast %cst_10 : f32 to vector<8x1xf32>
    %19 = arith.addf %17, %18 : vector<8x1xf32>
    %20 = math.rsqrt %19 : vector<8x1xf32>
    %21 = vector.broadcast %20 : vector<8x1xf32> to vector<8x32xf32>
    %22 = arith.mulf %12, %21 : vector<8x32xf32>
    %23 = vector.broadcast %5 : vector<1x32xf32> to vector<8x32xf32>
    %24 = arith.mulf %22, %23 : vector<8x32xf32>
    %25 = vector.broadcast %6 : vector<1x32xf32> to vector<8x32xf32>
    %26 = arith.addf %24, %25 : vector<8x32xf32>
    %c0_11 = arith.constant 0 : index
    %c0_12 = arith.constant 0 : index
    %c0_13 = arith.constant 0 : index
    %27 = vector.load %arg10[%c0_11, %c0_12, %c0_13] : memref<2x7x64xf32, #tpu.memory_space<vmem>>, vector<1x7x64xf32>
    %28 = vector.shape_cast %27 : vector<1x7x64xf32> to vector<7x64xf32>
    %29 = arith.truncf %26 : vector<8x32xf32> to vector<8x32xbf16>
    %cst_14 = arith.constant 0.000000e+00 : f32
    %30 = vector.broadcast %cst_14 : f32 to vector<8x32xf32>
    %c0_15 = arith.constant 0 : index
    %c0_16 = arith.constant 0 : index
    %c0_17 = arith.constant 0 : index
    %31 = vector.load %arg5[%c0_15, %c0_16, %c0_17] : memref<24x32x8xbf16, #tpu.memory_space<vmem>>, vector<1x32x8xbf16>
    %32 = vector.shape_cast %31 : vector<1x32x8xbf16> to vector<32x8xbf16>
    %cst_18 = arith.constant dense<0.000000e+00> : vector<8x8xf32>
    %33 = tpu.matmul %29, %32, %cst_18 {dimension_numbers = #tpu.dot_dimension_numbers<[1], [0], [0], [1], [0, 0, 1, 1], [], []>} : vector<8x32xbf16>, vector<32x8xbf16>, vector<8x8xf32> -> vector<8x8xf32>
    %c0_19 = arith.constant 0 : index
    %c0_20 = arith.constant 0 : index
    %c0_21 = arith.constant 0 : index
    %34 = vector.load %arg6[%c0_19, %c0_20, %c0_21] : memref<24x1x8xf32, #tpu.memory_space<vmem>>, vector<1x1x8xf32>
    %35 = vector.shape_cast %34 : vector<1x1x8xf32> to vector<1x8xf32>
    %36 = vector.broadcast %35 : vector<1x8xf32> to vector<8x8xf32>
    %37 = arith.addf %33, %36 : vector<8x8xf32>
    %c4 = arith.constant 4 : index
    %c0_22 = arith.constant 0 : index
    %c0_23 = arith.constant 0 : index
    %38 = vector.load %arg5[%c4, %c0_22, %c0_23] : memref<24x32x8xbf16, #tpu.memory_space<vmem>>, vector<1x32x8xbf16>
    %39 = vector.shape_cast %38 : vector<1x32x8xbf16> to vector<32x8xbf16>
    %cst_24 = arith.constant dense<0.000000e+00> : vector<8x8xf32>
    %40 = tpu.matmul %29, %39, %cst_24 {dimension_numbers = #tpu.dot_dimension_numbers<[1], [0], [0], [1], [0, 0, 1, 1], [], []>} : vector<8x32xbf16>, vector<32x8xbf16>, vector<8x8xf32> -> vector<8x8xf32>
    %c4_25 = arith.constant 4 : index
    %c0_26 = arith.constant 0 : index
    %c0_27 = arith.constant 0 : index
    %41 = vector.load %arg6[%c4_25, %c0_26, %c0_27] : memref<24x1x8xf32, #tpu.memory_space<vmem>>, vector<1x1x8xf32>
    %42 = vector.shape_cast %41 : vector<1x1x8xf32> to vector<1x8xf32>
    %43 = vector.broadcast %42 : vector<1x8xf32> to vector<8x8xf32>
    %44 = arith.addf %40, %43 : vector<8x8xf32>
    %c8 = arith.constant 8 : index
    %c0_28 = arith.constant 0 : index
    %c0_29 = arith.constant 0 : index
    %45 = vector.load %arg5[%c8, %c0_28, %c0_29] : memref<24x32x8xbf16, #tpu.memory_space<vmem>>, vector<1x32x8xbf16>
    %46 = vector.shape_cast %45 : vector<1x32x8xbf16> to vector<32x8xbf16>
    %cst_30 = arith.constant dense<0.000000e+00> : vector<8x8xf32>
    %47 = tpu.matmul %29, %46, %cst_30 {dimension_numbers = #tpu.dot_dimension_numbers<[1], [0], [0], [1], [0, 0, 1, 1], [], []>} : vector<8x32xbf16>, vector<32x8xbf16>, vector<8x8xf32> -> vector<8x8xf32>
    %c8_31 = arith.constant 8 : index
    %c0_32 = arith.constant 0 : index
    %c0_33 = arith.constant 0 : index
    %48 = vector.load %arg6[%c8_31, %c0_32, %c0_33] : memref<24x1x8xf32, #tpu.memory_space<vmem>>, vector<1x1x8xf32>
    %49 = vector.shape_cast %48 : vector<1x1x8xf32> to vector<1x8xf32>
    %50 = vector.broadcast %49 : vector<1x8xf32> to vector<8x8xf32>
    %51 = arith.addf %47, %50 : vector<8x8xf32>
    %cst_34 = arith.constant 0.353553385 : f32
    %52 = vector.broadcast %cst_34 : f32 to vector<8x8xf32>
    %53 = arith.mulf %37, %52 : vector<8x8xf32>
    %54 = arith.truncf %53 : vector<8x8xf32> to vector<8x8xbf16>
    %55 = arith.truncf %44 : vector<8x8xf32> to vector<8x8xbf16>
    %cst_35 = arith.constant dense<0.000000e+00> : vector<8x8xf32>
    %56 = tpu.matmul %54, %55, %cst_35 {dimension_numbers = #tpu.dot_dimension_numbers<[1], [1], [0], [0], [0, 0, 1, 0], [], []>} : vector<8x8xbf16>, vector<8x8xbf16>, vector<8x8xf32> -> vector<8x8xf32>
    %57 = vector.broadcast %2 : vector<1x8xf32> to vector<8x8xf32>
    %58 = arith.addf %56, %57 : vector<8x8xf32>
    %cst_36 = arith.constant dense<0xFF800000> : vector<8xf32>
    %59 = vector.multi_reduction <maximumf>, %58, %cst_36 [1] : vector<8x8xf32> to vector<8xf32>
    %60 = vector.shape_cast %59 : vector<8xf32> to vector<8x1xf32>
    %61 = vector.broadcast %60 : vector<8x1xf32> to vector<8x8xf32>
    %62 = arith.subf %58, %61 : vector<8x8xf32>
    %63 = math.exp %62 : vector<8x8xf32>
    %cst_37 = arith.constant dense<0.000000e+00> : vector<8xf32>
    %64 = vector.multi_reduction <add>, %63, %cst_37 [1] : vector<8x8xf32> to vector<8xf32>
    %65 = vector.shape_cast %64 : vector<8xf32> to vector<8x1xf32>
    %66 = tpu.reciprocal %65 {approx = true} : vector<8x1xf32> -> vector<8x1xf32>
    %67 = vector.broadcast %66 : vector<8x1xf32> to vector<8x8xf32>
    %68 = arith.mulf %63, %67 : vector<8x8xf32>
    %69 = arith.truncf %68 : vector<8x8xf32> to vector<8x8xbf16>
    %70 = arith.truncf %51 : vector<8x8xf32> to vector<8x8xbf16>
    %cst_38 = arith.constant dense<0.000000e+00> : vector<8x8xf32>
    %71 = tpu.matmul %69, %70, %cst_38 {dimension_numbers = #tpu.dot_dimension_numbers<[1], [0], [0], [1], [0, 0, 1, 1], [], []>} : vector<8x8xbf16>, vector<8x8xbf16>, vector<8x8xf32> -> vector<8x8xf32>
    %c0_39 = arith.constant 0 : index
    %c0_40 = arith.constant 0 : index
    %c0_41 = arith.constant 0 : index
    %72 = vector.load %arg7[%c0_39, %c0_40, %c0_41] : memref<8x8x32xbf16, #tpu.memory_space<vmem>>, vector<1x8x32xbf16>
    %73 = vector.shape_cast %72 : vector<1x8x32xbf16> to vector<8x32xbf16>
    %74 = arith.truncf %71 : vector<8x8xf32> to vector<8x8xbf16>
    %cst_42 = arith.constant dense<0.000000e+00> : vector<8x32xf32>
    %75 = tpu.matmul %74, %73, %cst_42 {dimension_numbers = #tpu.dot_dimension_numbers<[1], [0], [0], [1], [0, 0, 1, 1], [], []>} : vector<8x8xbf16>, vector<8x32xbf16>, vector<8x32xf32> -> vector<8x32xf32>
    %76 = arith.addf %30, %75 : vector<8x32xf32>
    %c1 = arith.constant 1 : index
    %c0_43 = arith.constant 0 : index
    %c0_44 = arith.constant 0 : index
    %77 = vector.load %arg5[%c1, %c0_43, %c0_44] : memref<24x32x8xbf16, #tpu.memory_space<vmem>>, vector<1x32x8xbf16>
    %78 = vector.shape_cast %77 : vector<1x32x8xbf16> to vector<32x8xbf16>
    %cst_45 = arith.constant dense<0.000000e+00> : vector<8x8xf32>
    %79 = tpu.matmul %29, %78, %cst_45 {dimension_numbers = #tpu.dot_dimension_numbers<[1], [0], [0], [1], [0, 0, 1, 1], [], []>} : vector<8x32xbf16>, vector<32x8xbf16>, vector<8x8xf32> -> vector<8x8xf32>
    %c1_46 = arith.constant 1 : index
    %c0_47 = arith.constant 0 : index
    %c0_48 = arith.constant 0 : index
    %80 = vector.load %arg6[%c1_46, %c0_47, %c0_48] : memref<24x1x8xf32, #tpu.memory_space<vmem>>, vector<1x1x8xf32>
    %81 = vector.shape_cast %80 : vector<1x1x8xf32> to vector<1x8xf32>
    %82 = vector.broadcast %81 : vector<1x8xf32> to vector<8x8xf32>
    %83 = arith.addf %79, %82 : vector<8x8xf32>
    %c5 = arith.constant 5 : index
    %c0_49 = arith.constant 0 : index
    %c0_50 = arith.constant 0 : index
    %84 = vector.load %arg5[%c5, %c0_49, %c0_50] : memref<24x32x8xbf16, #tpu.memory_space<vmem>>, vector<1x32x8xbf16>
    %85 = vector.shape_cast %84 : vector<1x32x8xbf16> to vector<32x8xbf16>
    %cst_51 = arith.constant dense<0.000000e+00> : vector<8x8xf32>
    %86 = tpu.matmul %29, %85, %cst_51 {dimension_numbers = #tpu.dot_dimension_numbers<[1], [0], [0], [1], [0, 0, 1, 1], [], []>} : vector<8x32xbf16>, vector<32x8xbf16>, vector<8x8xf32> -> vector<8x8xf32>
    %c5_52 = arith.constant 5 : index
    %c0_53 = arith.constant 0 : index
    %c0_54 = arith.constant 0 : index
    %87 = vector.load %arg6[%c5_52, %c0_53, %c0_54] : memref<24x1x8xf32, #tpu.memory_space<vmem>>, vector<1x1x8xf32>
    %88 = vector.shape_cast %87 : vector<1x1x8xf32> to vector<1x8xf32>
    %89 = vector.broadcast %88 : vector<1x8xf32> to vector<8x8xf32>
    %90 = arith.addf %86, %89 : vector<8x8xf32>
    %c9 = arith.constant 9 : index
    %c0_55 = arith.constant 0 : index
    %c0_56 = arith.constant 0 : index
    %91 = vector.load %arg5[%c9, %c0_55, %c0_56] : memref<24x32x8xbf16, #tpu.memory_space<vmem>>, vector<1x32x8xbf16>
    %92 = vector.shape_cast %91 : vector<1x32x8xbf16> to vector<32x8xbf16>
    %cst_57 = arith.constant dense<0.000000e+00> : vector<8x8xf32>
    %93 = tpu.matmul %29, %92, %cst_57 {dimension_numbers = #tpu.dot_dimension_numbers<[1], [0], [0], [1], [0, 0, 1, 1], [], []>} : vector<8x32xbf16>, vector<32x8xbf16>, vector<8x8xf32> -> vector<8x8xf32>
    %c9_58 = arith.constant 9 : index
    %c0_59 = arith.constant 0 : index
    %c0_60 = arith.constant 0 : index
    %94 = vector.load %arg6[%c9_58, %c0_59, %c0_60] : memref<24x1x8xf32, #tpu.memory_space<vmem>>, vector<1x1x8xf32>
    %95 = vector.shape_cast %94 : vector<1x1x8xf32> to vector<1x8xf32>
    %96 = vector.broadcast %95 : vector<1x8xf32> to vector<8x8xf32>
    %97 = arith.addf %93, %96 : vector<8x8xf32>
    %cst_61 = arith.constant 0.353553385 : f32
    %98 = vector.broadcast %cst_61 : f32 to vector<8x8xf32>
    %99 = arith.mulf %83, %98 : vector<8x8xf32>
    %100 = arith.truncf %99 : vector<8x8xf32> to vector<8x8xbf16>
    %101 = arith.truncf %90 : vector<8x8xf32> to vector<8x8xbf16>
    %cst_62 = arith.constant dense<0.000000e+00> : vector<8x8xf32>
    %102 = tpu.matmul %100, %101, %cst_62 {dimension_numbers = #tpu.dot_dimension_numbers<[1], [1], [0], [0], [0, 0, 1, 0], [], []>} : vector<8x8xbf16>, vector<8x8xbf16>, vector<8x8xf32> -> vector<8x8xf32>
    %103 = vector.broadcast %2 : vector<1x8xf32> to vector<8x8xf32>
    %104 = arith.addf %102, %103 : vector<8x8xf32>
    %cst_63 = arith.constant dense<0xFF800000> : vector<8xf32>
    %105 = vector.multi_reduction <maximumf>, %104, %cst_63 [1] : vector<8x8xf32> to vector<8xf32>
    %106 = vector.shape_cast %105 : vector<8xf32> to vector<8x1xf32>
    %107 = vector.broadcast %106 : vector<8x1xf32> to vector<8x8xf32>
    %108 = arith.subf %104, %107 : vector<8x8xf32>
    %109 = math.exp %108 : vector<8x8xf32>
    %cst_64 = arith.constant dense<0.000000e+00> : vector<8xf32>
    %110 = vector.multi_reduction <add>, %109, %cst_64 [1] : vector<8x8xf32> to vector<8xf32>
    %111 = vector.shape_cast %110 : vector<8xf32> to vector<8x1xf32>
    %112 = tpu.reciprocal %111 {approx = true} : vector<8x1xf32> -> vector<8x1xf32>
    %113 = vector.broadcast %112 : vector<8x1xf32> to vector<8x8xf32>
    %114 = arith.mulf %109, %113 : vector<8x8xf32>
    %115 = arith.truncf %114 : vector<8x8xf32> to vector<8x8xbf16>
    %116 = arith.truncf %97 : vector<8x8xf32> to vector<8x8xbf16>
    %cst_65 = arith.constant dense<0.000000e+00> : vector<8x8xf32>
    %117 = tpu.matmul %115, %116, %cst_65 {dimension_numbers = #tpu.dot_dimension_numbers<[1], [0], [0], [1], [0, 0, 1, 1], [], []>} : vector<8x8xbf16>, vector<8x8xbf16>, vector<8x8xf32> -> vector<8x8xf32>
    %c1_66 = arith.constant 1 : index
    %c0_67 = arith.constant 0 : index
    %c0_68 = arith.constant 0 : index
    %118 = vector.load %arg7[%c1_66, %c0_67, %c0_68] : memref<8x8x32xbf16, #tpu.memory_space<vmem>>, vector<1x8x32xbf16>
    %119 = vector.shape_cast %118 : vector<1x8x32xbf16> to vector<8x32xbf16>
    %120 = arith.truncf %117 : vector<8x8xf32> to vector<8x8xbf16>
    %cst_69 = arith.constant dense<0.000000e+00> : vector<8x32xf32>
    %121 = tpu.matmul %120, %119, %cst_69 {dimension_numbers = #tpu.dot_dimension_numbers<[1], [0], [0], [1], [0, 0, 1, 1], [], []>} : vector<8x8xbf16>, vector<8x32xbf16>, vector<8x32xf32> -> vector<8x32xf32>
    %122 = arith.addf %76, %121 : vector<8x32xf32>
    %c2 = arith.constant 2 : index
    %c0_70 = arith.constant 0 : index
    %c0_71 = arith.constant 0 : index
    %123 = vector.load %arg5[%c2, %c0_70, %c0_71] : memref<24x32x8xbf16, #tpu.memory_space<vmem>>, vector<1x32x8xbf16>
    %124 = vector.shape_cast %123 : vector<1x32x8xbf16> to vector<32x8xbf16>
    %cst_72 = arith.constant dense<0.000000e+00> : vector<8x8xf32>
    %125 = tpu.matmul %29, %124, %cst_72 {dimension_numbers = #tpu.dot_dimension_numbers<[1], [0], [0], [1], [0, 0, 1, 1], [], []>} : vector<8x32xbf16>, vector<32x8xbf16>, vector<8x8xf32> -> vector<8x8xf32>
    %c2_73 = arith.constant 2 : index
    %c0_74 = arith.constant 0 : index
    %c0_75 = arith.constant 0 : index
    %126 = vector.load %arg6[%c2_73, %c0_74, %c0_75] : memref<24x1x8xf32, #tpu.memory_space<vmem>>, vector<1x1x8xf32>
    %127 = vector.shape_cast %126 : vector<1x1x8xf32> to vector<1x8xf32>
    %128 = vector.broadcast %127 : vector<1x8xf32> to vector<8x8xf32>
    %129 = arith.addf %125, %128 : vector<8x8xf32>
    %c6 = arith.constant 6 : index
    %c0_76 = arith.constant 0 : index
    %c0_77 = arith.constant 0 : index
    %130 = vector.load %arg5[%c6, %c0_76, %c0_77] : memref<24x32x8xbf16, #tpu.memory_space<vmem>>, vector<1x32x8xbf16>
    %131 = vector.shape_cast %130 : vector<1x32x8xbf16> to vector<32x8xbf16>
    %cst_78 = arith.constant dense<0.000000e+00> : vector<8x8xf32>
    %132 = tpu.matmul %29, %131, %cst_78 {dimension_numbers = #tpu.dot_dimension_numbers<[1], [0], [0], [1], [0, 0, 1, 1], [], []>} : vector<8x32xbf16>, vector<32x8xbf16>, vector<8x8xf32> -> vector<8x8xf32>
    %c6_79 = arith.constant 6 : index
    %c0_80 = arith.constant 0 : index
    %c0_81 = arith.constant 0 : index
    %133 = vector.load %arg6[%c6_79, %c0_80, %c0_81] : memref<24x1x8xf32, #tpu.memory_space<vmem>>, vector<1x1x8xf32>
    %134 = vector.shape_cast %133 : vector<1x1x8xf32> to vector<1x8xf32>
    %135 = vector.broadcast %134 : vector<1x8xf32> to vector<8x8xf32>
    %136 = arith.addf %132, %135 : vector<8x8xf32>
    %c10 = arith.constant 10 : index
    %c0_82 = arith.constant 0 : index
    %c0_83 = arith.constant 0 : index
    %137 = vector.load %arg5[%c10, %c0_82, %c0_83] : memref<24x32x8xbf16, #tpu.memory_space<vmem>>, vector<1x32x8xbf16>
    %138 = vector.shape_cast %137 : vector<1x32x8xbf16> to vector<32x8xbf16>
    %cst_84 = arith.constant dense<0.000000e+00> : vector<8x8xf32>
    %139 = tpu.matmul %29, %138, %cst_84 {dimension_numbers = #tpu.dot_dimension_numbers<[1], [0], [0], [1], [0, 0, 1, 1], [], []>} : vector<8x32xbf16>, vector<32x8xbf16>, vector<8x8xf32> -> vector<8x8xf32>
    %c10_85 = arith.constant 10 : index
    %c0_86 = arith.constant 0 : index
    %c0_87 = arith.constant 0 : index
    %140 = vector.load %arg6[%c10_85, %c0_86, %c0_87] : memref<24x1x8xf32, #tpu.memory_space<vmem>>, vector<1x1x8xf32>
    %141 = vector.shape_cast %140 : vector<1x1x8xf32> to vector<1x8xf32>
    %142 = vector.broadcast %141 : vector<1x8xf32> to vector<8x8xf32>
    %143 = arith.addf %139, %142 : vector<8x8xf32>
    %cst_88 = arith.constant 0.353553385 : f32
    %144 = vector.broadcast %cst_88 : f32 to vector<8x8xf32>
    %145 = arith.mulf %129, %144 : vector<8x8xf32>
    %146 = arith.truncf %145 : vector<8x8xf32> to vector<8x8xbf16>
    %147 = arith.truncf %136 : vector<8x8xf32> to vector<8x8xbf16>
    %cst_89 = arith.constant dense<0.000000e+00> : vector<8x8xf32>
    %148 = tpu.matmul %146, %147, %cst_89 {dimension_numbers = #tpu.dot_dimension_numbers<[1], [1], [0], [0], [0, 0, 1, 0], [], []>} : vector<8x8xbf16>, vector<8x8xbf16>, vector<8x8xf32> -> vector<8x8xf32>
    %149 = vector.broadcast %2 : vector<1x8xf32> to vector<8x8xf32>
    %150 = arith.addf %148, %149 : vector<8x8xf32>
    %cst_90 = arith.constant dense<0xFF800000> : vector<8xf32>
    %151 = vector.multi_reduction <maximumf>, %150, %cst_90 [1] : vector<8x8xf32> to vector<8xf32>
    %152 = vector.shape_cast %151 : vector<8xf32> to vector<8x1xf32>
    %153 = vector.broadcast %152 : vector<8x1xf32> to vector<8x8xf32>
    %154 = arith.subf %150, %153 : vector<8x8xf32>
    %155 = math.exp %154 : vector<8x8xf32>
    %cst_91 = arith.constant dense<0.000000e+00> : vector<8xf32>
    %156 = vector.multi_reduction <add>, %155, %cst_91 [1] : vector<8x8xf32> to vector<8xf32>
    %157 = vector.shape_cast %156 : vector<8xf32> to vector<8x1xf32>
    %158 = tpu.reciprocal %157 {approx = true} : vector<8x1xf32> -> vector<8x1xf32>
    %159 = vector.broadcast %158 : vector<8x1xf32> to vector<8x8xf32>
    %160 = arith.mulf %155, %159 : vector<8x8xf32>
    %161 = arith.truncf %160 : vector<8x8xf32> to vector<8x8xbf16>
    %162 = arith.truncf %143 : vector<8x8xf32> to vector<8x8xbf16>
    %cst_92 = arith.constant dense<0.000000e+00> : vector<8x8xf32>
    %163 = tpu.matmul %161, %162, %cst_92 {dimension_numbers = #tpu.dot_dimension_numbers<[1], [0], [0], [1], [0, 0, 1, 1], [], []>} : vector<8x8xbf16>, vector<8x8xbf16>, vector<8x8xf32> -> vector<8x8xf32>
    %c2_93 = arith.constant 2 : index
    %c0_94 = arith.constant 0 : index
    %c0_95 = arith.constant 0 : index
    %164 = vector.load %arg7[%c2_93, %c0_94, %c0_95] : memref<8x8x32xbf16, #tpu.memory_space<vmem>>, vector<1x8x32xbf16>
    %165 = vector.shape_cast %164 : vector<1x8x32xbf16> to vector<8x32xbf16>
    %166 = arith.truncf %163 : vector<8x8xf32> to vector<8x8xbf16>
    %cst_96 = arith.constant dense<0.000000e+00> : vector<8x32xf32>
    %167 = tpu.matmul %166, %165, %cst_96 {dimension_numbers = #tpu.dot_dimension_numbers<[1], [0], [0], [1], [0, 0, 1, 1], [], []>} : vector<8x8xbf16>, vector<8x32xbf16>, vector<8x32xf32> -> vector<8x32xf32>
    %168 = arith.addf %122, %167 : vector<8x32xf32>
    %c3 = arith.constant 3 : index
    %c0_97 = arith.constant 0 : index
    %c0_98 = arith.constant 0 : index
    %169 = vector.load %arg5[%c3, %c0_97, %c0_98] : memref<24x32x8xbf16, #tpu.memory_space<vmem>>, vector<1x32x8xbf16>
    %170 = vector.shape_cast %169 : vector<1x32x8xbf16> to vector<32x8xbf16>
    %cst_99 = arith.constant dense<0.000000e+00> : vector<8x8xf32>
    %171 = tpu.matmul %29, %170, %cst_99 {dimension_numbers = #tpu.dot_dimension_numbers<[1], [0], [0], [1], [0, 0, 1, 1], [], []>} : vector<8x32xbf16>, vector<32x8xbf16>, vector<8x8xf32> -> vector<8x8xf32>
    %c3_100 = arith.constant 3 : index
    %c0_101 = arith.constant 0 : index
    %c0_102 = arith.constant 0 : index
    %172 = vector.load %arg6[%c3_100, %c0_101, %c0_102] : memref<24x1x8xf32, #tpu.memory_space<vmem>>, vector<1x1x8xf32>
    %173 = vector.shape_cast %172 : vector<1x1x8xf32> to vector<1x8xf32>
    %174 = vector.broadcast %173 : vector<1x8xf32> to vector<8x8xf32>
    %175 = arith.addf %171, %174 : vector<8x8xf32>
    %c7 = arith.constant 7 : index
    %c0_103 = arith.constant 0 : index
    %c0_104 = arith.constant 0 : index
    %176 = vector.load %arg5[%c7, %c0_103, %c0_104] : memref<24x32x8xbf16, #tpu.memory_space<vmem>>, vector<1x32x8xbf16>
    %177 = vector.shape_cast %176 : vector<1x32x8xbf16> to vector<32x8xbf16>
    %cst_105 = arith.constant dense<0.000000e+00> : vector<8x8xf32>
    %178 = tpu.matmul %29, %177, %cst_105 {dimension_numbers = #tpu.dot_dimension_numbers<[1], [0], [0], [1], [0, 0, 1, 1], [], []>} : vector<8x32xbf16>, vector<32x8xbf16>, vector<8x8xf32> -> vector<8x8xf32>
    %c7_106 = arith.constant 7 : index
    %c0_107 = arith.constant 0 : index
    %c0_108 = arith.constant 0 : index
    %179 = vector.load %arg6[%c7_106, %c0_107, %c0_108] : memref<24x1x8xf32, #tpu.memory_space<vmem>>, vector<1x1x8xf32>
    %180 = vector.shape_cast %179 : vector<1x1x8xf32> to vector<1x8xf32>
    %181 = vector.broadcast %180 : vector<1x8xf32> to vector<8x8xf32>
    %182 = arith.addf %178, %181 : vector<8x8xf32>
    %c11 = arith.constant 11 : index
    %c0_109 = arith.constant 0 : index
    %c0_110 = arith.constant 0 : index
    %183 = vector.load %arg5[%c11, %c0_109, %c0_110] : memref<24x32x8xbf16, #tpu.memory_space<vmem>>, vector<1x32x8xbf16>
    %184 = vector.shape_cast %183 : vector<1x32x8xbf16> to vector<32x8xbf16>
    %cst_111 = arith.constant dense<0.000000e+00> : vector<8x8xf32>
    %185 = tpu.matmul %29, %184, %cst_111 {dimension_numbers = #tpu.dot_dimension_numbers<[1], [0], [0], [1], [0, 0, 1, 1], [], []>} : vector<8x32xbf16>, vector<32x8xbf16>, vector<8x8xf32> -> vector<8x8xf32>
    %c11_112 = arith.constant 11 : index
    %c0_113 = arith.constant 0 : index
    %c0_114 = arith.constant 0 : index
    %186 = vector.load %arg6[%c11_112, %c0_113, %c0_114] : memref<24x1x8xf32, #tpu.memory_space<vmem>>, vector<1x1x8xf32>
    %187 = vector.shape_cast %186 : vector<1x1x8xf32> to vector<1x8xf32>
    %188 = vector.broadcast %187 : vector<1x8xf32> to vector<8x8xf32>
    %189 = arith.addf %185, %188 : vector<8x8xf32>
    %cst_115 = arith.constant 0.353553385 : f32
    %190 = vector.broadcast %cst_115 : f32 to vector<8x8xf32>
    %191 = arith.mulf %175, %190 : vector<8x8xf32>
    %192 = arith.truncf %191 : vector<8x8xf32> to vector<8x8xbf16>
    %193 = arith.truncf %182 : vector<8x8xf32> to vector<8x8xbf16>
    %cst_116 = arith.constant dense<0.000000e+00> : vector<8x8xf32>
    %194 = tpu.matmul %192, %193, %cst_116 {dimension_numbers = #tpu.dot_dimension_numbers<[1], [1], [0], [0], [0, 0, 1, 0], [], []>} : vector<8x8xbf16>, vector<8x8xbf16>, vector<8x8xf32> -> vector<8x8xf32>
    %195 = vector.broadcast %2 : vector<1x8xf32> to vector<8x8xf32>
    %196 = arith.addf %194, %195 : vector<8x8xf32>
    %cst_117 = arith.constant dense<0xFF800000> : vector<8xf32>
    %197 = vector.multi_reduction <maximumf>, %196, %cst_117 [1] : vector<8x8xf32> to vector<8xf32>
    %198 = vector.shape_cast %197 : vector<8xf32> to vector<8x1xf32>
    %199 = vector.broadcast %198 : vector<8x1xf32> to vector<8x8xf32>
    %200 = arith.subf %196, %199 : vector<8x8xf32>
    %201 = math.exp %200 : vector<8x8xf32>
    %cst_118 = arith.constant dense<0.000000e+00> : vector<8xf32>
    %202 = vector.multi_reduction <add>, %201, %cst_118 [1] : vector<8x8xf32> to vector<8xf32>
    %203 = vector.shape_cast %202 : vector<8xf32> to vector<8x1xf32>
    %204 = tpu.reciprocal %203 {approx = true} : vector<8x1xf32> -> vector<8x1xf32>
    %205 = vector.broadcast %204 : vector<8x1xf32> to vector<8x8xf32>
    %206 = arith.mulf %201, %205 : vector<8x8xf32>
    %207 = arith.truncf %206 : vector<8x8xf32> to vector<8x8xbf16>
    %208 = arith.truncf %189 : vector<8x8xf32> to vector<8x8xbf16>
    %cst_119 = arith.constant dense<0.000000e+00> : vector<8x8xf32>
    %209 = tpu.matmul %207, %208, %cst_119 {dimension_numbers = #tpu.dot_dimension_numbers<[1], [0], [0], [1], [0, 0, 1, 1], [], []>} : vector<8x8xbf16>, vector<8x8xbf16>, vector<8x8xf32> -> vector<8x8xf32>
    %c3_120 = arith.constant 3 : index
    %c0_121 = arith.constant 0 : index
    %c0_122 = arith.constant 0 : index
    %210 = vector.load %arg7[%c3_120, %c0_121, %c0_122] : memref<8x8x32xbf16, #tpu.memory_space<vmem>>, vector<1x8x32xbf16>
    %211 = vector.shape_cast %210 : vector<1x8x32xbf16> to vector<8x32xbf16>
    %212 = arith.truncf %209 : vector<8x8xf32> to vector<8x8xbf16>
    %cst_123 = arith.constant dense<0.000000e+00> : vector<8x32xf32>
    %213 = tpu.matmul %212, %211, %cst_123 {dimension_numbers = #tpu.dot_dimension_numbers<[1], [0], [0], [1], [0, 0, 1, 1], [], []>} : vector<8x8xbf16>, vector<8x32xbf16>, vector<8x32xf32> -> vector<8x32xf32>
    %214 = arith.addf %168, %213 : vector<8x32xf32>
    %215 = vector.extract_strided_slice %28 {offsets = [0, 0], sizes = [1, 32], strides = [1, 1]} : vector<7x64xf32> to vector<1x32xf32>
    %216 = vector.broadcast %215 : vector<1x32xf32> to vector<8x32xf32>
    %217 = arith.addf %214, %216 : vector<8x32xf32>
    %218 = arith.addf %217, %26 : vector<8x32xf32>
    %219 = vector.extract_strided_slice %28 {offsets = [1, 0], sizes = [1, 32], strides = [1, 1]} : vector<7x64xf32> to vector<1x32xf32>
    %220 = vector.extract_strided_slice %28 {offsets = [2, 0], sizes = [1, 32], strides = [1, 1]} : vector<7x64xf32> to vector<1x32xf32>
    %cst_124 = arith.constant dense<0.000000e+00> : vector<8xf32>
    %221 = vector.multi_reduction <add>, %218, %cst_124 [1] : vector<8x32xf32> to vector<8xf32>
    %222 = vector.shape_cast %221 : vector<8xf32> to vector<8x1xf32>
    %cst_125 = arith.constant 3.200000e+01 : f32
    %223 = vector.broadcast %cst_125 : f32 to vector<8x1xf32>
    %224 = arith.divf %222, %223 : vector<8x1xf32>
    %225 = vector.broadcast %224 : vector<8x1xf32> to vector<8x32xf32>
    %226 = arith.subf %218, %225 : vector<8x32xf32>
    %227 = arith.mulf %226, %226 : vector<8x32xf32>
    %cst_126 = arith.constant dense<0.000000e+00> : vector<8xf32>
    %228 = vector.multi_reduction <add>, %227, %cst_126 [1] : vector<8x32xf32> to vector<8xf32>
    %229 = vector.shape_cast %228 : vector<8xf32> to vector<8x1xf32>
    %cst_127 = arith.constant 3.200000e+01 : f32
    %230 = vector.broadcast %cst_127 : f32 to vector<8x1xf32>
    %231 = arith.divf %229, %230 : vector<8x1xf32>
    %cst_128 = arith.constant 9.99999996E-13 : f32
    %232 = vector.broadcast %cst_128 : f32 to vector<8x1xf32>
    %233 = arith.addf %231, %232 : vector<8x1xf32>
    %234 = math.rsqrt %233 : vector<8x1xf32>
    %235 = vector.broadcast %234 : vector<8x1xf32> to vector<8x32xf32>
    %236 = arith.mulf %226, %235 : vector<8x32xf32>
    %237 = vector.broadcast %219 : vector<1x32xf32> to vector<8x32xf32>
    %238 = arith.mulf %236, %237 : vector<8x32xf32>
    %239 = vector.broadcast %220 : vector<1x32xf32> to vector<8x32xf32>
    %240 = arith.addf %238, %239 : vector<8x32xf32>
    %c0_129 = arith.constant 0 : index
    %c0_130 = arith.constant 0 : index
    %c0_131 = arith.constant 0 : index
    %241 = vector.load %arg8[%c0_129, %c0_130, %c0_131] : memref<2x32x64xbf16, #tpu.memory_space<vmem>>, vector<1x32x64xbf16>
    %242 = vector.shape_cast %241 : vector<1x32x64xbf16> to vector<32x64xbf16>
    %243 = arith.truncf %240 : vector<8x32xf32> to vector<8x32xbf16>
    %cst_132 = arith.constant dense<0.000000e+00> : vector<8x64xf32>
    %244 = tpu.matmul %243, %242, %cst_132 {dimension_numbers = #tpu.dot_dimension_numbers<[1], [0], [0], [1], [0, 0, 1, 1], [], []>} : vector<8x32xbf16>, vector<32x64xbf16>, vector<8x64xf32> -> vector<8x64xf32>
    %245 = vector.extract_strided_slice %28 {offsets = [3, 0], sizes = [1, 64], strides = [1, 1]} : vector<7x64xf32> to vector<1x64xf32>
    %246 = vector.broadcast %245 : vector<1x64xf32> to vector<8x64xf32>
    %247 = arith.addf %244, %246 : vector<8x64xf32>
    %cst_133 = arith.constant 5.000000e-01 : f32
    %248 = vector.broadcast %cst_133 : f32 to vector<8x64xf32>
    %249 = arith.mulf %248, %247 : vector<8x64xf32>
    %cst_134 = arith.constant 4.471500e-02 : f32
    %250 = vector.broadcast %cst_134 : f32 to vector<8x64xf32>
    %251 = arith.mulf %250, %247 : vector<8x64xf32>
    %252 = arith.mulf %251, %247 : vector<8x64xf32>
    %253 = arith.mulf %252, %247 : vector<8x64xf32>
    %254 = arith.addf %247, %253 : vector<8x64xf32>
    %cst_135 = arith.constant 0.797884583 : f32
    %255 = vector.broadcast %cst_135 : f32 to vector<8x64xf32>
    %256 = arith.mulf %255, %254 : vector<8x64xf32>
    %257 = math.tanh %256 : vector<8x64xf32>
    %cst_136 = arith.constant 1.000000e+00 : f32
    %258 = vector.broadcast %cst_136 : f32 to vector<8x64xf32>
    %259 = arith.addf %258, %257 : vector<8x64xf32>
    %260 = arith.mulf %249, %259 : vector<8x64xf32>
    %c0_137 = arith.constant 0 : index
    %c0_138 = arith.constant 0 : index
    %c0_139 = arith.constant 0 : index
    %261 = vector.load %arg9[%c0_137, %c0_138, %c0_139] : memref<2x64x32xbf16, #tpu.memory_space<vmem>>, vector<1x64x32xbf16>
    %262 = vector.shape_cast %261 : vector<1x64x32xbf16> to vector<64x32xbf16>
    %263 = arith.truncf %260 : vector<8x64xf32> to vector<8x64xbf16>
    %cst_140 = arith.constant dense<0.000000e+00> : vector<8x32xf32>
    %264 = tpu.matmul %263, %262, %cst_140 {dimension_numbers = #tpu.dot_dimension_numbers<[1], [0], [0], [1], [0, 0, 1, 1], [], []>} : vector<8x64xbf16>, vector<64x32xbf16>, vector<8x32xf32> -> vector<8x32xf32>
    %265 = vector.extract_strided_slice %28 {offsets = [4, 0], sizes = [1, 32], strides = [1, 1]} : vector<7x64xf32> to vector<1x32xf32>
    %266 = vector.broadcast %265 : vector<1x32xf32> to vector<8x32xf32>
    %267 = arith.addf %264, %266 : vector<8x32xf32>
    %268 = arith.addf %267, %240 : vector<8x32xf32>
    %269 = vector.extract_strided_slice %28 {offsets = [5, 0], sizes = [1, 32], strides = [1, 1]} : vector<7x64xf32> to vector<1x32xf32>
    %270 = vector.extract_strided_slice %28 {offsets = [6, 0], sizes = [1, 32], strides = [1, 1]} : vector<7x64xf32> to vector<1x32xf32>
    %cst_141 = arith.constant dense<0.000000e+00> : vector<8xf32>
    %271 = vector.multi_reduction <add>, %268, %cst_141 [1] : vector<8x32xf32> to vector<8xf32>
    %272 = vector.shape_cast %271 : vector<8xf32> to vector<8x1xf32>
    %cst_142 = arith.constant 3.200000e+01 : f32
    %273 = vector.broadcast %cst_142 : f32 to vector<8x1xf32>
    %274 = arith.divf %272, %273 : vector<8x1xf32>
    %275 = vector.broadcast %274 : vector<8x1xf32> to vector<8x32xf32>
    %276 = arith.subf %268, %275 : vector<8x32xf32>
    %277 = arith.mulf %276, %276 : vector<8x32xf32>
    %cst_143 = arith.constant dense<0.000000e+00> : vector<8xf32>
    %278 = vector.multi_reduction <add>, %277, %cst_143 [1] : vector<8x32xf32> to vector<8xf32>
    %279 = vector.shape_cast %278 : vector<8xf32> to vector<8x1xf32>
    %cst_144 = arith.constant 3.200000e+01 : f32
    %280 = vector.broadcast %cst_144 : f32 to vector<8x1xf32>
    %281 = arith.divf %279, %280 : vector<8x1xf32>
    %cst_145 = arith.constant 9.99999996E-13 : f32
    %282 = vector.broadcast %cst_145 : f32 to vector<8x1xf32>
    %283 = arith.addf %281, %282 : vector<8x1xf32>
    %284 = math.rsqrt %283 : vector<8x1xf32>
    %285 = vector.broadcast %284 : vector<8x1xf32> to vector<8x32xf32>
    %286 = arith.mulf %276, %285 : vector<8x32xf32>
    %287 = vector.broadcast %269 : vector<1x32xf32> to vector<8x32xf32>
    %288 = arith.mulf %286, %287 : vector<8x32xf32>
    %289 = vector.broadcast %270 : vector<1x32xf32> to vector<8x32xf32>
    %290 = arith.addf %288, %289 : vector<8x32xf32>
    %c1_146 = arith.constant 1 : index
    %c0_147 = arith.constant 0 : index
    %c0_148 = arith.constant 0 : index
    %291 = vector.load %arg10[%c1_146, %c0_147, %c0_148] : memref<2x7x64xf32, #tpu.memory_space<vmem>>, vector<1x7x64xf32>
    %292 = vector.shape_cast %291 : vector<1x7x64xf32> to vector<7x64xf32>
    %293 = arith.truncf %290 : vector<8x32xf32> to vector<8x32xbf16>
    %cst_149 = arith.constant 0.000000e+00 : f32
    %294 = vector.broadcast %cst_149 : f32 to vector<8x32xf32>
    %c12 = arith.constant 12 : index
    %c0_150 = arith.constant 0 : index
    %c0_151 = arith.constant 0 : index
    %295 = vector.load %arg5[%c12, %c0_150, %c0_151] : memref<24x32x8xbf16, #tpu.memory_space<vmem>>, vector<1x32x8xbf16>
    %296 = vector.shape_cast %295 : vector<1x32x8xbf16> to vector<32x8xbf16>
    %cst_152 = arith.constant dense<0.000000e+00> : vector<8x8xf32>
    %297 = tpu.matmul %293, %296, %cst_152 {dimension_numbers = #tpu.dot_dimension_numbers<[1], [0], [0], [1], [0, 0, 1, 1], [], []>} : vector<8x32xbf16>, vector<32x8xbf16>, vector<8x8xf32> -> vector<8x8xf32>
    %c12_153 = arith.constant 12 : index
    %c0_154 = arith.constant 0 : index
    %c0_155 = arith.constant 0 : index
    %298 = vector.load %arg6[%c12_153, %c0_154, %c0_155] : memref<24x1x8xf32, #tpu.memory_space<vmem>>, vector<1x1x8xf32>
    %299 = vector.shape_cast %298 : vector<1x1x8xf32> to vector<1x8xf32>
    %300 = vector.broadcast %299 : vector<1x8xf32> to vector<8x8xf32>
    %301 = arith.addf %297, %300 : vector<8x8xf32>
    %c16 = arith.constant 16 : index
    %c0_156 = arith.constant 0 : index
    %c0_157 = arith.constant 0 : index
    %302 = vector.load %arg5[%c16, %c0_156, %c0_157] : memref<24x32x8xbf16, #tpu.memory_space<vmem>>, vector<1x32x8xbf16>
    %303 = vector.shape_cast %302 : vector<1x32x8xbf16> to vector<32x8xbf16>
    %cst_158 = arith.constant dense<0.000000e+00> : vector<8x8xf32>
    %304 = tpu.matmul %293, %303, %cst_158 {dimension_numbers = #tpu.dot_dimension_numbers<[1], [0], [0], [1], [0, 0, 1, 1], [], []>} : vector<8x32xbf16>, vector<32x8xbf16>, vector<8x8xf32> -> vector<8x8xf32>
    %c16_159 = arith.constant 16 : index
    %c0_160 = arith.constant 0 : index
    %c0_161 = arith.constant 0 : index
    %305 = vector.load %arg6[%c16_159, %c0_160, %c0_161] : memref<24x1x8xf32, #tpu.memory_space<vmem>>, vector<1x1x8xf32>
    %306 = vector.shape_cast %305 : vector<1x1x8xf32> to vector<1x8xf32>
    %307 = vector.broadcast %306 : vector<1x8xf32> to vector<8x8xf32>
    %308 = arith.addf %304, %307 : vector<8x8xf32>
    %c20 = arith.constant 20 : index
    %c0_162 = arith.constant 0 : index
    %c0_163 = arith.constant 0 : index
    %309 = vector.load %arg5[%c20, %c0_162, %c0_163] : memref<24x32x8xbf16, #tpu.memory_space<vmem>>, vector<1x32x8xbf16>
    %310 = vector.shape_cast %309 : vector<1x32x8xbf16> to vector<32x8xbf16>
    %cst_164 = arith.constant dense<0.000000e+00> : vector<8x8xf32>
    %311 = tpu.matmul %293, %310, %cst_164 {dimension_numbers = #tpu.dot_dimension_numbers<[1], [0], [0], [1], [0, 0, 1, 1], [], []>} : vector<8x32xbf16>, vector<32x8xbf16>, vector<8x8xf32> -> vector<8x8xf32>
    %c20_165 = arith.constant 20 : index
    %c0_166 = arith.constant 0 : index
    %c0_167 = arith.constant 0 : index
    %312 = vector.load %arg6[%c20_165, %c0_166, %c0_167] : memref<24x1x8xf32, #tpu.memory_space<vmem>>, vector<1x1x8xf32>
    %313 = vector.shape_cast %312 : vector<1x1x8xf32> to vector<1x8xf32>
    %314 = vector.broadcast %313 : vector<1x8xf32> to vector<8x8xf32>
    %315 = arith.addf %311, %314 : vector<8x8xf32>
    %cst_168 = arith.constant 0.353553385 : f32
    %316 = vector.broadcast %cst_168 : f32 to vector<8x8xf32>
    %317 = arith.mulf %301, %316 : vector<8x8xf32>
    %318 = arith.truncf %317 : vector<8x8xf32> to vector<8x8xbf16>
    %319 = arith.truncf %308 : vector<8x8xf32> to vector<8x8xbf16>
    %cst_169 = arith.constant dense<0.000000e+00> : vector<8x8xf32>
    %320 = tpu.matmul %318, %319, %cst_169 {dimension_numbers = #tpu.dot_dimension_numbers<[1], [1], [0], [0], [0, 0, 1, 0], [], []>} : vector<8x8xbf16>, vector<8x8xbf16>, vector<8x8xf32> -> vector<8x8xf32>
    %321 = vector.broadcast %2 : vector<1x8xf32> to vector<8x8xf32>
    %322 = arith.addf %320, %321 : vector<8x8xf32>
    %cst_170 = arith.constant dense<0xFF800000> : vector<8xf32>
    %323 = vector.multi_reduction <maximumf>, %322, %cst_170 [1] : vector<8x8xf32> to vector<8xf32>
    %324 = vector.shape_cast %323 : vector<8xf32> to vector<8x1xf32>
    %325 = vector.broadcast %324 : vector<8x1xf32> to vector<8x8xf32>
    %326 = arith.subf %322, %325 : vector<8x8xf32>
    %327 = math.exp %326 : vector<8x8xf32>
    %cst_171 = arith.constant dense<0.000000e+00> : vector<8xf32>
    %328 = vector.multi_reduction <add>, %327, %cst_171 [1] : vector<8x8xf32> to vector<8xf32>
    %329 = vector.shape_cast %328 : vector<8xf32> to vector<8x1xf32>
    %330 = tpu.reciprocal %329 {approx = true} : vector<8x1xf32> -> vector<8x1xf32>
    %331 = vector.broadcast %330 : vector<8x1xf32> to vector<8x8xf32>
    %332 = arith.mulf %327, %331 : vector<8x8xf32>
    %333 = arith.truncf %332 : vector<8x8xf32> to vector<8x8xbf16>
    %334 = arith.truncf %315 : vector<8x8xf32> to vector<8x8xbf16>
    %cst_172 = arith.constant dense<0.000000e+00> : vector<8x8xf32>
    %335 = tpu.matmul %333, %334, %cst_172 {dimension_numbers = #tpu.dot_dimension_numbers<[1], [0], [0], [1], [0, 0, 1, 1], [], []>} : vector<8x8xbf16>, vector<8x8xbf16>, vector<8x8xf32> -> vector<8x8xf32>
    %c4_173 = arith.constant 4 : index
    %c0_174 = arith.constant 0 : index
    %c0_175 = arith.constant 0 : index
    %336 = vector.load %arg7[%c4_173, %c0_174, %c0_175] : memref<8x8x32xbf16, #tpu.memory_space<vmem>>, vector<1x8x32xbf16>
    %337 = vector.shape_cast %336 : vector<1x8x32xbf16> to vector<8x32xbf16>
    %338 = arith.truncf %335 : vector<8x8xf32> to vector<8x8xbf16>
    %cst_176 = arith.constant dense<0.000000e+00> : vector<8x32xf32>
    %339 = tpu.matmul %338, %337, %cst_176 {dimension_numbers = #tpu.dot_dimension_numbers<[1], [0], [0], [1], [0, 0, 1, 1], [], []>} : vector<8x8xbf16>, vector<8x32xbf16>, vector<8x32xf32> -> vector<8x32xf32>
    %340 = arith.addf %294, %339 : vector<8x32xf32>
    %c13 = arith.constant 13 : index
    %c0_177 = arith.constant 0 : index
    %c0_178 = arith.constant 0 : index
    %341 = vector.load %arg5[%c13, %c0_177, %c0_178] : memref<24x32x8xbf16, #tpu.memory_space<vmem>>, vector<1x32x8xbf16>
    %342 = vector.shape_cast %341 : vector<1x32x8xbf16> to vector<32x8xbf16>
    %cst_179 = arith.constant dense<0.000000e+00> : vector<8x8xf32>
    %343 = tpu.matmul %293, %342, %cst_179 {dimension_numbers = #tpu.dot_dimension_numbers<[1], [0], [0], [1], [0, 0, 1, 1], [], []>} : vector<8x32xbf16>, vector<32x8xbf16>, vector<8x8xf32> -> vector<8x8xf32>
    %c13_180 = arith.constant 13 : index
    %c0_181 = arith.constant 0 : index
    %c0_182 = arith.constant 0 : index
    %344 = vector.load %arg6[%c13_180, %c0_181, %c0_182] : memref<24x1x8xf32, #tpu.memory_space<vmem>>, vector<1x1x8xf32>
    %345 = vector.shape_cast %344 : vector<1x1x8xf32> to vector<1x8xf32>
    %346 = vector.broadcast %345 : vector<1x8xf32> to vector<8x8xf32>
    %347 = arith.addf %343, %346 : vector<8x8xf32>
    %c17 = arith.constant 17 : index
    %c0_183 = arith.constant 0 : index
    %c0_184 = arith.constant 0 : index
    %348 = vector.load %arg5[%c17, %c0_183, %c0_184] : memref<24x32x8xbf16, #tpu.memory_space<vmem>>, vector<1x32x8xbf16>
    %349 = vector.shape_cast %348 : vector<1x32x8xbf16> to vector<32x8xbf16>
    %cst_185 = arith.constant dense<0.000000e+00> : vector<8x8xf32>
    %350 = tpu.matmul %293, %349, %cst_185 {dimension_numbers = #tpu.dot_dimension_numbers<[1], [0], [0], [1], [0, 0, 1, 1], [], []>} : vector<8x32xbf16>, vector<32x8xbf16>, vector<8x8xf32> -> vector<8x8xf32>
    %c17_186 = arith.constant 17 : index
    %c0_187 = arith.constant 0 : index
    %c0_188 = arith.constant 0 : index
    %351 = vector.load %arg6[%c17_186, %c0_187, %c0_188] : memref<24x1x8xf32, #tpu.memory_space<vmem>>, vector<1x1x8xf32>
    %352 = vector.shape_cast %351 : vector<1x1x8xf32> to vector<1x8xf32>
    %353 = vector.broadcast %352 : vector<1x8xf32> to vector<8x8xf32>
    %354 = arith.addf %350, %353 : vector<8x8xf32>
    %c21 = arith.constant 21 : index
    %c0_189 = arith.constant 0 : index
    %c0_190 = arith.constant 0 : index
    %355 = vector.load %arg5[%c21, %c0_189, %c0_190] : memref<24x32x8xbf16, #tpu.memory_space<vmem>>, vector<1x32x8xbf16>
    %356 = vector.shape_cast %355 : vector<1x32x8xbf16> to vector<32x8xbf16>
    %cst_191 = arith.constant dense<0.000000e+00> : vector<8x8xf32>
    %357 = tpu.matmul %293, %356, %cst_191 {dimension_numbers = #tpu.dot_dimension_numbers<[1], [0], [0], [1], [0, 0, 1, 1], [], []>} : vector<8x32xbf16>, vector<32x8xbf16>, vector<8x8xf32> -> vector<8x8xf32>
    %c21_192 = arith.constant 21 : index
    %c0_193 = arith.constant 0 : index
    %c0_194 = arith.constant 0 : index
    %358 = vector.load %arg6[%c21_192, %c0_193, %c0_194] : memref<24x1x8xf32, #tpu.memory_space<vmem>>, vector<1x1x8xf32>
    %359 = vector.shape_cast %358 : vector<1x1x8xf32> to vector<1x8xf32>
    %360 = vector.broadcast %359 : vector<1x8xf32> to vector<8x8xf32>
    %361 = arith.addf %357, %360 : vector<8x8xf32>
    %cst_195 = arith.constant 0.353553385 : f32
    %362 = vector.broadcast %cst_195 : f32 to vector<8x8xf32>
    %363 = arith.mulf %347, %362 : vector<8x8xf32>
    %364 = arith.truncf %363 : vector<8x8xf32> to vector<8x8xbf16>
    %365 = arith.truncf %354 : vector<8x8xf32> to vector<8x8xbf16>
    %cst_196 = arith.constant dense<0.000000e+00> : vector<8x8xf32>
    %366 = tpu.matmul %364, %365, %cst_196 {dimension_numbers = #tpu.dot_dimension_numbers<[1], [1], [0], [0], [0, 0, 1, 0], [], []>} : vector<8x8xbf16>, vector<8x8xbf16>, vector<8x8xf32> -> vector<8x8xf32>
    %367 = vector.broadcast %2 : vector<1x8xf32> to vector<8x8xf32>
    %368 = arith.addf %366, %367 : vector<8x8xf32>
    %cst_197 = arith.constant dense<0xFF800000> : vector<8xf32>
    %369 = vector.multi_reduction <maximumf>, %368, %cst_197 [1] : vector<8x8xf32> to vector<8xf32>
    %370 = vector.shape_cast %369 : vector<8xf32> to vector<8x1xf32>
    %371 = vector.broadcast %370 : vector<8x1xf32> to vector<8x8xf32>
    %372 = arith.subf %368, %371 : vector<8x8xf32>
    %373 = math.exp %372 : vector<8x8xf32>
    %cst_198 = arith.constant dense<0.000000e+00> : vector<8xf32>
    %374 = vector.multi_reduction <add>, %373, %cst_198 [1] : vector<8x8xf32> to vector<8xf32>
    %375 = vector.shape_cast %374 : vector<8xf32> to vector<8x1xf32>
    %376 = tpu.reciprocal %375 {approx = true} : vector<8x1xf32> -> vector<8x1xf32>
    %377 = vector.broadcast %376 : vector<8x1xf32> to vector<8x8xf32>
    %378 = arith.mulf %373, %377 : vector<8x8xf32>
    %379 = arith.truncf %378 : vector<8x8xf32> to vector<8x8xbf16>
    %380 = arith.truncf %361 : vector<8x8xf32> to vector<8x8xbf16>
    %cst_199 = arith.constant dense<0.000000e+00> : vector<8x8xf32>
    %381 = tpu.matmul %379, %380, %cst_199 {dimension_numbers = #tpu.dot_dimension_numbers<[1], [0], [0], [1], [0, 0, 1, 1], [], []>} : vector<8x8xbf16>, vector<8x8xbf16>, vector<8x8xf32> -> vector<8x8xf32>
    %c5_200 = arith.constant 5 : index
    %c0_201 = arith.constant 0 : index
    %c0_202 = arith.constant 0 : index
    %382 = vector.load %arg7[%c5_200, %c0_201, %c0_202] : memref<8x8x32xbf16, #tpu.memory_space<vmem>>, vector<1x8x32xbf16>
    %383 = vector.shape_cast %382 : vector<1x8x32xbf16> to vector<8x32xbf16>
    %384 = arith.truncf %381 : vector<8x8xf32> to vector<8x8xbf16>
    %cst_203 = arith.constant dense<0.000000e+00> : vector<8x32xf32>
    %385 = tpu.matmul %384, %383, %cst_203 {dimension_numbers = #tpu.dot_dimension_numbers<[1], [0], [0], [1], [0, 0, 1, 1], [], []>} : vector<8x8xbf16>, vector<8x32xbf16>, vector<8x32xf32> -> vector<8x32xf32>
    %386 = arith.addf %340, %385 : vector<8x32xf32>
    %c14 = arith.constant 14 : index
    %c0_204 = arith.constant 0 : index
    %c0_205 = arith.constant 0 : index
    %387 = vector.load %arg5[%c14, %c0_204, %c0_205] : memref<24x32x8xbf16, #tpu.memory_space<vmem>>, vector<1x32x8xbf16>
    %388 = vector.shape_cast %387 : vector<1x32x8xbf16> to vector<32x8xbf16>
    %cst_206 = arith.constant dense<0.000000e+00> : vector<8x8xf32>
    %389 = tpu.matmul %293, %388, %cst_206 {dimension_numbers = #tpu.dot_dimension_numbers<[1], [0], [0], [1], [0, 0, 1, 1], [], []>} : vector<8x32xbf16>, vector<32x8xbf16>, vector<8x8xf32> -> vector<8x8xf32>
    %c14_207 = arith.constant 14 : index
    %c0_208 = arith.constant 0 : index
    %c0_209 = arith.constant 0 : index
    %390 = vector.load %arg6[%c14_207, %c0_208, %c0_209] : memref<24x1x8xf32, #tpu.memory_space<vmem>>, vector<1x1x8xf32>
    %391 = vector.shape_cast %390 : vector<1x1x8xf32> to vector<1x8xf32>
    %392 = vector.broadcast %391 : vector<1x8xf32> to vector<8x8xf32>
    %393 = arith.addf %389, %392 : vector<8x8xf32>
    %c18 = arith.constant 18 : index
    %c0_210 = arith.constant 0 : index
    %c0_211 = arith.constant 0 : index
    %394 = vector.load %arg5[%c18, %c0_210, %c0_211] : memref<24x32x8xbf16, #tpu.memory_space<vmem>>, vector<1x32x8xbf16>
    %395 = vector.shape_cast %394 : vector<1x32x8xbf16> to vector<32x8xbf16>
    %cst_212 = arith.constant dense<0.000000e+00> : vector<8x8xf32>
    %396 = tpu.matmul %293, %395, %cst_212 {dimension_numbers = #tpu.dot_dimension_numbers<[1], [0], [0], [1], [0, 0, 1, 1], [], []>} : vector<8x32xbf16>, vector<32x8xbf16>, vector<8x8xf32> -> vector<8x8xf32>
    %c18_213 = arith.constant 18 : index
    %c0_214 = arith.constant 0 : index
    %c0_215 = arith.constant 0 : index
    %397 = vector.load %arg6[%c18_213, %c0_214, %c0_215] : memref<24x1x8xf32, #tpu.memory_space<vmem>>, vector<1x1x8xf32>
    %398 = vector.shape_cast %397 : vector<1x1x8xf32> to vector<1x8xf32>
    %399 = vector.broadcast %398 : vector<1x8xf32> to vector<8x8xf32>
    %400 = arith.addf %396, %399 : vector<8x8xf32>
    %c22 = arith.constant 22 : index
    %c0_216 = arith.constant 0 : index
    %c0_217 = arith.constant 0 : index
    %401 = vector.load %arg5[%c22, %c0_216, %c0_217] : memref<24x32x8xbf16, #tpu.memory_space<vmem>>, vector<1x32x8xbf16>
    %402 = vector.shape_cast %401 : vector<1x32x8xbf16> to vector<32x8xbf16>
    %cst_218 = arith.constant dense<0.000000e+00> : vector<8x8xf32>
    %403 = tpu.matmul %293, %402, %cst_218 {dimension_numbers = #tpu.dot_dimension_numbers<[1], [0], [0], [1], [0, 0, 1, 1], [], []>} : vector<8x32xbf16>, vector<32x8xbf16>, vector<8x8xf32> -> vector<8x8xf32>
    %c22_219 = arith.constant 22 : index
    %c0_220 = arith.constant 0 : index
    %c0_221 = arith.constant 0 : index
    %404 = vector.load %arg6[%c22_219, %c0_220, %c0_221] : memref<24x1x8xf32, #tpu.memory_space<vmem>>, vector<1x1x8xf32>
    %405 = vector.shape_cast %404 : vector<1x1x8xf32> to vector<1x8xf32>
    %406 = vector.broadcast %405 : vector<1x8xf32> to vector<8x8xf32>
    %407 = arith.addf %403, %406 : vector<8x8xf32>
    %cst_222 = arith.constant 0.353553385 : f32
    %408 = vector.broadcast %cst_222 : f32 to vector<8x8xf32>
    %409 = arith.mulf %393, %408 : vector<8x8xf32>
    %410 = arith.truncf %409 : vector<8x8xf32> to vector<8x8xbf16>
    %411 = arith.truncf %400 : vector<8x8xf32> to vector<8x8xbf16>
    %cst_223 = arith.constant dense<0.000000e+00> : vector<8x8xf32>
    %412 = tpu.matmul %410, %411, %cst_223 {dimension_numbers = #tpu.dot_dimension_numbers<[1], [1], [0], [0], [0, 0, 1, 0], [], []>} : vector<8x8xbf16>, vector<8x8xbf16>, vector<8x8xf32> -> vector<8x8xf32>
    %413 = vector.broadcast %2 : vector<1x8xf32> to vector<8x8xf32>
    %414 = arith.addf %412, %413 : vector<8x8xf32>
    %cst_224 = arith.constant dense<0xFF800000> : vector<8xf32>
    %415 = vector.multi_reduction <maximumf>, %414, %cst_224 [1] : vector<8x8xf32> to vector<8xf32>
    %416 = vector.shape_cast %415 : vector<8xf32> to vector<8x1xf32>
    %417 = vector.broadcast %416 : vector<8x1xf32> to vector<8x8xf32>
    %418 = arith.subf %414, %417 : vector<8x8xf32>
    %419 = math.exp %418 : vector<8x8xf32>
    %cst_225 = arith.constant dense<0.000000e+00> : vector<8xf32>
    %420 = vector.multi_reduction <add>, %419, %cst_225 [1] : vector<8x8xf32> to vector<8xf32>
    %421 = vector.shape_cast %420 : vector<8xf32> to vector<8x1xf32>
    %422 = tpu.reciprocal %421 {approx = true} : vector<8x1xf32> -> vector<8x1xf32>
    %423 = vector.broadcast %422 : vector<8x1xf32> to vector<8x8xf32>
    %424 = arith.mulf %419, %423 : vector<8x8xf32>
    %425 = arith.truncf %424 : vector<8x8xf32> to vector<8x8xbf16>
    %426 = arith.truncf %407 : vector<8x8xf32> to vector<8x8xbf16>
    %cst_226 = arith.constant dense<0.000000e+00> : vector<8x8xf32>
    %427 = tpu.matmul %425, %426, %cst_226 {dimension_numbers = #tpu.dot_dimension_numbers<[1], [0], [0], [1], [0, 0, 1, 1], [], []>} : vector<8x8xbf16>, vector<8x8xbf16>, vector<8x8xf32> -> vector<8x8xf32>
    %c6_227 = arith.constant 6 : index
    %c0_228 = arith.constant 0 : index
    %c0_229 = arith.constant 0 : index
    %428 = vector.load %arg7[%c6_227, %c0_228, %c0_229] : memref<8x8x32xbf16, #tpu.memory_space<vmem>>, vector<1x8x32xbf16>
    %429 = vector.shape_cast %428 : vector<1x8x32xbf16> to vector<8x32xbf16>
    %430 = arith.truncf %427 : vector<8x8xf32> to vector<8x8xbf16>
    %cst_230 = arith.constant dense<0.000000e+00> : vector<8x32xf32>
    %431 = tpu.matmul %430, %429, %cst_230 {dimension_numbers = #tpu.dot_dimension_numbers<[1], [0], [0], [1], [0, 0, 1, 1], [], []>} : vector<8x8xbf16>, vector<8x32xbf16>, vector<8x32xf32> -> vector<8x32xf32>
    %432 = arith.addf %386, %431 : vector<8x32xf32>
    %c15 = arith.constant 15 : index
    %c0_231 = arith.constant 0 : index
    %c0_232 = arith.constant 0 : index
    %433 = vector.load %arg5[%c15, %c0_231, %c0_232] : memref<24x32x8xbf16, #tpu.memory_space<vmem>>, vector<1x32x8xbf16>
    %434 = vector.shape_cast %433 : vector<1x32x8xbf16> to vector<32x8xbf16>
    %cst_233 = arith.constant dense<0.000000e+00> : vector<8x8xf32>
    %435 = tpu.matmul %293, %434, %cst_233 {dimension_numbers = #tpu.dot_dimension_numbers<[1], [0], [0], [1], [0, 0, 1, 1], [], []>} : vector<8x32xbf16>, vector<32x8xbf16>, vector<8x8xf32> -> vector<8x8xf32>
    %c15_234 = arith.constant 15 : index
    %c0_235 = arith.constant 0 : index
    %c0_236 = arith.constant 0 : index
    %436 = vector.load %arg6[%c15_234, %c0_235, %c0_236] : memref<24x1x8xf32, #tpu.memory_space<vmem>>, vector<1x1x8xf32>
    %437 = vector.shape_cast %436 : vector<1x1x8xf32> to vector<1x8xf32>
    %438 = vector.broadcast %437 : vector<1x8xf32> to vector<8x8xf32>
    %439 = arith.addf %435, %438 : vector<8x8xf32>
    %c19 = arith.constant 19 : index
    %c0_237 = arith.constant 0 : index
    %c0_238 = arith.constant 0 : index
    %440 = vector.load %arg5[%c19, %c0_237, %c0_238] : memref<24x32x8xbf16, #tpu.memory_space<vmem>>, vector<1x32x8xbf16>
    %441 = vector.shape_cast %440 : vector<1x32x8xbf16> to vector<32x8xbf16>
    %cst_239 = arith.constant dense<0.000000e+00> : vector<8x8xf32>
    %442 = tpu.matmul %293, %441, %cst_239 {dimension_numbers = #tpu.dot_dimension_numbers<[1], [0], [0], [1], [0, 0, 1, 1], [], []>} : vector<8x32xbf16>, vector<32x8xbf16>, vector<8x8xf32> -> vector<8x8xf32>
    %c19_240 = arith.constant 19 : index
    %c0_241 = arith.constant 0 : index
    %c0_242 = arith.constant 0 : index
    %443 = vector.load %arg6[%c19_240, %c0_241, %c0_242] : memref<24x1x8xf32, #tpu.memory_space<vmem>>, vector<1x1x8xf32>
    %444 = vector.shape_cast %443 : vector<1x1x8xf32> to vector<1x8xf32>
    %445 = vector.broadcast %444 : vector<1x8xf32> to vector<8x8xf32>
    %446 = arith.addf %442, %445 : vector<8x8xf32>
    %c23 = arith.constant 23 : index
    %c0_243 = arith.constant 0 : index
    %c0_244 = arith.constant 0 : index
    %447 = vector.load %arg5[%c23, %c0_243, %c0_244] : memref<24x32x8xbf16, #tpu.memory_space<vmem>>, vector<1x32x8xbf16>
    %448 = vector.shape_cast %447 : vector<1x32x8xbf16> to vector<32x8xbf16>
    %cst_245 = arith.constant dense<0.000000e+00> : vector<8x8xf32>
    %449 = tpu.matmul %293, %448, %cst_245 {dimension_numbers = #tpu.dot_dimension_numbers<[1], [0], [0], [1], [0, 0, 1, 1], [], []>} : vector<8x32xbf16>, vector<32x8xbf16>, vector<8x8xf32> -> vector<8x8xf32>
    %c23_246 = arith.constant 23 : index
    %c0_247 = arith.constant 0 : index
    %c0_248 = arith.constant 0 : index
    %450 = vector.load %arg6[%c23_246, %c0_247, %c0_248] : memref<24x1x8xf32, #tpu.memory_space<vmem>>, vector<1x1x8xf32>
    %451 = vector.shape_cast %450 : vector<1x1x8xf32> to vector<1x8xf32>
    %452 = vector.broadcast %451 : vector<1x8xf32> to vector<8x8xf32>
    %453 = arith.addf %449, %452 : vector<8x8xf32>
    %cst_249 = arith.constant 0.353553385 : f32
    %454 = vector.broadcast %cst_249 : f32 to vector<8x8xf32>
    %455 = arith.mulf %439, %454 : vector<8x8xf32>
    %456 = arith.truncf %455 : vector<8x8xf32> to vector<8x8xbf16>
    %457 = arith.truncf %446 : vector<8x8xf32> to vector<8x8xbf16>
    %cst_250 = arith.constant dense<0.000000e+00> : vector<8x8xf32>
    %458 = tpu.matmul %456, %457, %cst_250 {dimension_numbers = #tpu.dot_dimension_numbers<[1], [1], [0], [0], [0, 0, 1, 0], [], []>} : vector<8x8xbf16>, vector<8x8xbf16>, vector<8x8xf32> -> vector<8x8xf32>
    %459 = vector.broadcast %2 : vector<1x8xf32> to vector<8x8xf32>
    %460 = arith.addf %458, %459 : vector<8x8xf32>
    %cst_251 = arith.constant dense<0xFF800000> : vector<8xf32>
    %461 = vector.multi_reduction <maximumf>, %460, %cst_251 [1] : vector<8x8xf32> to vector<8xf32>
    %462 = vector.shape_cast %461 : vector<8xf32> to vector<8x1xf32>
    %463 = vector.broadcast %462 : vector<8x1xf32> to vector<8x8xf32>
    %464 = arith.subf %460, %463 : vector<8x8xf32>
    %465 = math.exp %464 : vector<8x8xf32>
    %cst_252 = arith.constant dense<0.000000e+00> : vector<8xf32>
    %466 = vector.multi_reduction <add>, %465, %cst_252 [1] : vector<8x8xf32> to vector<8xf32>
    %467 = vector.shape_cast %466 : vector<8xf32> to vector<8x1xf32>
    %468 = tpu.reciprocal %467 {approx = true} : vector<8x1xf32> -> vector<8x1xf32>
    %469 = vector.broadcast %468 : vector<8x1xf32> to vector<8x8xf32>
    %470 = arith.mulf %465, %469 : vector<8x8xf32>
    %471 = arith.truncf %470 : vector<8x8xf32> to vector<8x8xbf16>
    %472 = arith.truncf %453 : vector<8x8xf32> to vector<8x8xbf16>
    %cst_253 = arith.constant dense<0.000000e+00> : vector<8x8xf32>
    %473 = tpu.matmul %471, %472, %cst_253 {dimension_numbers = #tpu.dot_dimension_numbers<[1], [0], [0], [1], [0, 0, 1, 1], [], []>} : vector<8x8xbf16>, vector<8x8xbf16>, vector<8x8xf32> -> vector<8x8xf32>
    %c7_254 = arith.constant 7 : index
    %c0_255 = arith.constant 0 : index
    %c0_256 = arith.constant 0 : index
    %474 = vector.load %arg7[%c7_254, %c0_255, %c0_256] : memref<8x8x32xbf16, #tpu.memory_space<vmem>>, vector<1x8x32xbf16>
    %475 = vector.shape_cast %474 : vector<1x8x32xbf16> to vector<8x32xbf16>
    %476 = arith.truncf %473 : vector<8x8xf32> to vector<8x8xbf16>
    %cst_257 = arith.constant dense<0.000000e+00> : vector<8x32xf32>
    %477 = tpu.matmul %476, %475, %cst_257 {dimension_numbers = #tpu.dot_dimension_numbers<[1], [0], [0], [1], [0, 0, 1, 1], [], []>} : vector<8x8xbf16>, vector<8x32xbf16>, vector<8x32xf32> -> vector<8x32xf32>
    %478 = arith.addf %432, %477 : vector<8x32xf32>
    %479 = vector.extract_strided_slice %292 {offsets = [0, 0], sizes = [1, 32], strides = [1, 1]} : vector<7x64xf32> to vector<1x32xf32>
    %480 = vector.broadcast %479 : vector<1x32xf32> to vector<8x32xf32>
    %481 = arith.addf %478, %480 : vector<8x32xf32>
    %482 = arith.addf %481, %290 : vector<8x32xf32>
    %483 = vector.extract_strided_slice %292 {offsets = [1, 0], sizes = [1, 32], strides = [1, 1]} : vector<7x64xf32> to vector<1x32xf32>
    %484 = vector.extract_strided_slice %292 {offsets = [2, 0], sizes = [1, 32], strides = [1, 1]} : vector<7x64xf32> to vector<1x32xf32>
    %cst_258 = arith.constant dense<0.000000e+00> : vector<8xf32>
    %485 = vector.multi_reduction <add>, %482, %cst_258 [1] : vector<8x32xf32> to vector<8xf32>
    %486 = vector.shape_cast %485 : vector<8xf32> to vector<8x1xf32>
    %cst_259 = arith.constant 3.200000e+01 : f32
    %487 = vector.broadcast %cst_259 : f32 to vector<8x1xf32>
    %488 = arith.divf %486, %487 : vector<8x1xf32>
    %489 = vector.broadcast %488 : vector<8x1xf32> to vector<8x32xf32>
    %490 = arith.subf %482, %489 : vector<8x32xf32>
    %491 = arith.mulf %490, %490 : vector<8x32xf32>
    %cst_260 = arith.constant dense<0.000000e+00> : vector<8xf32>
    %492 = vector.multi_reduction <add>, %491, %cst_260 [1] : vector<8x32xf32> to vector<8xf32>
    %493 = vector.shape_cast %492 : vector<8xf32> to vector<8x1xf32>
    %cst_261 = arith.constant 3.200000e+01 : f32
    %494 = vector.broadcast %cst_261 : f32 to vector<8x1xf32>
    %495 = arith.divf %493, %494 : vector<8x1xf32>
    %cst_262 = arith.constant 9.99999996E-13 : f32
    %496 = vector.broadcast %cst_262 : f32 to vector<8x1xf32>
    %497 = arith.addf %495, %496 : vector<8x1xf32>
    %498 = math.rsqrt %497 : vector<8x1xf32>
    %499 = vector.broadcast %498 : vector<8x1xf32> to vector<8x32xf32>
    %500 = arith.mulf %490, %499 : vector<8x32xf32>
    %501 = vector.broadcast %483 : vector<1x32xf32> to vector<8x32xf32>
    %502 = arith.mulf %500, %501 : vector<8x32xf32>
    %503 = vector.broadcast %484 : vector<1x32xf32> to vector<8x32xf32>
    %504 = arith.addf %502, %503 : vector<8x32xf32>
    %c1_263 = arith.constant 1 : index
    %c0_264 = arith.constant 0 : index
    %c0_265 = arith.constant 0 : index
    %505 = vector.load %arg8[%c1_263, %c0_264, %c0_265] : memref<2x32x64xbf16, #tpu.memory_space<vmem>>, vector<1x32x64xbf16>
    %506 = vector.shape_cast %505 : vector<1x32x64xbf16> to vector<32x64xbf16>
    %507 = arith.truncf %504 : vector<8x32xf32> to vector<8x32xbf16>
    %cst_266 = arith.constant dense<0.000000e+00> : vector<8x64xf32>
    %508 = tpu.matmul %507, %506, %cst_266 {dimension_numbers = #tpu.dot_dimension_numbers<[1], [0], [0], [1], [0, 0, 1, 1], [], []>} : vector<8x32xbf16>, vector<32x64xbf16>, vector<8x64xf32> -> vector<8x64xf32>
    %509 = vector.extract_strided_slice %292 {offsets = [3, 0], sizes = [1, 64], strides = [1, 1]} : vector<7x64xf32> to vector<1x64xf32>
    %510 = vector.broadcast %509 : vector<1x64xf32> to vector<8x64xf32>
    %511 = arith.addf %508, %510 : vector<8x64xf32>
    %cst_267 = arith.constant 5.000000e-01 : f32
    %512 = vector.broadcast %cst_267 : f32 to vector<8x64xf32>
    %513 = arith.mulf %512, %511 : vector<8x64xf32>
    %cst_268 = arith.constant 4.471500e-02 : f32
    %514 = vector.broadcast %cst_268 : f32 to vector<8x64xf32>
    %515 = arith.mulf %514, %511 : vector<8x64xf32>
    %516 = arith.mulf %515, %511 : vector<8x64xf32>
    %517 = arith.mulf %516, %511 : vector<8x64xf32>
    %518 = arith.addf %511, %517 : vector<8x64xf32>
    %cst_269 = arith.constant 0.797884583 : f32
    %519 = vector.broadcast %cst_269 : f32 to vector<8x64xf32>
    %520 = arith.mulf %519, %518 : vector<8x64xf32>
    %521 = math.tanh %520 : vector<8x64xf32>
    %cst_270 = arith.constant 1.000000e+00 : f32
    %522 = vector.broadcast %cst_270 : f32 to vector<8x64xf32>
    %523 = arith.addf %522, %521 : vector<8x64xf32>
    %524 = arith.mulf %513, %523 : vector<8x64xf32>
    %c1_271 = arith.constant 1 : index
    %c0_272 = arith.constant 0 : index
    %c0_273 = arith.constant 0 : index
    %525 = vector.load %arg9[%c1_271, %c0_272, %c0_273] : memref<2x64x32xbf16, #tpu.memory_space<vmem>>, vector<1x64x32xbf16>
    %526 = vector.shape_cast %525 : vector<1x64x32xbf16> to vector<64x32xbf16>
    %527 = arith.truncf %524 : vector<8x64xf32> to vector<8x64xbf16>
    %cst_274 = arith.constant dense<0.000000e+00> : vector<8x32xf32>
    %528 = tpu.matmul %527, %526, %cst_274 {dimension_numbers = #tpu.dot_dimension_numbers<[1], [0], [0], [1], [0, 0, 1, 1], [], []>} : vector<8x64xbf16>, vector<64x32xbf16>, vector<8x32xf32> -> vector<8x32xf32>
    %529 = vector.extract_strided_slice %292 {offsets = [4, 0], sizes = [1, 32], strides = [1, 1]} : vector<7x64xf32> to vector<1x32xf32>
    %530 = vector.broadcast %529 : vector<1x32xf32> to vector<8x32xf32>
    %531 = arith.addf %528, %530 : vector<8x32xf32>
    %532 = arith.addf %531, %504 : vector<8x32xf32>
    %533 = vector.extract_strided_slice %292 {offsets = [5, 0], sizes = [1, 32], strides = [1, 1]} : vector<7x64xf32> to vector<1x32xf32>
    %534 = vector.extract_strided_slice %292 {offsets = [6, 0], sizes = [1, 32], strides = [1, 1]} : vector<7x64xf32> to vector<1x32xf32>
    %cst_275 = arith.constant dense<0.000000e+00> : vector<8xf32>
    %535 = vector.multi_reduction <add>, %532, %cst_275 [1] : vector<8x32xf32> to vector<8xf32>
    %536 = vector.shape_cast %535 : vector<8xf32> to vector<8x1xf32>
    %cst_276 = arith.constant 3.200000e+01 : f32
    %537 = vector.broadcast %cst_276 : f32 to vector<8x1xf32>
    %538 = arith.divf %536, %537 : vector<8x1xf32>
    %539 = vector.broadcast %538 : vector<8x1xf32> to vector<8x32xf32>
    %540 = arith.subf %532, %539 : vector<8x32xf32>
    %541 = arith.mulf %540, %540 : vector<8x32xf32>
    %cst_277 = arith.constant dense<0.000000e+00> : vector<8xf32>
    %542 = vector.multi_reduction <add>, %541, %cst_277 [1] : vector<8x32xf32> to vector<8xf32>
    %543 = vector.shape_cast %542 : vector<8xf32> to vector<8x1xf32>
    %cst_278 = arith.constant 3.200000e+01 : f32
    %544 = vector.broadcast %cst_278 : f32 to vector<8x1xf32>
    %545 = arith.divf %543, %544 : vector<8x1xf32>
    %cst_279 = arith.constant 9.99999996E-13 : f32
    %546 = vector.broadcast %cst_279 : f32 to vector<8x1xf32>
    %547 = arith.addf %545, %546 : vector<8x1xf32>
    %548 = math.rsqrt %547 : vector<8x1xf32>
    %549 = vector.broadcast %548 : vector<8x1xf32> to vector<8x32xf32>
    %550 = arith.mulf %540, %549 : vector<8x32xf32>
    %551 = vector.broadcast %533 : vector<1x32xf32> to vector<8x32xf32>
    %552 = arith.mulf %550, %551 : vector<8x32xf32>
    %553 = vector.broadcast %534 : vector<1x32xf32> to vector<8x32xf32>
    %554 = arith.addf %552, %553 : vector<8x32xf32>
    %555 = vector.extract_strided_slice %554 {offsets = [0, 0], sizes = [1, 32], strides = [1, 1]} : vector<8x32xf32> to vector<1x32xf32>
    %c0_280 = arith.constant 0 : index
    %c0_281 = arith.constant 0 : index
    %c0_282 = arith.constant 0 : index
    %556 = vector.load %arg11[%c0_280, %c0_281, %c0_282] : memref<3x32x32xbf16, #tpu.memory_space<vmem>>, vector<1x32x32xbf16>
    %557 = vector.shape_cast %556 : vector<1x32x32xbf16> to vector<32x32xbf16>
    %558 = arith.truncf %555 : vector<1x32xf32> to vector<1x32xbf16>
    %cst_283 = arith.constant dense<0.000000e+00> : vector<1x32xf32>
    %559 = tpu.matmul %558, %557, %cst_283 {dimension_numbers = #tpu.dot_dimension_numbers<[1], [0], [0], [1], [0, 0, 1, 1], [], []>} : vector<1x32xbf16>, vector<32x32xbf16>, vector<1x32xf32> -> vector<1x32xf32>
    %560 = vector.extract_strided_slice %0 {offsets = [2, 0], sizes = [1, 32], strides = [1, 1]} : vector<8x128xf32> to vector<1x32xf32>
    %561 = arith.addf %559, %560 : vector<1x32xf32>
    %562 = math.tanh %561 : vector<1x32xf32>
    %c2_284 = arith.constant 2 : index
    %c0_285 = arith.constant 0 : index
    %c0_286 = arith.constant 0 : index
    %563 = vector.load %arg11[%c2_284, %c0_285, %c0_286] : memref<3x32x32xbf16, #tpu.memory_space<vmem>>, vector<1x32x32xbf16>
    %564 = vector.shape_cast %563 : vector<1x32x32xbf16> to vector<32x32xbf16>
    %565 = vector.extract_strided_slice %564 {offsets = [0, 0], sizes = [32, 2], strides = [1, 1]} : vector<32x32xbf16> to vector<32x2xbf16>
    %566 = arith.truncf %562 : vector<1x32xf32> to vector<1x32xbf16>
    %cst_287 = arith.constant dense<0.000000e+00> : vector<1x2xf32>
    %567 = tpu.matmul %566, %565, %cst_287 {dimension_numbers = #tpu.dot_dimension_numbers<[1], [0], [0], [1], [0, 0, 1, 1], [], []>} : vector<1x32xbf16>, vector<32x2xbf16>, vector<1x2xf32> -> vector<1x2xf32>
    %568 = vector.extract_strided_slice %0 {offsets = [6, 0], sizes = [1, 2], strides = [1, 1]} : vector<8x128xf32> to vector<1x2xf32>
    %569 = arith.addf %567, %568 : vector<1x2xf32>
    %c1_288 = arith.constant 1 : index
    %c0_289 = arith.constant 0 : index
    %c0_290 = arith.constant 0 : index
    %570 = vector.load %arg11[%c1_288, %c0_289, %c0_290] : memref<3x32x32xbf16, #tpu.memory_space<vmem>>, vector<1x32x32xbf16>
    %571 = vector.shape_cast %570 : vector<1x32x32xbf16> to vector<32x32xbf16>
    %572 = arith.truncf %554 : vector<8x32xf32> to vector<8x32xbf16>
    %cst_291 = arith.constant dense<0.000000e+00> : vector<8x32xf32>
    %573 = tpu.matmul %572, %571, %cst_291 {dimension_numbers = #tpu.dot_dimension_numbers<[1], [0], [0], [1], [0, 0, 1, 1], [], []>} : vector<8x32xbf16>, vector<32x32xbf16>, vector<8x32xf32> -> vector<8x32xf32>
    %574 = vector.extract_strided_slice %0 {offsets = [3, 0], sizes = [1, 32], strides = [1, 1]} : vector<8x128xf32> to vector<1x32xf32>
    %575 = vector.broadcast %574 : vector<1x32xf32> to vector<8x32xf32>
    %576 = arith.addf %573, %575 : vector<8x32xf32>
    %cst_292 = arith.constant 5.000000e-01 : f32
    %577 = vector.broadcast %cst_292 : f32 to vector<8x32xf32>
    %578 = arith.mulf %577, %576 : vector<8x32xf32>
    %cst_293 = arith.constant 4.471500e-02 : f32
    %579 = vector.broadcast %cst_293 : f32 to vector<8x32xf32>
    %580 = arith.mulf %579, %576 : vector<8x32xf32>
    %581 = arith.mulf %580, %576 : vector<8x32xf32>
    %582 = arith.mulf %581, %576 : vector<8x32xf32>
    %583 = arith.addf %576, %582 : vector<8x32xf32>
    %cst_294 = arith.constant 0.797884583 : f32
    %584 = vector.broadcast %cst_294 : f32 to vector<8x32xf32>
    %585 = arith.mulf %584, %583 : vector<8x32xf32>
    %586 = math.tanh %585 : vector<8x32xf32>
    %cst_295 = arith.constant 1.000000e+00 : f32
    %587 = vector.broadcast %cst_295 : f32 to vector<8x32xf32>
    %588 = arith.addf %587, %586 : vector<8x32xf32>
    %589 = arith.mulf %578, %588 : vector<8x32xf32>
    %590 = vector.extract_strided_slice %0 {offsets = [4, 0], sizes = [1, 32], strides = [1, 1]} : vector<8x128xf32> to vector<1x32xf32>
    %591 = vector.extract_strided_slice %0 {offsets = [5, 0], sizes = [1, 32], strides = [1, 1]} : vector<8x128xf32> to vector<1x32xf32>
    %cst_296 = arith.constant dense<0.000000e+00> : vector<8xf32>
    %592 = vector.multi_reduction <add>, %589, %cst_296 [1] : vector<8x32xf32> to vector<8xf32>
    %593 = vector.shape_cast %592 : vector<8xf32> to vector<8x1xf32>
    %cst_297 = arith.constant 3.200000e+01 : f32
    %594 = vector.broadcast %cst_297 : f32 to vector<8x1xf32>
    %595 = arith.divf %593, %594 : vector<8x1xf32>
    %596 = vector.broadcast %595 : vector<8x1xf32> to vector<8x32xf32>
    %597 = arith.subf %589, %596 : vector<8x32xf32>
    %598 = arith.mulf %597, %597 : vector<8x32xf32>
    %cst_298 = arith.constant dense<0.000000e+00> : vector<8xf32>
    %599 = vector.multi_reduction <add>, %598, %cst_298 [1] : vector<8x32xf32> to vector<8xf32>
    %600 = vector.shape_cast %599 : vector<8xf32> to vector<8x1xf32>
    %cst_299 = arith.constant 3.200000e+01 : f32
    %601 = vector.broadcast %cst_299 : f32 to vector<8x1xf32>
    %602 = arith.divf %600, %601 : vector<8x1xf32>
    %cst_300 = arith.constant 9.99999996E-13 : f32
    %603 = vector.broadcast %cst_300 : f32 to vector<8x1xf32>
    %604 = arith.addf %602, %603 : vector<8x1xf32>
    %605 = math.rsqrt %604 : vector<8x1xf32>
    %606 = vector.broadcast %605 : vector<8x1xf32> to vector<8x32xf32>
    %607 = arith.mulf %597, %606 : vector<8x32xf32>
    %608 = vector.broadcast %590 : vector<1x32xf32> to vector<8x32xf32>
    %609 = arith.mulf %607, %608 : vector<8x32xf32>
    %610 = vector.broadcast %591 : vector<1x32xf32> to vector<8x32xf32>
    %611 = arith.addf %609, %610 : vector<8x32xf32>
    %c0_301 = arith.constant 0 : index
    %c0_302 = arith.constant 0 : index
    %612 = vector.load %arg13[%c0_301, %c0_302] : memref<128x32xbf16, #tpu.memory_space<vmem>>, vector<128x32xbf16>
    %613 = arith.truncf %611 : vector<8x32xf32> to vector<8x32xbf16>
    %cst_303 = arith.constant dense<0.000000e+00> : vector<8x128xf32>
    %614 = tpu.matmul %613, %612, %cst_303 {dimension_numbers = #tpu.dot_dimension_numbers<[1], [1], [0], [0], [0, 0, 1, 0], [], []>} : vector<8x32xbf16>, vector<128x32xbf16>, vector<8x128xf32> -> vector<8x128xf32>
    %615 = vector.extract_strided_slice %0 {offsets = [7, 0], sizes = [1, 128], strides = [1, 1]} : vector<8x128xf32> to vector<1x128xf32>
    %616 = vector.broadcast %615 : vector<1x128xf32> to vector<8x128xf32>
    %617 = arith.addf %614, %616 : vector<8x128xf32>
    %c0_304 = arith.constant 0 : index
    %c0_305 = arith.constant 0 : index
    %c0_306 = arith.constant 0 : index
    %618 = vector.load %arg3[%c0_304, %c0_305, %c0_306] : memref<1x8x1xi32, #tpu.memory_space<vmem>>, vector<1x8x1xi32>
    %619 = vector.shape_cast %618 : vector<1x8x1xi32> to vector<8x1xi32>
    %cst_307 = arith.constant dense<0xFF800000> : vector<8xf32>
    %620 = vector.multi_reduction <maximumf>, %617, %cst_307 [1] : vector<8x128xf32> to vector<8xf32>
    %621 = vector.shape_cast %620 : vector<8xf32> to vector<8x1xf32>
    %622 = vector.broadcast %621 : vector<8x1xf32> to vector<8x128xf32>
    %623 = arith.subf %617, %622 : vector<8x128xf32>
    %624 = math.exp %623 : vector<8x128xf32>
    %cst_308 = arith.constant dense<0.000000e+00> : vector<8xf32>
    %625 = vector.multi_reduction <add>, %624, %cst_308 [1] : vector<8x128xf32> to vector<8xf32>
    %626 = vector.shape_cast %625 : vector<8xf32> to vector<8x1xf32>
    %627 = math.log %626 : vector<8x1xf32>
    %628 = arith.addf %627, %621 : vector<8x1xf32>
    %629 = tpu.iota {dimensions = array<i32: 1>} : vector<8x128xi32>
    %630 = vector.broadcast %619 : vector<8x1xi32> to vector<8x128xi32>
    %631 = arith.cmpi eq, %629, %630 : vector<8x128xi32>
    %cst_309 = arith.constant 0.000000e+00 : f32
    %632 = vector.broadcast %cst_309 : f32 to vector<8x128xf32>
    %633 = arith.select %631, %617, %632 : vector<8x128xi1>, vector<8x128xf32>
    %cst_310 = arith.constant dense<0.000000e+00> : vector<8xf32>
    %634 = vector.multi_reduction <add>, %633, %cst_310 [1] : vector<8x128xf32> to vector<8xf32>
    %635 = vector.shape_cast %634 : vector<8xf32> to vector<8x1xf32>
    %c-1_i32 = arith.constant -1 : i32
    %636 = vector.broadcast %c-1_i32 : i32 to vector<8x1xi32>
    %637 = arith.cmpi ne, %619, %636 : vector<8x1xi32>
    %638 = arith.extui %637 : vector<8x1xi1> to vector<8x1xi32>
    %639 = arith.sitofp %638 : vector<8x1xi32> to vector<8x1xf32>
    %640 = arith.subf %628, %635 : vector<8x1xf32>
    %641 = arith.mulf %640, %639 : vector<8x1xf32>
    %642 = vector.shape_cast %641 : vector<8x1xf32> to vector<1x8x1xf32>
    %cst_311 = arith.constant dense<0.000000e+00> : vector<1xf32>
    %643 = vector.multi_reduction <add>, %642, %cst_311 [1, 2] : vector<1x8x1xf32> to vector<1xf32>
    %644 = vector.shape_cast %643 : vector<1xf32> to vector<1x1x1xf32>
    %645 = vector.extract %644[0, 0, 0] : f32 from vector<1x1x1xf32>
    %c0_312 = arith.constant 0 : index
    %c0_313 = arith.constant 0 : index
    %c0_314 = arith.constant 0 : index
    %646 = vector.load %arg4[%c0_312, %c0_313, %c0_314] : memref<1x1x1xi32, #tpu.memory_space<vmem>>, vector<1x1x1xi32>
    %647 = vector.shape_cast %646 : vector<1x1x1xi32> to vector<1x1xi32>
    %cst_315 = arith.constant dense<0xFF800000> : vector<1xf32>
    %648 = vector.multi_reduction <maximumf>, %569, %cst_315 [1] : vector<1x2xf32> to vector<1xf32>
    %649 = vector.shape_cast %648 : vector<1xf32> to vector<1x1xf32>
    %650 = vector.broadcast %649 : vector<1x1xf32> to vector<1x2xf32>
    %651 = arith.subf %569, %650 : vector<1x2xf32>
    %652 = math.exp %651 : vector<1x2xf32>
    %cst_316 = arith.constant dense<0.000000e+00> : vector<1xf32>
    %653 = vector.multi_reduction <add>, %652, %cst_316 [1] : vector<1x2xf32> to vector<1xf32>
    %654 = vector.shape_cast %653 : vector<1xf32> to vector<1x1xf32>
    %655 = math.log %654 : vector<1x1xf32>
    %656 = arith.addf %655, %649 : vector<1x1xf32>
    %657 = tpu.iota {dimensions = array<i32: 1>} : vector<1x2xi32>
    %658 = vector.broadcast %647 : vector<1x1xi32> to vector<1x2xi32>
    %659 = arith.cmpi eq, %657, %658 : vector<1x2xi32>
    %cst_317 = arith.constant 0.000000e+00 : f32
    %660 = vector.broadcast %cst_317 : f32 to vector<1x2xf32>
    %661 = arith.select %659, %569, %660 : vector<1x2xi1>, vector<1x2xf32>
    %cst_318 = arith.constant dense<0.000000e+00> : vector<1xf32>
    %662 = vector.multi_reduction <add>, %661, %cst_318 [1] : vector<1x2xf32> to vector<1xf32>
    %663 = vector.shape_cast %662 : vector<1xf32> to vector<1x1xf32>
    %c-1_i32_319 = arith.constant -1 : i32
    %664 = vector.broadcast %c-1_i32_319 : i32 to vector<1x1xi32>
    %665 = arith.cmpi ne, %647, %664 : vector<1x1xi32>
    %666 = arith.extui %665 : vector<1x1xi1> to vector<1x1xi32>
    %667 = arith.sitofp %666 : vector<1x1xi32> to vector<1x1xf32>
    %668 = arith.subf %656, %663 : vector<1x1xf32>
    %669 = arith.mulf %668, %667 : vector<1x1xf32>
    %670 = vector.shape_cast %669 : vector<1x1xf32> to vector<1x1x1xf32>
    %cst_320 = arith.constant dense<0.000000e+00> : vector<1xf32>
    %671 = vector.multi_reduction <add>, %670, %cst_320 [1, 2] : vector<1x1x1xf32> to vector<1xf32>
    %672 = vector.shape_cast %671 : vector<1xf32> to vector<1x1x1xf32>
    %673 = vector.extract %672[0, 0, 0] : f32 from vector<1x1x1xf32>
    %c-1_i32_321 = arith.constant -1 : i32
    %674 = vector.broadcast %c-1_i32_321 : i32 to vector<8x1xi32>
    %675 = arith.cmpi ne, %619, %674 : vector<8x1xi32>
    %676 = arith.extui %675 : vector<8x1xi1> to vector<8x1xi32>
    %677 = arith.sitofp %676 : vector<8x1xi32> to vector<8x1xf32>
    %678 = vector.shape_cast %677 : vector<8x1xf32> to vector<1x8x1xf32>
    %cst_322 = arith.constant dense<0.000000e+00> : vector<1xf32>
    %679 = vector.multi_reduction <add>, %678, %cst_322 [1, 2] : vector<1x8x1xf32> to vector<1xf32>
    %680 = vector.shape_cast %679 : vector<1xf32> to vector<1x1x1xf32>
    %681 = vector.extract %680[0, 0, 0] : f32 from vector<1x1x1xf32>
    %682 = tpu.iota {dimensions = array<i32: 1>} : vector<8x128xi32>
    %c0_i32 = arith.constant 0 : i32
    %683 = vector.broadcast %c0_i32 : i32 to vector<8x128xi32>
    %684 = arith.cmpi eq, %682, %683 : vector<8x128xi32>
    %cst_323 = arith.constant 0.000000e+00 : f32
    %685 = vector.broadcast %645 : f32 to vector<8x128xf32>
    %686 = vector.broadcast %cst_323 : f32 to vector<8x128xf32>
    %687 = arith.select %684, %685, %686 : vector<8x128xi1>, vector<8x128xf32>
    %c1_i32 = arith.constant 1 : i32
    %688 = vector.broadcast %c1_i32 : i32 to vector<8x128xi32>
    %689 = arith.cmpi eq, %682, %688 : vector<8x128xi32>
    %cst_324 = arith.constant 0.000000e+00 : f32
    %690 = vector.broadcast %673 : f32 to vector<8x128xf32>
    %691 = vector.broadcast %cst_324 : f32 to vector<8x128xf32>
    %692 = arith.select %689, %690, %691 : vector<8x128xi1>, vector<8x128xf32>
    %693 = arith.addf %687, %692 : vector<8x128xf32>
    %c2_i32 = arith.constant 2 : i32
    %694 = vector.broadcast %c2_i32 : i32 to vector<8x128xi32>
    %695 = arith.cmpi eq, %682, %694 : vector<8x128xi32>
    %cst_325 = arith.constant 0.000000e+00 : f32
    %696 = vector.broadcast %681 : f32 to vector<8x128xf32>
    %697 = vector.broadcast %cst_325 : f32 to vector<8x128xf32>
    %698 = arith.select %695, %696, %697 : vector<8x128xi1>, vector<8x128xf32>
    %699 = arith.addf %693, %698 : vector<8x128xf32>
    %c0_326 = arith.constant 0 : index
    %c0_327 = arith.constant 0 : index
    %c0_328 = arith.constant 0 : index
    %700 = vector.load %arg14[%c0_326, %c0_327, %c0_328] : memref<1x8x128xf32, #tpu.memory_space<vmem>>, vector<1x8x128xf32>
    %701 = vector.shape_cast %700 : vector<1x8x128xf32> to vector<8x128xf32>
    %702 = vector.shape_cast %699 : vector<8x128xf32> to vector<1x8x128xf32>
    tpu.vector_store %arg14[%c0_326, %c0_327, %c0_328], %702 {strides = array<i32>} : memref<1x8x128xf32, #tpu.memory_space<vmem>>, vector<1x8x128xf32>,
    return
  }
  func.func @transform_0(%arg0: i32) -> (i32, i32, i32) {
    %c0_i32 = arith.constant 0 : i32
    %c0_i32_0 = arith.constant 0 : i32
    %c0_i32_1 = arith.constant 0 : i32
    return %arg0, %c0_i32, %c0_i32_0 : i32, i32, i32
  }
  func.func @transform_1(%arg0: i32) -> (i32, i32, i32) {
    %c0_i32 = arith.constant 0 : i32
    %c0_i32_0 = arith.constant 0 : i32
    %c0_i32_1 = arith.constant 0 : i32
    return %arg0, %c0_i32, %c0_i32_0 : i32, i32, i32
  }
  func.func @transform_2(%arg0: i32) -> (i32, i32, i32) {
    %c0_i32 = arith.constant 0 : i32
    %c0_i32_0 = arith.constant 0 : i32
    %c0_i32_1 = arith.constant 0 : i32
    return %arg0, %c0_i32, %c0_i32_0 : i32, i32, i32
  }
  func.func @transform_3(%arg0: i32) -> (i32, i32, i32) {
    %c0_i32 = arith.constant 0 : i32
    %c0_i32_0 = arith.constant 0 : i32
    %c0_i32_1 = arith.constant 0 : i32
    return %arg0, %c0_i32, %c0_i32_0 : i32, i32, i32
  }
  func.func @transform_4(%arg0: i32) -> (i32, i32, i32) {
    %c0_i32 = arith.constant 0 : i32
    %c0_i32_0 = arith.constant 0 : i32
    %c0_i32_1 = arith.constant 0 : i32
    %c0_i32_2 = arith.constant 0 : i32
    return %c0_i32, %c0_i32_0, %c0_i32_1 : i32, i32, i32
  }
  func.func @transform_5(%arg0: i32) -> (i32, i32, i32) {
    %c0_i32 = arith.constant 0 : i32
    %c0_i32_0 = arith.constant 0 : i32
    %c0_i32_1 = arith.constant 0 : i32
    %c0_i32_2 = arith.constant 0 : i32
    return %c0_i32, %c0_i32_0, %c0_i32_1 : i32, i32, i32
  }
  func.func @transform_6(%arg0: i32) -> (i32, i32, i32) {
    %c0_i32 = arith.constant 0 : i32
    %c0_i32_0 = arith.constant 0 : i32
    %c0_i32_1 = arith.constant 0 : i32
    %c0_i32_2 = arith.constant 0 : i32
    return %c0_i32, %c0_i32_0, %c0_i32_1 : i32, i32, i32
  }
  func.func @transform_7(%arg0: i32) -> (i32, i32, i32) {
    %c0_i32 = arith.constant 0 : i32
    %c0_i32_0 = arith.constant 0 : i32
    %c0_i32_1 = arith.constant 0 : i32
    %c0_i32_2 = arith.constant 0 : i32
    return %c0_i32, %c0_i32_0, %c0_i32_1 : i32, i32, i32
  }
  func.func @transform_8(%arg0: i32) -> (i32, i32, i32) {
    %c0_i32 = arith.constant 0 : i32
    %c0_i32_0 = arith.constant 0 : i32
    %c0_i32_1 = arith.constant 0 : i32
    %c0_i32_2 = arith.constant 0 : i32
    return %c0_i32, %c0_i32_0, %c0_i32_1 : i32, i32, i32
  }
  func.func @transform_9(%arg0: i32) -> (i32, i32, i32) {
    %c0_i32 = arith.constant 0 : i32
    %c0_i32_0 = arith.constant 0 : i32
    %c0_i32_1 = arith.constant 0 : i32
    %c0_i32_2 = arith.constant 0 : i32
    return %c0_i32, %c0_i32_0, %c0_i32_1 : i32, i32, i32
  }
  func.func @transform_10(%arg0: i32) -> (i32, i32, i32) {
    %c0_i32 = arith.constant 0 : i32
    %c0_i32_0 = arith.constant 0 : i32
    %c0_i32_1 = arith.constant 0 : i32
    %c0_i32_2 = arith.constant 0 : i32
    return %c0_i32, %c0_i32_0, %c0_i32_1 : i32, i32, i32
  }
  func.func @transform_11(%arg0: i32) -> (i32, i32) {
    %c0_i32 = arith.constant 0 : i32
    %c0_i32_0 = arith.constant 0 : i32
    %c0_i32_1 = arith.constant 0 : i32
    return %c0_i32, %c0_i32_0 : i32, i32
  }
  func.func @transform_12(%arg0: i32) -> (i32, i32) {
    %c0_i32 = arith.constant 0 : i32
    %c0_i32_0 = arith.constant 0 : i32
    %c0_i32_1 = arith.constant 0 : i32
    return %c0_i32, %c0_i32_0 : i32, i32
  }
  func.func @transform_13(%arg0: i32) -> (i32, i32, i32) {
    %c0_i32 = arith.constant 0 : i32
    %c0_i32_0 = arith.constant 0 : i32
    %c0_i32_1 = arith.constant 0 : i32
    return %arg0, %c0_i32, %c0_i32_0 : i32, i32, i32
  }
}

</mosaic_0001>

<llo_original>
// kernel: tpu_custom_call.1
$region0: #{tpu_custom_call.1}
  #allocation0 [shape = 'u32[]', space=smem, size = 0x4, offset = 0x4, fixed_abs, tag = 'smem constant byte address 0x4 - core index']
  #allocation1 [shape = 'u32[144,128]{1,0:T(1,128)}', space=vmem, size = 0x12000, scoped, tag = 'internal scratch']
  %s0 = inlined_call_operand.vmem [shape: f32[2,8,32], index: 0, kind: input, shape index: {}]
  %s1 = inlined_call_operand.vmem [shape: f32[2,1,8], index: 1, kind: input, shape index: {}]
  %s2 = inlined_call_operand.vmem [shape: s32[2,8,1], index: 2, kind: input, shape index: {}]
  %s3 = inlined_call_operand.vmem [shape: s32[2,1,1], index: 3, kind: input, shape index: {}]
  %s4 = inlined_call_operand.vmem [shape: bf16[24,32,8], index: 4, kind: input, shape index: {}]
  %s5 = inlined_call_operand.vmem [shape: f32[24,1,8], index: 5, kind: input, shape index: {}]
  %s6 = inlined_call_operand.vmem [shape: bf16[8,8,32], index: 6, kind: input, shape index: {}]
  %s7 = inlined_call_operand.vmem [shape: bf16[2,32,64], index: 7, kind: input, shape index: {}]
  %s8 = inlined_call_operand.vmem [shape: bf16[2,64,32], index: 8, kind: input, shape index: {}]
  %s9 = inlined_call_operand.vmem [shape: f32[2,7,64], index: 9, kind: input, shape index: {}]
  %s10 = inlined_call_operand.vmem [shape: bf16[3,32,32], index: 10, kind: input, shape index: {}]
  %s11 = inlined_call_operand.vmem [shape: f32[8,128], index: 11, kind: input, shape index: {}]
  %s12 = inlined_call_operand.vmem [shape: bf16[128,32], index: 12, kind: input, shape index: {}]
  %s13 = inlined_call_operand.hbm [shape: f32[2,8,128], index: 13, kind: output, shape index: {}]
  %s14 = sld [smem:[#allocation0]]
  $region85: #{tpu_custom_call.1} parent=0
    _
  %s16 = ssub.s32 1, %s14
  %s17 = scalar_select 0, %s16, %s14
  $region1: #{tpu_custom_call.1} parent=0
    #allocation2 [shape = 'u8[8192]{0}', space=vmem, size = 0x2000, scoped, tag = 'output window, operand 0']
    #allocation3 [shape = 's32[2]{0}', space=sflag, size = 0x8, scoped, tag = 'scoped memory for tpu_custom_call.1']
    %18 = vsyncpa [#allocation3], 0
    %s19 = scalar_lea.sflag [#allocation3], 1
    %20 = vsyncpa %s19, 0
    loop: start=0, step=1, limit=4
    $region2: #{tpu_custom_call.1} parent=1 // loop_pre_header
      _
    $region3: #{tpu_custom_call.1} parent=1 // loop_header
      %s22 = sphi 0, %s26
      %p23 = scmp.ge.s32.totalorder %s22, 4
      %s32 = sphi 0, %s34
      %s35 = sphi 0, %s32
      %s36 = sphi 0, %s35
      %s52 = sphi 0, %s36
      %s58 = sphi 0, %s60
      %s61 = sphi 0, %s58
      %s62 = sphi 0, %s61
      %s78 = sphi 0, %s62
      %s84 = sphi 0, %s86
      %s87 = sphi 0, %s84
      %s88 = sphi 0, %s87
      %s104 = sphi 0, %s88
      %s110 = sphi 0, %s112
      %s113 = sphi 0, %s110
      %s114 = sphi 0, %s113
      %s130 = sphi 0, %s114
      %s134 = sphi 0, %s134
      %s136 = sphi 0, %s134
      %s137 = sphi 0, %s136
      %s151 = sphi 0, %s137
      %s155 = sphi 0, %s155
      %s157 = sphi 0, %s155
      %s158 = sphi 0, %s157
      %s172 = sphi 0, %s158
      %s176 = sphi 0, %s176
      %s178 = sphi 0, %s176
      %s179 = sphi 0, %s178
      %s193 = sphi 0, %s179
      %s197 = sphi 0, %s197
      %s199 = sphi 0, %s197
      %s200 = sphi 0, %s199
      %s214 = sphi 0, %s200
      %s218 = sphi 0, %s218
      %s220 = sphi 0, %s218
      %s221 = sphi 0, %s220
      %s235 = sphi 0, %s221
      %s239 = sphi 0, %s239
      %s241 = sphi 0, %s239
      %s242 = sphi 0, %s241
      %s256 = sphi 0, %s242
      %s260 = sphi 0, %s260
      %s262 = sphi 0, %s260
      %s263 = sphi 0, %s262
      %s277 = sphi 0, %s263
      %s281 = sphi 0, %s281
      %s283 = sphi 0, %s281
      %s284 = sphi 0, %s283
      %s298 = sphi 0, %s284
      %s302 = sphi 0, %s302
      %s304 = sphi 0, %s302
      %s305 = sphi 0, %s304
      %s319 = sphi 0, %s305
      %s325 = sphi 0, %s327
      %s328 = sphi 0, %s325
      %s329 = sphi 0, %s328
      %s345 = sphi 0, %s329
    $region4: #{tpu_custom_call.1} parent=1 // loop_header_branch
      %25 = sbr.rel (%p23) target = $region8
    $region5: #{tpu_custom_call.1} parent=1 // loop_body
      %s27 = ssub.s32 %s22, 1
      %s28 = ssub.s32 %s22, 2
      %s29 = sadd.s32 %s22, 1
      %s30 = ssub.s32 %s22, %s29
      %p31 = scmp.eq.s32.totalorder %s30, 0
      %s33 = sadd.s32 %s32, 1
      %s34 = scalar_select %p31, %s32, %s33
      %p37 = pneg %p31
      %p38 = scmp.eq.s32.totalorder %s22, 1
      %p39 = por %p37, %p38
      %p40 = scmp.ne.s32.totalorder %s32, %s35
      %p41 = scmp.eq.s32.totalorder %s22, 0
      %p42 = por %p40, %p41
      %p43 = scmp.ne.s32.totalorder %s32, %s35
      %p44 = scmp.eq.s32.totalorder %s27, 1
      %p45 = por %p43, %p44
      %p46 = scmp.ne.s32.totalorder %s35, %s36
      %p47 = scmp.eq.s32.totalorder %s27, 0
      %p48 = por %p46, %p47
      %p49 = scmp.ne.s32.totalorder %s35, %s36
      %p50 = scmp.eq.s32.totalorder %s28, 1
      %p51 = por %p49, %p50
      %p53 = scmp.ne.s32.totalorder %s36, %s52
      %p54 = scmp.eq.s32.totalorder %s28, 0
      %p55 = por %p53, %p54
      %s56 = ssub.s32 %s22, %s29
      %p57 = scmp.eq.s32.totalorder %s56, 0
      %s59 = sadd.s32 %s58, 1
      %s60 = scalar_select %p57, %s58, %s59
      %p63 = pneg %p57
      %p64 = scmp.eq.s32.totalorder %s22, 1
      %p65 = por %p63, %p64
      %p66 = scmp.ne.s32.totalorder %s58, %s61
      %p67 = scmp.eq.s32.totalorder %s22, 0
      %p68 = por %p66, %p67
      %p69 = scmp.ne.s32.totalorder %s58, %s61
      %p70 = scmp.eq.s32.totalorder %s27, 1
      %p71 = por %p69, %p70
      %p72 = scmp.ne.s32.totalorder %s61, %s62
      %p73 = scmp.eq.s32.totalorder %s27, 0
      %p74 = por %p72, %p73
      %p75 = scmp.ne.s32.totalorder %s61, %s62
      %p76 = scmp.eq.s32.totalorder %s28, 1
      %p77 = por %p75, %p76
      %p79 = scmp.ne.s32.totalorder %s62, %s78
      %p80 = scmp.eq.s32.totalorder %s28, 0
      %p81 = por %p79, %p80
      %s82 = ssub.s32 %s22, %s29
      %p83 = scmp.eq.s32.totalorder %s82, 0
      %s85 = sadd.s32 %s84, 1
      %s86 = scalar_select %p83, %s84, %s85
      %p89 = pneg %p83
      %p90 = scmp.eq.s32.totalorder %s22, 1
      %p91 = por %p89, %p90
      %p92 = scmp.ne.s32.totalorder %s84, %s87
      %p93 = scmp.eq.s32.totalorder %s22, 0
      %p94 = por %p92, %p93
      %p95 = scmp.ne.s32.totalorder %s84, %s87
      %p96 = scmp.eq.s32.totalorder %s27, 1
      %p97 = por %p95, %p96
      %p98 = scmp.ne.s32.totalorder %s87, %s88
      %p99 = scmp.eq.s32.totalorder %s27, 0
      %p100 = por %p98, %p99
      %p101 = scmp.ne.s32.totalorder %s87, %s88
      %p102 = scmp.eq.s32.totalorder %s28, 1
      %p103 = por %p101, %p102
      %p105 = scmp.ne.s32.totalorder %s88, %s104
      %p106 = scmp.eq.s32.totalorder %s28, 0
      %p107 = por %p105, %p106
      %s108 = ssub.s32 %s22, %s29
      %p109 = scmp.eq.s32.totalorder %s108, 0
      %s111 = sadd.s32 %s110, 1
      %s112 = scalar_select %p109, %s110, %s111
      %p115 = pneg %p109
      %p116 = scmp.eq.s32.totalorder %s22, 1
      %p117 = por %p115, %p116
      %p118 = scmp.ne.s32.totalorder %s110, %s113
      %p119 = scmp.eq.s32.totalorder %s22, 0
      %p120 = por %p118, %p119
      %p121 = scmp.ne.s32.totalorder %s110, %s113
      %p122 = scmp.eq.s32.totalorder %s27, 1
      %p123 = por %p121, %p122
      %p124 = scmp.ne.s32.totalorder %s113, %s114
      %p125 = scmp.eq.s32.totalorder %s27, 0
      %p126 = por %p124, %p125
      %p127 = scmp.ne.s32.totalorder %s113, %s114
      %p128 = scmp.eq.s32.totalorder %s28, 1
      %p129 = por %p127, %p128
      %p131 = scmp.ne.s32.totalorder %s114, %s130
      %p132 = scmp.eq.s32.totalorder %s28, 0
      %p133 = por %p131, %p132
      %s135 = sadd.s32 %s134, 1
      %p138 = scmp.eq.s32.totalorder %s22, 1
      %p139 = scmp.ne.s32.totalorder %s134, %s136
      %p140 = scmp.eq.s32.totalorder %s22, 0
      %p141 = por %p139, %p140
      %p142 = scmp.ne.s32.totalorder %s134, %s136
      %p143 = scmp.eq.s32.totalorder %s27, 1
      %p144 = por %p142, %p143
      %p145 = scmp.ne.s32.totalorder %s136, %s137
      %p146 = scmp.eq.s32.totalorder %s27, 0
      %p147 = por %p145, %p146
      %p148 = scmp.ne.s32.totalorder %s136, %s137
      %p149 = scmp.eq.s32.totalorder %s28, 1
      %p150 = por %p148, %p149
      %p152 = scmp.ne.s32.totalorder %s137, %s151
      %p153 = scmp.eq.s32.totalorder %s28, 0
      %p154 = por %p152, %p153
      %s156 = sadd.s32 %s155, 1
      %p159 = scmp.eq.s32.totalorder %s22, 1
      %p160 = scmp.ne.s32.totalorder %s155, %s157
      %p161 = scmp.eq.s32.totalorder %s22, 0
      %p162 = por %p160, %p161
      %p163 = scmp.ne.s32.totalorder %s155, %s157
      %p164 = scmp.eq.s32.totalorder %s27, 1
      %p165 = por %p163, %p164
      %p166 = scmp.ne.s32.totalorder %s157, %s158
      %p167 = scmp.eq.s32.totalorder %s27, 0
      %p168 = por %p166, %p167
      %p169 = scmp.ne.s32.totalorder %s157, %s158
      %p170 = scmp.eq.s32.totalorder %s28, 1
      %p171 = por %p169, %p170
      %p173 = scmp.ne.s32.totalorder %s158, %s172
      %p174 = scmp.eq.s32.totalorder %s28, 0
      %p175 = por %p173, %p174
      %s177 = sadd.s32 %s176, 1
      %p180 = scmp.eq.s32.totalorder %s22, 1
      %p181 = scmp.ne.s32.totalorder %s176, %s178
      %p182 = scmp.eq.s32.totalorder %s22, 0
      %p183 = por %p181, %p182
      %p184 = scmp.ne.s32.totalorder %s176, %s178
      %p185 = scmp.eq.s32.totalorder %s27, 1
      %p186 = por %p184, %p185
      %p187 = scmp.ne.s32.totalorder %s178, %s179
      %p188 = scmp.eq.s32.totalorder %s27, 0
      %p189 = por %p187, %p188
      %p190 = scmp.ne.s32.totalorder %s178, %s179
      %p191 = scmp.eq.s32.totalorder %s28, 1
      %p192 = por %p190, %p191
      %p194 = scmp.ne.s32.totalorder %s179, %s193
      %p195 = scmp.eq.s32.totalorder %s28, 0
      %p196 = por %p194, %p195
      %s198 = sadd.s32 %s197, 1
      %p201 = scmp.eq.s32.totalorder %s22, 1
      %p202 = scmp.ne.s32.totalorder %s197, %s199
      %p203 = scmp.eq.s32.totalorder %s22, 0
      %p204 = por %p202, %p203
      %p205 = scmp.ne.s32.totalorder %s197, %s199
      %p206 = scmp.eq.s32.totalorder %s27, 1
      %p207 = por %p205, %p206
      %p208 = scmp.ne.s32.totalorder %s199, %s200
      %p209 = scmp.eq.s32.totalorder %s27, 0
      %p210 = por %p208, %p209
      %p211 = scmp.ne.s32.totalorder %s199, %s200
      %p212 = scmp.eq.s32.totalorder %s28, 1
      %p213 = por %p211, %p212
      %p215 = scmp.ne.s32.totalorder %s200, %s214
      %p216 = scmp.eq.s32.totalorder %s28, 0
      %p217 = por %p215, %p216
      %s219 = sadd.s32 %s218, 1
      %p222 = scmp.eq.s32.totalorder %s22, 1
      %p223 = scmp.ne.s32.totalorder %s218, %s220
      %p224 = scmp.eq.s32.totalorder %s22, 0
      %p225 = por %p223, %p224
      %p226 = scmp.ne.s32.totalorder %s218, %s220
      %p227 = scmp.eq.s32.totalorder %s27, 1
      %p228 = por %p226, %p227
      %p229 = scmp.ne.s32.totalorder %s220, %s221
      %p230 = scmp.eq.s32.totalorder %s27, 0
      %p231 = por %p229, %p230
      %p232 = scmp.ne.s32.totalorder %s220, %s221
      %p233 = scmp.eq.s32.totalorder %s28, 1
      %p234 = por %p232, %p233
      %p236 = scmp.ne.s32.totalorder %s221, %s235
      %p237 = scmp.eq.s32.totalorder %s28, 0
      %p238 = por %p236, %p237
      %s240 = sadd.s32 %s239, 1
      %p243 = scmp.eq.s32.totalorder %s22, 1
      %p244 = scmp.ne.s32.totalorder %s239, %s241
      %p245 = scmp.eq.s32.totalorder %s22, 0
      %p246 = por %p244, %p245
      %p247 = scmp.ne.s32.totalorder %s239, %s241
      %p248 = scmp.eq.s32.totalorder %s27, 1
      %p249 = por %p247, %p248
      %p250 = scmp.ne.s32.totalorder %s241, %s242
      %p251 = scmp.eq.s32.totalorder %s27, 0
      %p252 = por %p250, %p251
      %p253 = scmp.ne.s32.totalorder %s241, %s242
      %p254 = scmp.eq.s32.totalorder %s28, 1
      %p255 = por %p253, %p254
      %p257 = scmp.ne.s32.totalorder %s242, %s256
      %p258 = scmp.eq.s32.totalorder %s28, 0
      %p259 = por %p257, %p258
      %s261 = sadd.s32 %s260, 1
      %p264 = scmp.eq.s32.totalorder %s22, 1
      %p265 = scmp.ne.s32.totalorder %s260, %s262
      %p266 = scmp.eq.s32.totalorder %s22, 0
      %p267 = por %p265, %p266
      %p268 = scmp.ne.s32.totalorder %s260, %s262
      %p269 = scmp.eq.s32.totalorder %s27, 1
      %p270 = por %p268, %p269
      %p271 = scmp.ne.s32.totalorder %s262, %s263
      %p272 = scmp.eq.s32.totalorder %s27, 0
      %p273 = por %p271, %p272
      %p274 = scmp.ne.s32.totalorder %s262, %s263
      %p275 = scmp.eq.s32.totalorder %s28, 1
      %p276 = por %p274, %p275
      %p278 = scmp.ne.s32.totalorder %s263, %s277
      %p279 = scmp.eq.s32.totalorder %s28, 0
      %p280 = por %p278, %p279
      %s282 = sadd.s32 %s281, 1
      %p285 = scmp.eq.s32.totalorder %s22, 1
      %p286 = scmp.ne.s32.totalorder %s281, %s283
      %p287 = scmp.eq.s32.totalorder %s22, 0
      %p288 = por %p286, %p287
      %p289 = scmp.ne.s32.totalorder %s281, %s283
      %p290 = scmp.eq.s32.totalorder %s27, 1
      %p291 = por %p289, %p290
      %p292 = scmp.ne.s32.totalorder %s283, %s284
      %p293 = scmp.eq.s32.totalorder %s27, 0
      %p294 = por %p292, %p293
      %p295 = scmp.ne.s32.totalorder %s283, %s284
      %p296 = scmp.eq.s32.totalorder %s28, 1
      %p297 = por %p295, %p296
      %p299 = scmp.ne.s32.totalorder %s284, %s298
      %p300 = scmp.eq.s32.totalorder %s28, 0
      %p301 = por %p299, %p300
      %s303 = sadd.s32 %s302, 1
      %p306 = scmp.eq.s32.totalorder %s22, 1
      %p307 = scmp.ne.s32.totalorder %s302, %s304
      %p308 = scmp.eq.s32.totalorder %s22, 0
      %p309 = por %p307, %p308
      %p310 = scmp.ne.s32.totalorder %s302, %s304
      %p311 = scmp.eq.s32.totalorder %s27, 1
      %p312 = por %p310, %p311
      %p313 = scmp.ne.s32.totalorder %s304, %s305
      %p314 = scmp.eq.s32.totalorder %s27, 0
      %p315 = por %p313, %p314
      %p316 = scmp.ne.s32.totalorder %s304, %s305
      %p317 = scmp.eq.s32.totalorder %s28, 1
      %p318 = por %p316, %p317
      %p320 = scmp.ne.s32.totalorder %s305, %s319
      %p321 = scmp.eq.s32.totalorder %s28, 0
      %p322 = por %p320, %p321
      %s323 = ssub.s32 %s22, %s29
      %p324 = scmp.eq.s32.totalorder %s323, 0
      %s326 = sadd.s32 %s325, 1
      %s327 = scalar_select %p324, %s325, %s326
      %p330 = pneg %p324
      %p331 = scmp.eq.s32.totalorder %s22, 1
      %p332 = por %p330, %p331
      %p333 = scmp.ne.s32.totalorder %s325, %s328
      %p334 = scmp.eq.s32.totalorder %s22, 0
      %p335 = por %p333, %p334
      %p336 = scmp.ne.s32.totalorder %s325, %s328
      %p337 = scmp.eq.s32.totalorder %s27, 1
      %p338 = por %p336, %p337
      %p339 = scmp.ne.s32.totalorder %s328, %s329
      %p340 = scmp.eq.s32.totalorder %s27, 0
      %p341 = por %p339, %p340
      %p342 = scmp.ne.s32.totalorder %s328, %s329
      %p343 = scmp.eq.s32.totalorder %s28, 1
      %p344 = por %p342, %p343
      %p346 = scmp.ne.s32.totalorder %s329, %s345
      %p347 = scmp.eq.s32.totalorder %s28, 0
      %p348 = por %p346, %p347
      %p349 = scmp.le.s32.totalorder 1, %s22
      %p350 = scmp.lt.s32.totalorder %s22, 3
      %p351 = pnand %p349, %p350
      %p352 = pneg %p351
      // Predicated region
      $region9: #{tpu_custom_call.1} parent=5 // pred_check
        _
      $region10: #{tpu_custom_call.1} parent=5 // pred_check_branch
        %354 = sbr.rel (%p351) target = $region12
      $region11: #{tpu_custom_call.1} parent=5 // pred_region
        %s355 = ssub.s32 %s22, 1
        // Predicated region
        $region13: #{tpu_custom_call.1} parent=11 // pred_check
          %p356 = pneg %p147
        $region14: #{tpu_custom_call.1} parent=11 // pred_check_branch
          %358 = sbr.rel (%p356) target = $region16
        $region15: #{tpu_custom_call.1} parent=11 // pred_region
          _
        $region16: #{tpu_custom_call.1} parent=11 // pred_fallthru
          _
        // Predicated region
        $region17: #{tpu_custom_call.1} parent=11 // pred_check
          %p359 = pneg %p168
        $region18: #{tpu_custom_call.1} parent=11 // pred_check_branch
          %361 = sbr.rel (%p359) target = $region20
        $region19: #{tpu_custom_call.1} parent=11 // pred_region
          _
        $region20: #{tpu_custom_call.1} parent=11 // pred_fallthru
          _
        // Predicated region
        $region21: #{tpu_custom_call.1} parent=11 // pred_check
          %p362 = pneg %p189
        $region22: #{tpu_custom_call.1} parent=11 // pred_check_branch
          %364 = sbr.rel (%p362) target = $region24
        $region23: #{tpu_custom_call.1} parent=11 // pred_region
          _
        $region24: #{tpu_custom_call.1} parent=11 // pred_fallthru
          _
        // Predicated region
        $region25: #{tpu_custom_call.1} parent=11 // pred_check
          %p365 = pneg %p210
        $region26: #{tpu_custom_call.1} parent=11 // pred_check_branch
          %367 = sbr.rel (%p365) target = $region28
        $region27: #{tpu_custom_call.1} parent=11 // pred_region
          _
        $region28: #{tpu_custom_call.1} parent=11 // pred_fallthru
          _
        // Predicated region
        $region29: #{tpu_custom_call.1} parent=11 // pred_check
          %p368 = pneg %p231
        $region30: #{tpu_custom_call.1} parent=11 // pred_check_branch
          %370 = sbr.rel (%p368) target = $region32
        $region31: #{tpu_custom_call.1} parent=11 // pred_region
          _
        $region32: #{tpu_custom_call.1} parent=11 // pred_fallthru
          _
        // Predicated region
        $region33: #{tpu_custom_call.1} parent=11 // pred_check
          %p371 = pneg %p252
        $region34: #{tpu_custom_call.1} parent=11 // pred_check_branch
          %373 = sbr.rel (%p371) target = $region36
        $region35: #{tpu_custom_call.1} parent=11 // pred_region
          _
        $region36: #{tpu_custom_call.1} parent=11 // pred_fallthru
          _
        // Predicated region
        $region37: #{tpu_custom_call.1} parent=11 // pred_check
          %p374 = pneg %p273
        $region38: #{tpu_custom_call.1} parent=11 // pred_check_branch
          %376 = sbr.rel (%p374) target = $region40
        $region39: #{tpu_custom_call.1} parent=11 // pred_region
          _
        $region40: #{tpu_custom_call.1} parent=11 // pred_fallthru
          _
        // Predicated region
        $region41: #{tpu_custom_call.1} parent=11 // pred_check
          %p377 = pneg %p294
        $region42: #{tpu_custom_call.1} parent=11 // pred_check_branch
          %379 = sbr.rel (%p377) target = $region44
        $region43: #{tpu_custom_call.1} parent=11 // pred_region
          _
        $region44: #{tpu_custom_call.1} parent=11 // pred_fallthru
          _
        // Predicated region
        $region45: #{tpu_custom_call.1} parent=11 // pred_check
          %p380 = pneg %p315
        $region46: #{tpu_custom_call.1} parent=11 // pred_check_branch
          %382 = sbr.rel (%p380) target = $region48
        $region47: #{tpu_custom_call.1} parent=11 // pred_region
          _
        $region48: #{tpu_custom_call.1} parent=11 // pred_fallthru
          _
      $region12: #{tpu_custom_call.1} parent=5 // pred_fallthru
        _
      %p383 = scmp.lt.s32.totalorder %s22, 2
      // Predicated region
      $region49: #{tpu_custom_call.1} parent=5 // pred_check
        %p384 = pneg %p383
      $region50: #{tpu_custom_call.1} parent=5 // pred_check_branch
        %386 = sbr.rel (%p384) target = $region52
      $region51: #{tpu_custom_call.1} parent=5 // pred_region
        // Predicated region
        $region53: #{tpu_custom_call.1} parent=51 // pred_check
          %p387 = pneg %p42
        $region54: #{tpu_custom_call.1} parent=51 // pred_check_branch
          %389 = sbr.rel (%p387) target = $region56
        $region55: #{tpu_custom_call.1} parent=51 // pred_region
          %p390 = scmp.lt.s32.totalorder %s22, 1
          %s391 = scalar_select %p390, %s22, 1
          %s392 = smul.addr %s391, 8
          %s393 = scalar_lea.vmem %s0, %s392
        $region56: #{tpu_custom_call.1} parent=51 // pred_fallthru
          _
        // Predicated region
        $region57: #{tpu_custom_call.1} parent=51 // pred_check
          %p394 = pneg %p68
        $region58: #{tpu_custom_call.1} parent=51 // pred_check_branch
          %396 = sbr.rel (%p394) target = $region60
        $region59: #{tpu_custom_call.1} parent=51 // pred_region
          %p397 = scmp.lt.s32.totalorder %s22, 1
          %s398 = scalar_select %p397, %s22, 1
          %s399 = scalar_lea.vmem %s1, %s398
        $region60: #{tpu_custom_call.1} parent=51 // pred_fallthru
          _
        // Predicated region
        $region61: #{tpu_custom_call.1} parent=51 // pred_check
          %p400 = pneg %p94
        $region62: #{tpu_custom_call.1} parent=51 // pred_check_branch
          %402 = sbr.rel (%p400) target = $region64
        $region63: #{tpu_custom_call.1} parent=51 // pred_region
          %p403 = scmp.lt.s32.totalorder %s22, 1
          %s404 = scalar_select %p403, %s22, 1
          %s405 = smul.addr %s404, 8
          %s406 = scalar_lea.vmem %s2, %s405
        $region64: #{tpu_custom_call.1} parent=51 // pred_fallthru
          _
        // Predicated region
        $region65: #{tpu_custom_call.1} parent=51 // pred_check
          %p407 = pneg %p120
        $region66: #{tpu_custom_call.1} parent=51 // pred_check_branch
          %409 = sbr.rel (%p407) target = $region68
        $region67: #{tpu_custom_call.1} parent=51 // pred_region
          %p410 = scmp.lt.s32.totalorder %s22, 1
          %s411 = scalar_select %p410, %s22, 1
          %s412 = scalar_lea.vmem %s3, %s411
        $region68: #{tpu_custom_call.1} parent=51 // pred_fallthru
          _
      $region52: #{tpu_custom_call.1} parent=5 // pred_fallthru
        _
      %p413 = scmp.le.s32.totalorder 1, %s22
      %p414 = scmp.lt.s32.totalorder %s22, 3
      %p415 = pnand %p413, %p414
      %p416 = pneg %p415
      // Predicated region
      $region69: #{tpu_custom_call.1} parent=5 // pred_check
        _
      $region70: #{tpu_custom_call.1} parent=5 // pred_check_branch
        %418 = sbr.rel (%p415) target = $region72
      $region71: #{tpu_custom_call.1} parent=5 // pred_region
        %s419 = ssub.s32 %s22, 1
        %p420 = scmp.lt.s32.totalorder %s27, 1
        %s421 = scalar_select %p420, %s27, 1
        %s422 = smul.addr %s421, 8
        %s423 = scalar_lea.vmem %s0, %s422
        %p424 = pneg %p48
        %p425 = pneg %p45
        %p426 = scmp.lt.s32.totalorder %s27, 1
        %s427 = scalar_select %p426, %s27, 1
        %s428 = scalar_lea.vmem %s1, %s427
        %p429 = pneg %p74
        %p430 = pneg %p71
        %p431 = scmp.lt.s32.totalorder %s27, 1
        %s432 = scalar_select %p431, %s27, 1
        %s433 = smul.addr %s432, 8
        %s434 = scalar_lea.vmem %s2, %s433
        %p435 = pneg %p100
        %p436 = pneg %p97
        %p437 = scmp.lt.s32.totalorder %s27, 1
        %s438 = scalar_select %p437, %s27, 1
        %s439 = scalar_lea.vmem %s3, %s438
        %p440 = pneg %p126
        %p441 = pneg %p123
        %p442 = pneg %p147
        %p443 = pneg %p144
        %p444 = pneg %p168
        %p445 = pneg %p165
        %p446 = pneg %p189
        %p447 = pneg %p186
        %p448 = pneg %p210
        %p449 = pneg %p207
        %p450 = pneg %p231
        %p451 = pneg %p228
        %p452 = pneg %p252
        %p453 = pneg %p249
        %p454 = pneg %p273
        %p455 = pneg %p270
        %p456 = pneg %p294
        %p457 = pneg %p291
        %p458 = pneg %p315
        %p459 = pneg %p312
        %p460 = pneg %p341
        %p461 = pneg %p338
        %s462 = sand.u32 %s328, 1
        %s463 = scalar_lea.sflag [#allocation3], %s462
        %s464 = sand.u32 %s328, 1
        %s465 = smul.addr %s464, 8
        %s466 = scalar_lea.vmem [#allocation2], %s465
        %p467 = scmp.lt.s32.totalorder %s27, 1
        %s468 = scalar_select %p467, %s27, 1
        %s469 = smul.addr %s468, 8
        %s470 = scalar_lea.vmem %s0, %s469
        %p471 = scmp.lt.s32.totalorder %s27, 1
        %s472 = scalar_select %p471, %s27, 1
        %s473 = scalar_lea.vmem %s1, %s472
        %p474 = scmp.lt.s32.totalorder %s27, 1
        %s475 = scalar_select %p474, %s27, 1
        %s476 = smul.addr %s475, 8
        %s477 = scalar_lea.vmem %s2, %s476
        %p478 = scmp.lt.s32.totalorder %s27, 1
        %s479 = scalar_select %p478, %s27, 1
        %s480 = scalar_lea.vmem %s3, %s479
        %v482 = vld [vmem:[%s11] sm:$0xff]
        %v483 = vld [vmem:[%s473] sm:$0x1]
        %v484 = vld [vmem:[%s470] sm:$0xff]
        %vm485 = vcmask 261120
        %v486 = vsel %vm485, %v484, 0.0
        %487 = vadd.xlane.f32.xlu0 %v486
        %v488 = vpop.xlane.xlu0 %487
        %v489 = vrcp.pop 32.0
        %v490 = vmul.f32 %v488, %v489
        %v491 = vsub.f32 %v484, %v490
        %v492 = vmul.f32 %v491, %v491
        %v493 = vsel %vm485, %v492, 0.0
        %494 = vadd.xlane.f32.xlu0 %v493
        %v495 = vpop.xlane.xlu0 %494
        %v496 = vmul.f32 %v495, %v489
        %v497 = vadd.f32 %v496, 1e-12
        %v498 = vrsqrt.pop %v497
        %v499 = vmul.f32 %v491, %v498
        %v500 = vlaneseq
        %v501 = vshrl.u32 %v500, 7
        %v502 = vsub.s32 0, %v501
        %v503 = vrot.slane %v482, %v502
        %v504 = vmul.f32 %v499, %v503
        %v505 = vlaneseq
        %v506 = vshrl.u32 %v505, 7
        %v507 = vsub.s32 1, %v506
        %v508 = vrot.slane %v482, %v507
        %v509 = vadd.f32 %v504, %v508
        %v510 = vld [vmem:[%s9] sm:$0x7f]
        %v511 = vpack.c.bf16 %v509, %v509
        %v512 = vld [vmem:[%s4] sm:$0xf]
        %v513 = vld [vmem:[%s4 + $0x4] sm:$0xf]
        %v514 = vld [vmem:[%s4 + $0x8] sm:$0xf]
        %v515 = vld [vmem:[%s4 + $0xc] sm:$0xf]
        %v516 = vld [vmem:[%s5] sm:$0x1]
        %v518 = vlaneseq
        %v519 = vshrl.u32 %v518, 7
        %v520 = vsub.s32 0, %v519
        %v521 = vrot.slane %v516, %v520
        %v527 = vunpack.c.l.b16 %v512
        %v528 = vunpack.c.l.b16 %v513
        %v529 = vunpack.c.l.b16 %v514
        %v530 = vunpack.c.l.b16 %v515
        %v531 = vpack.c.b16 %v528, %v527
        %v532 = vpack.c.b16 %v530, %v529
        %v536 = vsel %vm485, %v511, 0
        %538 = vmatprep.subr.bf16.mxu0 0
        %539 = vmatpush1.bf16.msra.mxu0 0
        %540 = vmatprep.subr.bf16.mxu0 0
        %541 = vmatpush1.bf16.msra.mxu0 0
        %542 = vmatprep.subr.bf16.mxu0 0
        %543 = vmatpush1.bf16.msra.mxu0 0
        %544 = vmatprep.subr.bf16.mxu0 0
        %545 = vmatpush1.bf16.msra.mxu0 0
        %546 = vmatprep.subr.bf16.mxu0 0
        %547 = vmatpush1.bf16.msra.mxu0 0
        %548 = vmatprep.subr.bf16.mxu0 0
        %549 = vmatpush1.bf16.msra.mxu0 0
        %550 = vmatprep.subr.bf16.mxu0 0
        %551 = vmatpush1.bf16.msra.mxu0 %v532
        %552 = vmatprep.subr.bf16.mxu0 0
        %553 = vmatpush1.bf16.msra.mxu0 %v531
        %554 = vmatprep.subr.bf16.mxu0 0
        %555 = vmatpush2.bf16.msra.mxu0 0
        %556 = vmatprep.subr.bf16.mxu0 0
        %557 = vmatpush2.bf16.msra.mxu0 0
        %558 = vmatprep.subr.bf16.mxu0 0
        %559 = vmatpush2.bf16.msra.mxu0 0
        %560 = vmatprep.subr.bf16.mxu0 0
        %561 = vmatpush2.bf16.msra.mxu0 0
        %562 = vmatprep.subr.bf16.mxu0 0
        %563 = vmatpush2.bf16.msra.mxu0 0
        %564 = vmatprep.subr.bf16.mxu0 0
        %565 = vmatpush2.bf16.msra.mxu0 0
        %566 = vmatprep.subr.bf16.mxu0 0
        %567 = vmatpush2.bf16.msra.mxu0 0
        %568 = vmatprep.subr.bf16.mxu0 0
        %569 = vmatpush2.bf16.msra.mxu0 0
        %570 = vmatprep.mubr.bf16.mxu0 0
        %571 = vmatmul.mubr.bf16.gmra.mxu0 %v536
        %v572 = vpop.f32.mrf.mxu0
        %v573 = vadd.f32 %v521, %v572
        %v574 = vpop.f32.mrf.mxu0
        %v575 = vpop.f32.mrf.mxu0
        %v576 = vpop.f32.mrf.mxu0
        %577 = vdwg.mxu0
        %s578 = scalar_lea.vmem %s4, 64
        %v579 = vld [vmem:[%s578] sm:$0xf]
        %v580 = vld [vmem:[%s578 + $0x4] sm:$0xf]
        %v581 = vld [vmem:[%s578 + $0x8] sm:$0xf]
        %v582 = vld [vmem:[%s578 + $0xc] sm:$0xf]
        %s583 = scalar_lea.vmem %s5, 4
        %v584 = vld [vmem:[%s583] sm:$0x1]
        %v586 = vlaneseq
        %v587 = vshrl.u32 %v586, 7
        %v588 = vsub.s32 0, %v587
        %v589 = vrot.slane %v584, %v588
        %v595 = vunpack.c.l.b16 %v579
        %v596 = vunpack.c.l.b16 %v580
        %v597 = vunpack.c.l.b16 %v581
        %v598 = vunpack.c.l.b16 %v582
        %v599 = vpack.c.b16 %v596, %v595
        %v600 = vpack.c.b16 %v598, %v597
        %603 = vmatprep.subr.bf16.mxu0 0
        %604 = vmatpush1.bf16.msra.mxu0 0
        %605 = vmatprep.subr.bf16.mxu0 0
        %606 = vmatpush1.bf16.msra.mxu0 0
        %607 = vmatprep.subr.bf16.mxu0 0
        %608 = vmatpush1.bf16.msra.mxu0 0
        %609 = vmatprep.subr.bf16.mxu0 0
        %610 = vmatpush1.bf16.msra.mxu0 0
        %611 = vmatprep.subr.bf16.mxu0 0
        %612 = vmatpush1.bf16.msra.mxu0 0
        %613 = vmatprep.subr.bf16.mxu0 0
        %614 = vmatpush1.bf16.msra.mxu0 0
        %615 = vmatprep.subr.bf16.mxu0 0
        %616 = vmatpush1.bf16.msra.mxu0 %v600
        %617 = vmatprep.subr.bf16.mxu0 0
        %618 = vmatpush1.bf16.msra.mxu0 %v599
        %619 = vmatprep.subr.bf16.mxu0 0
        %620 = vmatpush2.bf16.msra.mxu0 0
        %621 = vmatprep.subr.bf16.mxu0 0
        %622 = vmatpush2.bf16.msra.mxu0 0
        %623 = vmatprep.subr.bf16.mxu0 0
        %624 = vmatpush2.bf16.msra.mxu0 0
        %625 = vmatprep.subr.bf16.mxu0 0
        %626 = vmatpush2.bf16.msra.mxu0 0
        %627 = vmatprep.subr.bf16.mxu0 0
        %628 = vmatpush2.bf16.msra.mxu0 0
        %629 = vmatprep.subr.bf16.mxu0 0
        %630 = vmatpush2.bf16.msra.mxu0 0
        %631 = vmatprep.subr.bf16.mxu0 0
        %632 = vmatpush2.bf16.msra.mxu0 0
        %633 = vmatprep.subr.bf16.mxu0 0
        %634 = vmatpush2.bf16.msra.mxu0 0
        %635 = vmatprep.mubr.bf16.mxu0 0
        %636 = vmatmul.mubr.bf16.gmra.mxu0 %v536
        %v637 = vpop.f32.mrf.mxu0
        %v638 = vadd.f32 %v589, %v637
        %v639 = vpop.f32.mrf.mxu0
        %v640 = vpop.f32.mrf.mxu0
        %v641 = vpop.f32.mrf.mxu0
        %642 = vdwg.mxu0
        %s643 = scalar_lea.vmem %s4, 128
        %v644 = vld [vmem:[%s643] sm:$0xf]
        %v645 = vld [vmem:[%s643 + $0x4] sm:$0xf]
        %v646 = vld [vmem:[%s643 + $0x8] sm:$0xf]
        %v647 = vld [vmem:[%s643 + $0xc] sm:$0xf]
        %s648 = scalar_lea.vmem %s5, 8
        %v649 = vld [vmem:[%s648] sm:$0x1]
        %v651 = vlaneseq
        %v652 = vshrl.u32 %v651, 7
        %v653 = vsub.s32 0, %v652
        %v654 = vrot.slane %v649, %v653
        %v660 = vunpack.c.l.b16 %v644
        %v661 = vunpack.c.l.b16 %v645
        %v662 = vunpack.c.l.b16 %v646
        %v663 = vunpack.c.l.b16 %v647
        %v664 = vpack.c.b16 %v661, %v660
        %v665 = vpack.c.b16 %v663, %v662
        %668 = vmatprep.subr.bf16.mxu0 0
        %669 = vmatpush1.bf16.msra.mxu0 0
        %670 = vmatprep.subr.bf16.mxu0 0
        %671 = vmatpush1.bf16.msra.mxu0 0
        %672 = vmatprep.subr.bf16.mxu0 0
        %673 = vmatpush1.bf16.msra.mxu0 0
        %674 = vmatprep.subr.bf16.mxu0 0
        %675 = vmatpush1.bf16.msra.mxu0 0
        %676 = vmatprep.subr.bf16.mxu0 0
        %677 = vmatpush1.bf16.msra.mxu0 0
        %678 = vmatprep.subr.bf16.mxu0 0
        %679 = vmatpush1.bf16.msra.mxu0 0
        %680 = vmatprep.subr.bf16.mxu0 0
        %681 = vmatpush1.bf16.msra.mxu0 %v665
        %682 = vmatprep.subr.bf16.mxu0 0
        %683 = vmatpush1.bf16.msra.mxu0 %v664
        %684 = vmatprep.subr.bf16.mxu0 0
        %685 = vmatpush2.bf16.msra.mxu0 0
        %686 = vmatprep.subr.bf16.mxu0 0
        %687 = vmatpush2.bf16.msra.mxu0 0
        %688 = vmatprep.subr.bf16.mxu0 0
        %689 = vmatpush2.bf16.msra.mxu0 0
        %690 = vmatprep.subr.bf16.mxu0 0
        %691 = vmatpush2.bf16.msra.mxu0 0
        %692 = vmatprep.subr.bf16.mxu0 0
        %693 = vmatpush2.bf16.msra.mxu0 0
        %694 = vmatprep.subr.bf16.mxu0 0
        %695 = vmatpush2.bf16.msra.mxu0 0
        %696 = vmatprep.subr.bf16.mxu0 0
        %697 = vmatpush2.bf16.msra.mxu0 0
        %698 = vmatprep.subr.bf16.mxu0 0
        %699 = vmatpush2.bf16.msra.mxu0 0
        %700 = vmatprep.mubr.bf16.mxu0 0
        %701 = vmatmul.mubr.bf16.gmra.mxu0 %v536
        %v702 = vpop.f32.mrf.mxu0
        %v703 = vadd.f32 %v654, %v702
        %v704 = vpop.f32.mrf.mxu0
        %v705 = vpop.f32.mrf.mxu0
        %v706 = vpop.f32.mrf.mxu0
        %707 = vdwg.mxu0
        %v708 = vmul.f32 %v573, 0.35355338
        %v709 = vpack.c.bf16 %v708, %v708
        %v710 = vpack.c.bf16 %v638, %v638
        %v712 = vlaneseq
        %v713 = vshrl.u32 %v712, 7
        %v714 = vsub.s32 0, %v713
        %v715 = vrot.slane %v483, %v714
        %vm717 = vcmask 64512
        %v719 = vsel %vm717, %v709, 0
        %v722 = vsel %vm717, %v710, 0
        %724 = vmatprep.subr.bf16.mxu0 0
        %725 = vmatpush1.bf16.xpose.msra.mxu0 0
        %726 = vmatprep.subr.bf16.mxu0 0
        %727 = vmatpush1.bf16.xpose.msra.mxu0 0
        %728 = vmatprep.subr.bf16.mxu0 0
        %729 = vmatpush1.bf16.xpose.msra.mxu0 0
        %730 = vmatprep.subr.bf16.mxu0 0
        %731 = vmatpush1.bf16.xpose.msra.mxu0 0
        %732 = vmatprep.subr.bf16.mxu0 0
        %733 = vmatpush1.bf16.xpose.msra.mxu0 0
        %734 = vmatprep.subr.bf16.mxu0 0
        %735 = vmatpush1.bf16.xpose.msra.mxu0 0
        %736 = vmatprep.subr.bf16.mxu0 0
        %737 = vmatpush1.bf16.xpose.msra.mxu0 0
        %738 = vmatprep.subr.bf16.mxu0 0
        %739 = vmatpush1.bf16.xpose.msra.mxu0 %v722
        %740 = vmatprep.subr.bf16.mxu0 0
        %741 = vmatpush2.bf16.xpose.msra.mxu0 0
        %742 = vmatprep.subr.bf16.mxu0 0
        %743 = vmatpush2.bf16.xpose.msra.mxu0 0
        %744 = vmatprep.subr.bf16.mxu0 0
        %745 = vmatpush2.bf16.xpose.msra.mxu0 0
        %746 = vmatprep.subr.bf16.mxu0 0
        %747 = vmatpush2.bf16.xpose.msra.mxu0 0
        %748 = vmatprep.subr.bf16.mxu0 0
        %749 = vmatpush2.bf16.xpose.msra.mxu0 0
        %750 = vmatprep.subr.bf16.mxu0 0
        %751 = vmatpush2.bf16.xpose.msra.mxu0 0
        %752 = vmatprep.subr.bf16.mxu0 0
        %753 = vmatpush2.bf16.xpose.msra.mxu0 0
        %754 = vmatprep.subr.bf16.mxu0 0
        %755 = vmatpush2.bf16.xpose.msra.mxu0 0
        %756 = vmatprep.mubr.bf16.mxu0 0
        %757 = vmatmul.mubr.bf16.gmra.mxu0 %v719
        %v758 = vpop.f32.mrf.mxu0
        %v759 = vadd.f32 %v715, %v758
        %v760 = vpop.f32.mrf.mxu0
        %v761 = vpop.f32.mrf.mxu0
        %v762 = vpop.f32.mrf.mxu0
        %763 = vdwg.mxu0
        %v764 = vsel %vm717, %v759, -inf
        %765 = vmax.xlane.f32.xlu0 %v764
        %v766 = vpop.xlane.xlu0 %765
        %v767 = vsub.f32 %v759, %v766
        %v768 = vmul.f32 %v767, 1.442695
        %v769 = vpow.pop %v768
        %v770 = vsel %vm717, %v769, 0.0
        %771 = vadd.xlane.f32.xlu0 %v770
        %v772 = vpop.xlane.xlu0 %771
        %v773 = vrcp.pop %v772
        %v774 = vmul.f32 %v769, %v773
        %v775 = vpack.c.bf16 %v774, %v774
        %v776 = vpack.c.bf16 %v703, %v703
        %v778 = vsel %vm717, %v775, 0
        %vm780 = vcmask 1043456
        %v782 = vsel %vm780, %v776, 0
        %784 = vmatprep.subr.bf16.mxu0 0
        %785 = vmatpush1.bf16.msra.mxu0 0
        %786 = vmatprep.subr.bf16.mxu0 0
        %787 = vmatpush1.bf16.msra.mxu0 0
        %788 = vmatprep.subr.bf16.mxu0 0
        %789 = vmatpush1.bf16.msra.mxu0 0
        %790 = vmatprep.subr.bf16.mxu0 0
        %791 = vmatpush1.bf16.msra.mxu0 0
        %792 = vmatprep.subr.bf16.mxu0 0
        %793 = vmatpush1.bf16.msra.mxu0 0
        %794 = vmatprep.subr.bf16.mxu0 0
        %795 = vmatpush1.bf16.msra.mxu0 0
        %796 = vmatprep.subr.bf16.mxu0 0
        %797 = vmatpush1.bf16.msra.mxu0 0
        %798 = vmatprep.subr.bf16.mxu0 0
        %799 = vmatpush1.bf16.msra.mxu0 %v782
        %800 = vmatprep.subr.bf16.mxu0 0
        %801 = vmatpush2.bf16.msra.mxu0 0
        %802 = vmatprep.subr.bf16.mxu0 0
        %803 = vmatpush2.bf16.msra.mxu0 0
        %804 = vmatprep.subr.bf16.mxu0 0
        %805 = vmatpush2.bf16.msra.mxu0 0
        %806 = vmatprep.subr.bf16.mxu0 0
        %807 = vmatpush2.bf16.msra.mxu0 0
        %808 = vmatprep.subr.bf16.mxu0 0
        %809 = vmatpush2.bf16.msra.mxu0 0
        %810 = vmatprep.subr.bf16.mxu0 0
        %811 = vmatpush2.bf16.msra.mxu0 0
        %812 = vmatprep.subr.bf16.mxu0 0
        %813 = vmatpush2.bf16.msra.mxu0 0
        %814 = vmatprep.subr.bf16.mxu0 0
        %815 = vmatpush2.bf16.msra.mxu0 0
        %816 = vmatprep.mubr.bf16.mxu0 0
        %817 = vmatmul.mubr.bf16.gmra.mxu0 %v778
        %v818 = vpop.f32.mrf.mxu0
        %v819 = vadd.f32 0.0, %v818
        %v820 = vpop.f32.mrf.mxu0
        %v821 = vpop.f32.mrf.mxu0
        %v822 = vpop.f32.mrf.mxu0
        %823 = vdwg.mxu0
        %v824 = vld [vmem:[%s6] sm:$0xf]
        %v825 = vpack.c.bf16 %v819, %v819
        %s826 = scalar_lea.vmem %s4, 16
        %v827 = vld [vmem:[%s826] sm:$0xf]
        %v828 = vld [vmem:[%s826 + $0x4] sm:$0xf]
        %v829 = vld [vmem:[%s826 + $0x8] sm:$0xf]
        %v830 = vld [vmem:[%s826 + $0xc] sm:$0xf]
        %s831 = scalar_lea.vmem %s5, 1
        %v832 = vld [vmem:[%s831] sm:$0x1]
        %v834 = vlaneseq
        %v835 = vshrl.u32 %v834, 7
        %v836 = vsub.s32 0, %v835
        %v837 = vrot.slane %v832, %v836
        %v843 = vunpack.c.l.b16 %v827
        %v844 = vunpack.c.l.b16 %v828
        %v845 = vunpack.c.l.b16 %v829
        %v846 = vunpack.c.l.b16 %v830
        %v847 = vpack.c.b16 %v844, %v843
        %v848 = vpack.c.b16 %v846, %v845
        %851 = vmatprep.subr.bf16.mxu0 0
        %852 = vmatpush1.bf16.msra.mxu0 0
        %853 = vmatprep.subr.bf16.mxu0 0
        %854 = vmatpush1.bf16.msra.mxu0 0
        %855 = vmatprep.subr.bf16.mxu0 0
        %856 = vmatpush1.bf16.msra.mxu0 0
        %857 = vmatprep.subr.bf16.mxu0 0
        %858 = vmatpush1.bf16.msra.mxu0 0
        %859 = vmatprep.subr.bf16.mxu0 0
        %860 = vmatpush1.bf16.msra.mxu0 0
        %861 = vmatprep.subr.bf16.mxu0 0
        %862 = vmatpush1.bf16.msra.mxu0 0
        %863 = vmatprep.subr.bf16.mxu0 0
        %864 = vmatpush1.bf16.msra.mxu0 %v848
        %865 = vmatprep.subr.bf16.mxu0 0
        %866 = vmatpush1.bf16.msra.mxu0 %v847
        %867 = vmatprep.subr.bf16.mxu0 0
        %868 = vmatpush2.bf16.msra.mxu0 0
        %869 = vmatprep.subr.bf16.mxu0 0
        %870 = vmatpush2.bf16.msra.mxu0 0
        %871 = vmatprep.subr.bf16.mxu0 0
        %872 = vmatpush2.bf16.msra.mxu0 0
        %873 = vmatprep.subr.bf16.mxu0 0
        %874 = vmatpush2.bf16.msra.mxu0 0
        %875 = vmatprep.subr.bf16.mxu0 0
        %876 = vmatpush2.bf16.msra.mxu0 0
        %877 = vmatprep.subr.bf16.mxu0 0
        %878 = vmatpush2.bf16.msra.mxu0 0
        %879 = vmatprep.subr.bf16.mxu0 0
        %880 = vmatpush2.bf16.msra.mxu0 0
        %881 = vmatprep.subr.bf16.mxu0 0
        %882 = vmatpush2.bf16.msra.mxu0 0
        %883 = vmatprep.mubr.bf16.mxu0 0
        %884 = vmatmul.mubr.bf16.gmra.mxu0 %v536
        %v885 = vpop.f32.mrf.mxu0
        %v886 = vadd.f32 %v837, %v885
        %v887 = vpop.f32.mrf.mxu0
        %v888 = vpop.f32.mrf.mxu0
        %v889 = vpop.f32.mrf.mxu0
        %890 = vdwg.mxu0
        %s891 = scalar_lea.vmem %s4, 80
        %v892 = vld [vmem:[%s891] sm:$0xf]
        %v893 = vld [vmem:[%s891 + $0x4] sm:$0xf]
        %v894 = vld [vmem:[%s891 + $0x8] sm:$0xf]
        %v895 = vld [vmem:[%s891 + $0xc] sm:$0xf]
        %s896 = scalar_lea.vmem %s5, 5
        %v897 = vld [vmem:[%s896] sm:$0x1]
        %v899 = vlaneseq
        %v900 = vshrl.u32 %v899, 7
        %v901 = vsub.s32 0, %v900
        %v902 = vrot.slane %v897, %v901
        %v908 = vunpack.c.l.b16 %v892
        %v909 = vunpack.c.l.b16 %v893
        %v910 = vunpack.c.l.b16 %v894
        %v911 = vunpack.c.l.b16 %v895
        %v912 = vpack.c.b16 %v909, %v908
        %v913 = vpack.c.b16 %v911, %v910
        %916 = vmatprep.subr.bf16.mxu0 0
        %917 = vmatpush1.bf16.msra.mxu0 0
        %918 = vmatprep.subr.bf16.mxu0 0
        %919 = vmatpush1.bf16.msra.mxu0 0
        %920 = vmatprep.subr.bf16.mxu0 0
        %921 = vmatpush1.bf16.msra.mxu0 0
        %922 = vmatprep.subr.bf16.mxu0 0
        %923 = vmatpush1.bf16.msra.mxu0 0
        %924 = vmatprep.subr.bf16.mxu0 0
        %925 = vmatpush1.bf16.msra.mxu0 0
        %926 = vmatprep.subr.bf16.mxu0 0
        %927 = vmatpush1.bf16.msra.mxu0 0
        %928 = vmatprep.subr.bf16.mxu0 0
        %929 = vmatpush1.bf16.msra.mxu0 %v913
        %930 = vmatprep.subr.bf16.mxu0 0
        %931 = vmatpush1.bf16.msra.mxu0 %v912
        %932 = vmatprep.subr.bf16.mxu0 0
        %933 = vmatpush2.bf16.msra.mxu0 0
        %934 = vmatprep.subr.bf16.mxu0 0
        %935 = vmatpush2.bf16.msra.mxu0 0
        %936 = vmatprep.subr.bf16.mxu0 0
        %937 = vmatpush2.bf16.msra.mxu0 0
        %938 = vmatprep.subr.bf16.mxu0 0
        %939 = vmatpush2.bf16.msra.mxu0 0
        %940 = vmatprep.subr.bf16.mxu0 0
        %941 = vmatpush2.bf16.msra.mxu0 0
        %942 = vmatprep.subr.bf16.mxu0 0
        %943 = vmatpush2.bf16.msra.mxu0 0
        %944 = vmatprep.subr.bf16.mxu0 0
        %945 = vmatpush2.bf16.msra.mxu0 0
        %946 = vmatprep.subr.bf16.mxu0 0
        %947 = vmatpush2.bf16.msra.mxu0 0
        %948 = vmatprep.mubr.bf16.mxu0 0
        %949 = vmatmul.mubr.bf16.gmra.mxu0 %v536
        %v950 = vpop.f32.mrf.mxu0
        %v951 = vadd.f32 %v902, %v950
        %v952 = vpop.f32.mrf.mxu0
        %v953 = vpop.f32.mrf.mxu0
        %v954 = vpop.f32.mrf.mxu0
        %955 = vdwg.mxu0
        %s956 = scalar_lea.vmem %s4, 144
        %v957 = vld [vmem:[%s956] sm:$0xf]
        %v958 = vld [vmem:[%s956 + $0x4] sm:$0xf]
        %v959 = vld [vmem:[%s956 + $0x8] sm:$0xf]
        %v960 = vld [vmem:[%s956 + $0xc] sm:$0xf]
        %s961 = scalar_lea.vmem %s5, 9
        %v962 = vld [vmem:[%s961] sm:$0x1]
        %v964 = vlaneseq
        %v965 = vshrl.u32 %v964, 7
        %v966 = vsub.s32 0, %v965
        %v967 = vrot.slane %v962, %v966
        %v973 = vunpack.c.l.b16 %v957
        %v974 = vunpack.c.l.b16 %v958
        %v975 = vunpack.c.l.b16 %v959
        %v976 = vunpack.c.l.b16 %v960
        %v977 = vpack.c.b16 %v974, %v973
        %v978 = vpack.c.b16 %v976, %v975
        %981 = vmatprep.subr.bf16.mxu0 0
        %982 = vmatpush1.bf16.msra.mxu0 0
        %983 = vmatprep.subr.bf16.mxu0 0
        %984 = vmatpush1.bf16.msra.mxu0 0
        %985 = vmatprep.subr.bf16.mxu0 0
        %986 = vmatpush1.bf16.msra.mxu0 0
        %987 = vmatprep.subr.bf16.mxu0 0
        %988 = vmatpush1.bf16.msra.mxu0 0
        %989 = vmatprep.subr.bf16.mxu0 0
        %990 = vmatpush1.bf16.msra.mxu0 0
        %991 = vmatprep.subr.bf16.mxu0 0
        %992 = vmatpush1.bf16.msra.mxu0 0
        %993 = vmatprep.subr.bf16.mxu0 0
        %994 = vmatpush1.bf16.msra.mxu0 %v978
        %995 = vmatprep.subr.bf16.mxu0 0
        %996 = vmatpush1.bf16.msra.mxu0 %v977
        %997 = vmatprep.subr.bf16.mxu0 0
        %998 = vmatpush2.bf16.msra.mxu0 0
        %999 = vmatprep.subr.bf16.mxu0 0
        %1000 = vmatpush2.bf16.msra.mxu0 0
        %1001 = vmatprep.subr.bf16.mxu0 0
        %1002 = vmatpush2.bf16.msra.mxu0 0
        %1003 = vmatprep.subr.bf16.mxu0 0
        %1004 = vmatpush2.bf16.msra.mxu0 0
        %1005 = vmatprep.subr.bf16.mxu0 0
        %1006 = vmatpush2.bf16.msra.mxu0 0
        %1007 = vmatprep.subr.bf16.mxu0 0
        %1008 = vmatpush2.bf16.msra.mxu0 0
        %1009 = vmatprep.subr.bf16.mxu0 0
        %1010 = vmatpush2.bf16.msra.mxu0 0
        %1011 = vmatprep.subr.bf16.mxu0 0
        %1012 = vmatpush2.bf16.msra.mxu0 0
        %1013 = vmatprep.mubr.bf16.mxu0 0
        %1014 = vmatmul.mubr.bf16.gmra.mxu0 %v536
        %v1015 = vpop.f32.mrf.mxu0
        %v1016 = vadd.f32 %v967, %v1015
        %v1017 = vpop.f32.mrf.mxu0
        %v1018 = vpop.f32.mrf.mxu0
        %v1019 = vpop.f32.mrf.mxu0
        %1020 = vdwg.mxu0
        %v1021 = vmul.f32 %v886, 0.35355338
        %v1022 = vpack.c.bf16 %v1021, %v1021
        %v1023 = vpack.c.bf16 %v951, %v951
        %v1025 = vsel %vm717, %v1022, 0
        %v1028 = vsel %vm717, %v1023, 0
        %1030 = vmatprep.subr.bf16.mxu0 0
        %1031 = vmatpush1.bf16.xpose.msra.mxu0 0
        %1032 = vmatprep.subr.bf16.mxu0 0
        %1033 = vmatpush1.bf16.xpose.msra.mxu0 0
        %1034 = vmatprep.subr.bf16.mxu0 0
        %1035 = vmatpush1.bf16.xpose.msra.mxu0 0
        %1036 = vmatprep.subr.bf16.mxu0 0
        %1037 = vmatpush1.bf16.xpose.msra.mxu0 0
        %1038 = vmatprep.subr.bf16.mxu0 0
        %1039 = vmatpush1.bf16.xpose.msra.mxu0 0
        %1040 = vmatprep.subr.bf16.mxu0 0
        %1041 = vmatpush1.bf16.xpose.msra.mxu0 0
        %1042 = vmatprep.subr.bf16.mxu0 0
        %1043 = vmatpush1.bf16.xpose.msra.mxu0 0
        %1044 = vmatprep.subr.bf16.mxu0 0
        %1045 = vmatpush1.bf16.xpose.msra.mxu0 %v1028
        %1046 = vmatprep.subr.bf16.mxu0 0
        %1047 = vmatpush2.bf16.xpose.msra.mxu0 0
        %1048 = vmatprep.subr.bf16.mxu0 0
        %1049 = vmatpush2.bf16.xpose.msra.mxu0 0
        %1050 = vmatprep.subr.bf16.mxu0 0
        %1051 = vmatpush2.bf16.xpose.msra.mxu0 0
        %1052 = vmatprep.subr.bf16.mxu0 0
        %1053 = vmatpush2.bf16.xpose.msra.mxu0 0
        %1054 = vmatprep.subr.bf16.mxu0 0
        %1055 = vmatpush2.bf16.xpose.msra.mxu0 0
        %1056 = vmatprep.subr.bf16.mxu0 0
        %1057 = vmatpush2.bf16.xpose.msra.mxu0 0
        %1058 = vmatprep.subr.bf16.mxu0 0
        %1059 = vmatpush2.bf16.xpose.msra.mxu0 0
        %1060 = vmatprep.subr.bf16.mxu0 0
        %1061 = vmatpush2.bf16.xpose.msra.mxu0 0
        %1062 = vmatprep.mubr.bf16.mxu0 0
        %1063 = vmatmul.mubr.bf16.gmra.mxu0 %v1025
        %v1064 = vpop.f32.mrf.mxu0
        %v1065 = vadd.f32 %v715, %v1064
        %v1066 = vpop.f32.mrf.mxu0
        %v1067 = vpop.f32.mrf.mxu0
        %v1068 = vpop.f32.mrf.mxu0
        %1069 = vdwg.mxu0
        %v1070 = vsel %vm717, %v1065, -inf
        %1071 = vmax.xlane.f32.xlu0 %v1070
        %v1072 = vpop.xlane.xlu0 %1071
        %v1073 = vsub.f32 %v1065, %v1072
        %v1074 = vmul.f32 %v1073, 1.442695
        %v1075 = vpow.pop %v1074
        %v1076 = vsel %vm717, %v1075, 0.0
        %1077 = vadd.xlane.f32.xlu0 %v1076
        %v1078 = vpop.xlane.xlu0 %1077
        %v1079 = vrcp.pop %v1078
        %v1080 = vmul.f32 %v1075, %v1079
        %v1081 = vpack.c.bf16 %v1080, %v1080
        %v1082 = vpack.c.bf16 %v1016, %v1016
        %v1084 = vsel %vm717, %v1081, 0
        %v1087 = vsel %vm780, %v1082, 0
        %1089 = vmatprep.subr.bf16.mxu0 0
        %1090 = vmatpush1.bf16.msra.mxu0 0
        %1091 = vmatprep.subr.bf16.mxu0 0
        %1092 = vmatpush1.bf16.msra.mxu0 0
        %1093 = vmatprep.subr.bf16.mxu0 0
        %1094 = vmatpush1.bf16.msra.mxu0 0
        %1095 = vmatprep.subr.bf16.mxu0 0
        %1096 = vmatpush1.bf16.msra.mxu0 0
        %1097 = vmatprep.subr.bf16.mxu0 0
        %1098 = vmatpush1.bf16.msra.mxu0 0
        %1099 = vmatprep.subr.bf16.mxu0 0
        %1100 = vmatpush1.bf16.msra.mxu0 0
        %1101 = vmatprep.subr.bf16.mxu0 0
        %1102 = vmatpush1.bf16.msra.mxu0 0
        %1103 = vmatprep.subr.bf16.mxu0 0
        %1104 = vmatpush1.bf16.msra.mxu0 %v1087
        %1105 = vmatprep.subr.bf16.mxu0 0
        %1106 = vmatpush2.bf16.msra.mxu0 0
        %1107 = vmatprep.subr.bf16.mxu0 0
        %1108 = vmatpush2.bf16.msra.mxu0 0
        %1109 = vmatprep.subr.bf16.mxu0 0
        %1110 = vmatpush2.bf16.msra.mxu0 0
        %1111 = vmatprep.subr.bf16.mxu0 0
        %1112 = vmatpush2.bf16.msra.mxu0 0
        %1113 = vmatprep.subr.bf16.mxu0 0
        %1114 = vmatpush2.bf16.msra.mxu0 0
        %1115 = vmatprep.subr.bf16.mxu0 0
        %1116 = vmatpush2.bf16.msra.mxu0 0
        %1117 = vmatprep.subr.bf16.mxu0 0
        %1118 = vmatpush2.bf16.msra.mxu0 0
        %1119 = vmatprep.subr.bf16.mxu0 0
        %1120 = vmatpush2.bf16.msra.mxu0 0
        %1121 = vmatprep.mubr.bf16.mxu0 0
        %1122 = vmatmul.mubr.bf16.gmra.mxu0 %v1084
        %v1123 = vpop.f32.mrf.mxu0
        %v1124 = vadd.f32 0.0, %v1123
        %v1125 = vpop.f32.mrf.mxu0
        %v1126 = vpop.f32.mrf.mxu0
        %v1127 = vpop.f32.mrf.mxu0
        %1128 = vdwg.mxu0
        %s1129 = scalar_lea.vmem %s6, 4
        %v1130 = vld [vmem:[%s1129] sm:$0xf]
        %v1131 = vpack.c.bf16 %v1124, %v1124
        %v1133 = vsel %vm717, %v1131, 0
        %v1136 = vsel %vm780, %v1130, 0
        %1138 = vmatprep.subr.bf16.mxu0 0
        %1139 = vmatpush1.bf16.msra.mxu0 0
        %1140 = vmatprep.subr.bf16.mxu0 0
        %1141 = vmatpush1.bf16.msra.mxu0 0
        %1142 = vmatprep.subr.bf16.mxu0 0
        %1143 = vmatpush1.bf16.msra.mxu0 0
        %1144 = vmatprep.subr.bf16.mxu0 0
        %1145 = vmatpush1.bf16.msra.mxu0 0
        %1146 = vmatprep.subr.bf16.mxu0 0
        %1147 = vmatpush1.bf16.msra.mxu0 0
        %1148 = vmatprep.subr.bf16.mxu0 0
        %1149 = vmatpush1.bf16.msra.mxu0 0
        %1150 = vmatprep.subr.bf16.mxu0 0
        %1151 = vmatpush1.bf16.msra.mxu0 0
        %1152 = vmatprep.subr.bf16.mxu0 0
        %1153 = vmatpush1.bf16.msra.mxu0 %v1136
        %1154 = vmatprep.subr.bf16.mxu0 0
        %1155 = vmatpush2.bf16.msra.mxu0 0
        %1156 = vmatprep.subr.bf16.mxu0 0
        %1157 = vmatpush2.bf16.msra.mxu0 0
        %1158 = vmatprep.subr.bf16.mxu0 0
        %1159 = vmatpush2.bf16.msra.mxu0 0
        %1160 = vmatprep.subr.bf16.mxu0 0
        %1161 = vmatpush2.bf16.msra.mxu0 0
        %1162 = vmatprep.subr.bf16.mxu0 0
        %1163 = vmatpush2.bf16.msra.mxu0 0
        %1164 = vmatprep.subr.bf16.mxu0 0
        %1165 = vmatpush2.bf16.msra.mxu0 0
        %1166 = vmatprep.subr.bf16.mxu0 0
        %1167 = vmatpush2.bf16.msra.mxu0 0
        %1168 = vmatprep.subr.bf16.mxu0 0
        %1169 = vmatpush2.bf16.msra.mxu0 0
        %1170 = vmatprep.mubr.bf16.mxu0 0
        %1171 = vmatmul.mubr.bf16.gmra.mxu0 %v1133
        %v1172 = vpop.f32.mrf.mxu0
        %v1173 = vadd.f32 0.0, %v1172
        %v1174 = vpop.f32.mrf.mxu0
        %v1175 = vpop.f32.mrf.mxu0
        %v1176 = vpop.f32.mrf.mxu0
        %1177 = vdwg.mxu0
        %v1179 = vsel %vm717, %v825, 0
        %v1182 = vsel %vm780, %v824, 0
        %1184 = vmatprep.subr.bf16.mxu0 0
        %1185 = vmatpush1.bf16.msra.mxu0 0
        %1186 = vmatprep.subr.bf16.mxu0 0
        %1187 = vmatpush1.bf16.msra.mxu0 0
        %1188 = vmatprep.subr.bf16.mxu0 0
        %1189 = vmatpush1.bf16.msra.mxu0 0
        %1190 = vmatprep.subr.bf16.mxu0 0
        %1191 = vmatpush1.bf16.msra.mxu0 0
        %1192 = vmatprep.subr.bf16.mxu0 0
        %1193 = vmatpush1.bf16.msra.mxu0 0
        %1194 = vmatprep.subr.bf16.mxu0 0
        %1195 = vmatpush1.bf16.msra.mxu0 0
        %1196 = vmatprep.subr.bf16.mxu0 0
        %1197 = vmatpush1.bf16.msra.mxu0 0
        %1198 = vmatprep.subr.bf16.mxu0 0
        %1199 = vmatpush1.bf16.msra.mxu0 %v1182
        %1200 = vmatprep.subr.bf16.mxu0 0
        %1201 = vmatpush2.bf16.msra.mxu0 0
        %1202 = vmatprep.subr.bf16.mxu0 0
        %1203 = vmatpush2.bf16.msra.mxu0 0
        %1204 = vmatprep.subr.bf16.mxu0 0
        %1205 = vmatpush2.bf16.msra.mxu0 0
        %1206 = vmatprep.subr.bf16.mxu0 0
        %1207 = vmatpush2.bf16.msra.mxu0 0
        %1208 = vmatprep.subr.bf16.mxu0 0
        %1209 = vmatpush2.bf16.msra.mxu0 0
        %1210 = vmatprep.subr.bf16.mxu0 0
        %1211 = vmatpush2.bf16.msra.mxu0 0
        %1212 = vmatprep.subr.bf16.mxu0 0
        %1213 = vmatpush2.bf16.msra.mxu0 0
        %1214 = vmatprep.subr.bf16.mxu0 0
        %1215 = vmatpush2.bf16.msra.mxu0 0
        %1216 = vmatprep.mubr.bf16.mxu0 0
        %1217 = vmatmul.mubr.bf16.gmra.mxu0 %v1179
        %v1218 = vpop.f32.mrf.mxu0
        %v1219 = vadd.f32 %v1173, %v1218
        %v1220 = vpop.f32.mrf.mxu0
        %v1221 = vpop.f32.mrf.mxu0
        %v1222 = vpop.f32.mrf.mxu0
        %1223 = vdwg.mxu0
        %s1224 = scalar_lea.vmem %s4, 32
        %v1225 = vld [vmem:[%s1224] sm:$0xf]
        %v1226 = vld [vmem:[%s1224 + $0x4] sm:$0xf]
        %v1227 = vld [vmem:[%s1224 + $0x8] sm:$0xf]
        %v1228 = vld [vmem:[%s1224 + $0xc] sm:$0xf]
        %s1229 = scalar_lea.vmem %s5, 2
        %v1230 = vld [vmem:[%s1229] sm:$0x1]
        %v1232 = vlaneseq
        %v1233 = vshrl.u32 %v1232, 7
        %v1234 = vsub.s32 0, %v1233
        %v1235 = vrot.slane %v1230, %v1234
        %v1241 = vunpack.c.l.b16 %v1225
        %v1242 = vunpack.c.l.b16 %v1226
        %v1243 = vunpack.c.l.b16 %v1227
        %v1244 = vunpack.c.l.b16 %v1228
        %v1245 = vpack.c.b16 %v1242, %v1241
        %v1246 = vpack.c.b16 %v1244, %v1243
        %1249 = vmatprep.subr.bf16.mxu0 0
        %1250 = vmatpush1.bf16.msra.mxu0 0
        %1251 = vmatprep.subr.bf16.mxu0 0
        %1252 = vmatpush1.bf16.msra.mxu0 0
        %1253 = vmatprep.subr.bf16.mxu0 0
        %1254 = vmatpush1.bf16.msra.mxu0 0
        %1255 = vmatprep.subr.bf16.mxu0 0
        %1256 = vmatpush1.bf16.msra.mxu0 0
        %1257 = vmatprep.subr.bf16.mxu0 0
        %1258 = vmatpush1.bf16.msra.mxu0 0
        %1259 = vmatprep.subr.bf16.mxu0 0
        %1260 = vmatpush1.bf16.msra.mxu0 0
        %1261 = vmatprep.subr.bf16.mxu0 0
        %1262 = vmatpush1.bf16.msra.mxu0 %v1246
        %1263 = vmatprep.subr.bf16.mxu0 0
        %1264 = vmatpush1.bf16.msra.mxu0 %v1245
        %1265 = vmatprep.subr.bf16.mxu0 0
        %1266 = vmatpush2.bf16.msra.mxu0 0
        %1267 = vmatprep.subr.bf16.mxu0 0
        %1268 = vmatpush2.bf16.msra.mxu0 0
        %1269 = vmatprep.subr.bf16.mxu0 0
        %1270 = vmatpush2.bf16.msra.mxu0 0
        %1271 = vmatprep.subr.bf16.mxu0 0
        %1272 = vmatpush2.bf16.msra.mxu0 0
        %1273 = vmatprep.subr.bf16.mxu0 0
        %1274 = vmatpush2.bf16.msra.mxu0 0
        %1275 = vmatprep.subr.bf16.mxu0 0
        %1276 = vmatpush2.bf16.msra.mxu0 0
        %1277 = vmatprep.subr.bf16.mxu0 0
        %1278 = vmatpush2.bf16.msra.mxu0 0
        %1279 = vmatprep.subr.bf16.mxu0 0
        %1280 = vmatpush2.bf16.msra.mxu0 0
        %1281 = vmatprep.mubr.bf16.mxu0 0
        %1282 = vmatmul.mubr.bf16.gmra.mxu0 %v536
        %v1283 = vpop.f32.mrf.mxu0
        %v1284 = vadd.f32 %v1235, %v1283
        %v1285 = vpop.f32.mrf.mxu0
        %v1286 = vpop.f32.mrf.mxu0
        %v1287 = vpop.f32.mrf.mxu0
        %1288 = vdwg.mxu0
        %s1289 = scalar_lea.vmem %s4, 96
        %v1290 = vld [vmem:[%s1289] sm:$0xf]
        %v1291 = vld [vmem:[%s1289 + $0x4] sm:$0xf]
        %v1292 = vld [vmem:[%s1289 + $0x8] sm:$0xf]
        %v1293 = vld [vmem:[%s1289 + $0xc] sm:$0xf]
        %s1294 = scalar_lea.vmem %s5, 6
        %v1295 = vld [vmem:[%s1294] sm:$0x1]
        %v1297 = vlaneseq
        %v1298 = vshrl.u32 %v1297, 7
        %v1299 = vsub.s32 0, %v1298
        %v1300 = vrot.slane %v1295, %v1299
        %v1306 = vunpack.c.l.b16 %v1290
        %v1307 = vunpack.c.l.b16 %v1291
        %v1308 = vunpack.c.l.b16 %v1292
        %v1309 = vunpack.c.l.b16 %v1293
        %v1310 = vpack.c.b16 %v1307, %v1306
        %v1311 = vpack.c.b16 %v1309, %v1308
        %1314 = vmatprep.subr.bf16.mxu0 0
        %1315 = vmatpush1.bf16.msra.mxu0 0
        %1316 = vmatprep.subr.bf16.mxu0 0
        %1317 = vmatpush1.bf16.msra.mxu0 0
        %1318 = vmatprep.subr.bf16.mxu0 0
        %1319 = vmatpush1.bf16.msra.mxu0 0
        %1320 = vmatprep.subr.bf16.mxu0 0
        %1321 = vmatpush1.bf16.msra.mxu0 0
        %1322 = vmatprep.subr.bf16.mxu0 0
        %1323 = vmatpush1.bf16.msra.mxu0 0
        %1324 = vmatprep.subr.bf16.mxu0 0
        %1325 = vmatpush1.bf16.msra.mxu0 0
        %1326 = vmatprep.subr.bf16.mxu0 0
        %1327 = vmatpush1.bf16.msra.mxu0 %v1311
        %1328 = vmatprep.subr.bf16.mxu0 0
        %1329 = vmatpush1.bf16.msra.mxu0 %v1310
        %1330 = vmatprep.subr.bf16.mxu0 0
        %1331 = vmatpush2.bf16.msra.mxu0 0
        %1332 = vmatprep.subr.bf16.mxu0 0
        %1333 = vmatpush2.bf16.msra.mxu0 0
        %1334 = vmatprep.subr.bf16.mxu0 0
        %1335 = vmatpush2.bf16.msra.mxu0 0
        %1336 = vmatprep.subr.bf16.mxu0 0
        %1337 = vmatpush2.bf16.msra.mxu0 0
        %1338 = vmatprep.subr.bf16.mxu0 0
        %1339 = vmatpush2.bf16.msra.mxu0 0
        %1340 = vmatprep.subr.bf16.mxu0 0
        %1341 = vmatpush2.bf16.msra.mxu0 0
        %1342 = vmatprep.subr.bf16.mxu0 0
        %1343 = vmatpush2.bf16.msra.mxu0 0
        %1344 = vmatprep.subr.bf16.mxu0 0
        %1345 = vmatpush2.bf16.msra.mxu0 0
        %1346 = vmatprep.mubr.bf16.mxu0 0
        %1347 = vmatmul.mubr.bf16.gmra.mxu0 %v536
        %v1348 = vpop.f32.mrf.mxu0
        %v1349 = vadd.f32 %v1300, %v1348
        %v1350 = vpop.f32.mrf.mxu0
        %v1351 = vpop.f32.mrf.mxu0
        %v1352 = vpop.f32.mrf.mxu0
        %1353 = vdwg.mxu0
        %s1354 = scalar_lea.vmem %s4, 160
        %v1355 = vld [vmem:[%s1354] sm:$0xf]
        %v1356 = vld [vmem:[%s1354 + $0x4] sm:$0xf]
        %v1357 = vld [vmem:[%s1354 + $0x8] sm:$0xf]
        %v1358 = vld [vmem:[%s1354 + $0xc] sm:$0xf]
        %s1359 = scalar_lea.vmem %s5, 10
        %v1360 = vld [vmem:[%s1359] sm:$0x1]
        %v1362 = vlaneseq
        %v1363 = vshrl.u32 %v1362, 7
        %v1364 = vsub.s32 0, %v1363
        %v1365 = vrot.slane %v1360, %v1364
        %v1371 = vunpack.c.l.b16 %v1355
        %v1372 = vunpack.c.l.b16 %v1356
        %v1373 = vunpack.c.l.b16 %v1357
        %v1374 = vunpack.c.l.b16 %v1358
        %v1375 = vpack.c.b16 %v1372, %v1371
        %v1376 = vpack.c.b16 %v1374, %v1373
        %1379 = vmatprep.subr.bf16.mxu0 0
        %1380 = vmatpush1.bf16.msra.mxu0 0
        %1381 = vmatprep.subr.bf16.mxu0 0
        %1382 = vmatpush1.bf16.msra.mxu0 0
        %1383 = vmatprep.subr.bf16.mxu0 0
        %1384 = vmatpush1.bf16.msra.mxu0 0
        %1385 = vmatprep.subr.bf16.mxu0 0
        %1386 = vmatpush1.bf16.msra.mxu0 0
        %1387 = vmatprep.subr.bf16.mxu0 0
        %1388 = vmatpush1.bf16.msra.mxu0 0
        %1389 = vmatprep.subr.bf16.mxu0 0
        %1390 = vmatpush1.bf16.msra.mxu0 0
        %1391 = vmatprep.subr.bf16.mxu0 0
        %1392 = vmatpush1.bf16.msra.mxu0 %v1376
        %1393 = vmatprep.subr.bf16.mxu0 0
        %1394 = vmatpush1.bf16.msra.mxu0 %v1375
        %1395 = vmatprep.subr.bf16.mxu0 0
        %1396 = vmatpush2.bf16.msra.mxu0 0
        %1397 = vmatprep.subr.bf16.mxu0 0
        %1398 = vmatpush2.bf16.msra.mxu0 0
        %1399 = vmatprep.subr.bf16.mxu0 0
        %1400 = vmatpush2.bf16.msra.mxu0 0
        %1401 = vmatprep.subr.bf16.mxu0 0
        %1402 = vmatpush2.bf16.msra.mxu0 0
        %1403 = vmatprep.subr.bf16.mxu0 0
        %1404 = vmatpush2.bf16.msra.mxu0 0
        %1405 = vmatprep.subr.bf16.mxu0 0
        %1406 = vmatpush2.bf16.msra.mxu0 0
        %1407 = vmatprep.subr.bf16.mxu0 0
        %1408 = vmatpush2.bf16.msra.mxu0 0
        %1409 = vmatprep.subr.bf16.mxu0 0
        %1410 = vmatpush2.bf16.msra.mxu0 0
        %1411 = vmatprep.mubr.bf16.mxu0 0
        %1412 = vmatmul.mubr.bf16.gmra.mxu0 %v536
        %v1413 = vpop.f32.mrf.mxu0
        %v1414 = vadd.f32 %v1365, %v1413
        %v1415 = vpop.f32.mrf.mxu0
        %v1416 = vpop.f32.mrf.mxu0
        %v1417 = vpop.f32.mrf.mxu0
        %1418 = vdwg.mxu0
        %v1419 = vmul.f32 %v1284, 0.35355338
        %v1420 = vpack.c.bf16 %v1419, %v1419
        %v1421 = vpack.c.bf16 %v1349, %v1349
        %v1423 = vsel %vm717, %v1420, 0
        %v1426 = vsel %vm717, %v1421, 0
        %1428 = vmatprep.subr.bf16.mxu0 0
        %1429 = vmatpush1.bf16.xpose.msra.mxu0 0
        %1430 = vmatprep.subr.bf16.mxu0 0
        %1431 = vmatpush1.bf16.xpose.msra.mxu0 0
        %1432 = vmatprep.subr.bf16.mxu0 0
        %1433 = vmatpush1.bf16.xpose.msra.mxu0 0
        %1434 = vmatprep.subr.bf16.mxu0 0
        %1435 = vmatpush1.bf16.xpose.msra.mxu0 0
        %1436 = vmatprep.subr.bf16.mxu0 0
        %1437 = vmatpush1.bf16.xpose.msra.mxu0 0
        %1438 = vmatprep.subr.bf16.mxu0 0
        %1439 = vmatpush1.bf16.xpose.msra.mxu0 0
        %1440 = vmatprep.subr.bf16.mxu0 0
        %1441 = vmatpush1.bf16.xpose.msra.mxu0 0
        %1442 = vmatprep.subr.bf16.mxu0 0
        %1443 = vmatpush1.bf16.xpose.msra.mxu0 %v1426
        %1444 = vmatprep.subr.bf16.mxu0 0
        %1445 = vmatpush2.bf16.xpose.msra.mxu0 0
        %1446 = vmatprep.subr.bf16.mxu0 0
        %1447 = vmatpush2.bf16.xpose.msra.mxu0 0
        %1448 = vmatprep.subr.bf16.mxu0 0
        %1449 = vmatpush2.bf16.xpose.msra.mxu0 0
        %1450 = vmatprep.subr.bf16.mxu0 0
        %1451 = vmatpush2.bf16.xpose.msra.mxu0 0
        %1452 = vmatprep.subr.bf16.mxu0 0
        %1453 = vmatpush2.bf16.xpose.msra.mxu0 0
        %1454 = vmatprep.subr.bf16.mxu0 0
        %1455 = vmatpush2.bf16.xpose.msra.mxu0 0
        %1456 = vmatprep.subr.bf16.mxu0 0
        %1457 = vmatpush2.bf16.xpose.msra.mxu0 0
        %1458 = vmatprep.subr.bf16.mxu0 0
        %1459 = vmatpush2.bf16.xpose.msra.mxu0 0
        %1460 = vmatprep.mubr.bf16.mxu0 0
        %1461 = vmatmul.mubr.bf16.gmra.mxu0 %v1423
        %v1462 = vpop.f32.mrf.mxu0
        %v1463 = vadd.f32 %v715, %v1462
        %v1464 = vpop.f32.mrf.mxu0
        %v1465 = vpop.f32.mrf.mxu0
        %v1466 = vpop.f32.mrf.mxu0
        %1467 = vdwg.mxu0
        %v1468 = vsel %vm717, %v1463, -inf
        %1469 = vmax.xlane.f32.xlu0 %v1468
        %v1470 = vpop.xlane.xlu0 %1469
        %v1471 = vsub.f32 %v1463, %v1470
        %v1472 = vmul.f32 %v1471, 1.442695
        %v1473 = vpow.pop %v1472
        %v1474 = vsel %vm717, %v1473, 0.0
        %1475 = vadd.xlane.f32.xlu0 %v1474
        %v1476 = vpop.xlane.xlu0 %1475
        %v1477 = vrcp.pop %v1476
        %v1478 = vmul.f32 %v1473, %v1477
        %v1479 = vpack.c.bf16 %v1478, %v1478
        %v1480 = vpack.c.bf16 %v1414, %v1414
        %v1482 = vsel %vm717, %v1479, 0
        %v1485 = vsel %vm780, %v1480, 0
        %1487 = vmatprep.subr.bf16.mxu0 0
        %1488 = vmatpush1.bf16.msra.mxu0 0
        %1489 = vmatprep.subr.bf16.mxu0 0
        %1490 = vmatpush1.bf16.msra.mxu0 0
        %1491 = vmatprep.subr.bf16.mxu0 0
        %1492 = vmatpush1.bf16.msra.mxu0 0
        %1493 = vmatprep.subr.bf16.mxu0 0
        %1494 = vmatpush1.bf16.msra.mxu0 0
        %1495 = vmatprep.subr.bf16.mxu0 0
        %1496 = vmatpush1.bf16.msra.mxu0 0
        %1497 = vmatprep.subr.bf16.mxu0 0
        %1498 = vmatpush1.bf16.msra.mxu0 0
        %1499 = vmatprep.subr.bf16.mxu0 0
        %1500 = vmatpush1.bf16.msra.mxu0 0
        %1501 = vmatprep.subr.bf16.mxu0 0
        %1502 = vmatpush1.bf16.msra.mxu0 %v1485
        %1503 = vmatprep.subr.bf16.mxu0 0
        %1504 = vmatpush2.bf16.msra.mxu0 0
        %1505 = vmatprep.subr.bf16.mxu0 0
        %1506 = vmatpush2.bf16.msra.mxu0 0
        %1507 = vmatprep.subr.bf16.mxu0 0
        %1508 = vmatpush2.bf16.msra.mxu0 0
        %1509 = vmatprep.subr.bf16.mxu0 0
        %1510 = vmatpush2.bf16.msra.mxu0 0
        %1511 = vmatprep.subr.bf16.mxu0 0
        %1512 = vmatpush2.bf16.msra.mxu0 0
        %1513 = vmatprep.subr.bf16.mxu0 0
        %1514 = vmatpush2.bf16.msra.mxu0 0
        %1515 = vmatprep.subr.bf16.mxu0 0
        %1516 = vmatpush2.bf16.msra.mxu0 0
        %1517 = vmatprep.subr.bf16.mxu0 0
        %1518 = vmatpush2.bf16.msra.mxu0 0
        %1519 = vmatprep.mubr.bf16.mxu0 0
        %1520 = vmatmul.mubr.bf16.gmra.mxu0 %v1482
        %v1521 = vpop.f32.mrf.mxu0
        %v1522 = vadd.f32 0.0, %v1521
        %v1523 = vpop.f32.mrf.mxu0
        %v1524 = vpop.f32.mrf.mxu0
        %v1525 = vpop.f32.mrf.mxu0
        %1526 = vdwg.mxu0
        %s1527 = scalar_lea.vmem %s6, 8
        %v1528 = vld [vmem:[%s1527] sm:$0xf]
        %v1529 = vpack.c.bf16 %v1522, %v1522
        %v1531 = vsel %vm717, %v1529, 0
        %v1534 = vsel %vm780, %v1528, 0
        %1536 = vmatprep.subr.bf16.mxu0 0
        %1537 = vmatpush1.bf16.msra.mxu0 0
        %1538 = vmatprep.subr.bf16.mxu0 0
        %1539 = vmatpush1.bf16.msra.mxu0 0
        %1540 = vmatprep.subr.bf16.mxu0 0
        %1541 = vmatpush1.bf16.msra.mxu0 0
        %1542 = vmatprep.subr.bf16.mxu0 0
        %1543 = vmatpush1.bf16.msra.mxu0 0
        %1544 = vmatprep.subr.bf16.mxu0 0
        %1545 = vmatpush1.bf16.msra.mxu0 0
        %1546 = vmatprep.subr.bf16.mxu0 0
        %1547 = vmatpush1.bf16.msra.mxu0 0
        %1548 = vmatprep.subr.bf16.mxu0 0
        %1549 = vmatpush1.bf16.msra.mxu0 0
        %1550 = vmatprep.subr.bf16.mxu0 0
        %1551 = vmatpush1.bf16.msra.mxu0 %v1534
        %1552 = vmatprep.subr.bf16.mxu0 0
        %1553 = vmatpush2.bf16.msra.mxu0 0
        %1554 = vmatprep.subr.bf16.mxu0 0
        %1555 = vmatpush2.bf16.msra.mxu0 0
        %1556 = vmatprep.subr.bf16.mxu0 0
        %1557 = vmatpush2.bf16.msra.mxu0 0
        %1558 = vmatprep.subr.bf16.mxu0 0
        %1559 = vmatpush2.bf16.msra.mxu0 0
        %1560 = vmatprep.subr.bf16.mxu0 0
        %1561 = vmatpush2.bf16.msra.mxu0 0
        %1562 = vmatprep.subr.bf16.mxu0 0
        %1563 = vmatpush2.bf16.msra.mxu0 0
        %1564 = vmatprep.subr.bf16.mxu0 0
        %1565 = vmatpush2.bf16.msra.mxu0 0
        %1566 = vmatprep.subr.bf16.mxu0 0
        %1567 = vmatpush2.bf16.msra.mxu0 0
        %1568 = vmatprep.mubr.bf16.mxu0 0
        %1569 = vmatmul.mubr.bf16.gmra.mxu0 %v1531
        %v1570 = vpop.f32.mrf.mxu0
        %v1571 = vadd.f32 0.0, %v1570
        %v1572 = vpop.f32.mrf.mxu0
        %v1573 = vpop.f32.mrf.mxu0
        %v1574 = vpop.f32.mrf.mxu0
        %1575 = vdwg.mxu0
        %v1576 = vadd.f32 %v1219, %v1571
        %s1577 = scalar_lea.vmem %s4, 48
        %v1578 = vld [vmem:[%s1577] sm:$0xf]
        %v1579 = vld [vmem:[%s1577 + $0x4] sm:$0xf]
        %v1580 = vld [vmem:[%s1577 + $0x8] sm:$0xf]
        %v1581 = vld [vmem:[%s1577 + $0xc] sm:$0xf]
        %s1582 = scalar_lea.vmem %s5, 3
        %v1583 = vld [vmem:[%s1582] sm:$0x1]
        %v1585 = vlaneseq
        %v1586 = vshrl.u32 %v1585, 7
        %v1587 = vsub.s32 0, %v1586
        %v1588 = vrot.slane %v1583, %v1587
        %v1594 = vunpack.c.l.b16 %v1578
        %v1595 = vunpack.c.l.b16 %v1579
        %v1596 = vunpack.c.l.b16 %v1580
        %v1597 = vunpack.c.l.b16 %v1581
        %v1598 = vpack.c.b16 %v1595, %v1594
        %v1599 = vpack.c.b16 %v1597, %v1596
        %1602 = vmatprep.subr.bf16.mxu0 0
        %1603 = vmatpush1.bf16.msra.mxu0 0
        %1604 = vmatprep.subr.bf16.mxu0 0
        %1605 = vmatpush1.bf16.msra.mxu0 0
        %1606 = vmatprep.subr.bf16.mxu0 0
        %1607 = vmatpush1.bf16.msra.mxu0 0
        %1608 = vmatprep.subr.bf16.mxu0 0
        %1609 = vmatpush1.bf16.msra.mxu0 0
        %1610 = vmatprep.subr.bf16.mxu0 0
        %1611 = vmatpush1.bf16.msra.mxu0 0
        %1612 = vmatprep.subr.bf16.mxu0 0
        %1613 = vmatpush1.bf16.msra.mxu0 0
        %1614 = vmatprep.subr.bf16.mxu0 0
        %1615 = vmatpush1.bf16.msra.mxu0 %v1599
        %1616 = vmatprep.subr.bf16.mxu0 0
        %1617 = vmatpush1.bf16.msra.mxu0 %v1598
        %1618 = vmatprep.subr.bf16.mxu0 0
        %1619 = vmatpush2.bf16.msra.mxu0 0
        %1620 = vmatprep.subr.bf16.mxu0 0
        %1621 = vmatpush2.bf16.msra.mxu0 0
        %1622 = vmatprep.subr.bf16.mxu0 0
        %1623 = vmatpush2.bf16.msra.mxu0 0
        %1624 = vmatprep.subr.bf16.mxu0 0
        %1625 = vmatpush2.bf16.msra.mxu0 0
        %1626 = vmatprep.subr.bf16.mxu0 0
        %1627 = vmatpush2.bf16.msra.mxu0 0
        %1628 = vmatprep.subr.bf16.mxu0 0
        %1629 = vmatpush2.bf16.msra.mxu0 0
        %1630 = vmatprep.subr.bf16.mxu0 0
        %1631 = vmatpush2.bf16.msra.mxu0 0
        %1632 = vmatprep.subr.bf16.mxu0 0
        %1633 = vmatpush2.bf16.msra.mxu0 0
        %1634 = vmatprep.mubr.bf16.mxu0 0
        %1635 = vmatmul.mubr.bf16.gmra.mxu0 %v536
        %v1636 = vpop.f32.mrf.mxu0
        %v1637 = vadd.f32 %v1588, %v1636
        %v1638 = vpop.f32.mrf.mxu0
        %v1639 = vpop.f32.mrf.mxu0
        %v1640 = vpop.f32.mrf.mxu0
        %1641 = vdwg.mxu0
        %s1642 = scalar_lea.vmem %s4, 112
        %v1643 = vld [vmem:[%s1642] sm:$0xf]
        %v1644 = vld [vmem:[%s1642 + $0x4] sm:$0xf]
        %v1645 = vld [vmem:[%s1642 + $0x8] sm:$0xf]
        %v1646 = vld [vmem:[%s1642 + $0xc] sm:$0xf]
        %s1647 = scalar_lea.vmem %s5, 7
        %v1648 = vld [vmem:[%s1647] sm:$0x1]
        %v1650 = vlaneseq
        %v1651 = vshrl.u32 %v1650, 7
        %v1652 = vsub.s32 0, %v1651
        %v1653 = vrot.slane %v1648, %v1652
        %v1659 = vunpack.c.l.b16 %v1643
        %v1660 = vunpack.c.l.b16 %v1644
        %v1661 = vunpack.c.l.b16 %v1645
        %v1662 = vunpack.c.l.b16 %v1646
        %v1663 = vpack.c.b16 %v1660, %v1659
        %v1664 = vpack.c.b16 %v1662, %v1661
        %1667 = vmatprep.subr.bf16.mxu0 0
        %1668 = vmatpush1.bf16.msra.mxu0 0
        %1669 = vmatprep.subr.bf16.mxu0 0
        %1670 = vmatpush1.bf16.msra.mxu0 0
        %1671 = vmatprep.subr.bf16.mxu0 0
        %1672 = vmatpush1.bf16.msra.mxu0 0
        %1673 = vmatprep.subr.bf16.mxu0 0
        %1674 = vmatpush1.bf16.msra.mxu0 0
        %1675 = vmatprep.subr.bf16.mxu0 0
        %1676 = vmatpush1.bf16.msra.mxu0 0
        %1677 = vmatprep.subr.bf16.mxu0 0
        %1678 = vmatpush1.bf16.msra.mxu0 0
        %1679 = vmatprep.subr.bf16.mxu0 0
        %1680 = vmatpush1.bf16.msra.mxu0 %v1664
        %1681 = vmatprep.subr.bf16.mxu0 0
        %1682 = vmatpush1.bf16.msra.mxu0 %v1663
        %1683 = vmatprep.subr.bf16.mxu0 0
        %1684 = vmatpush2.bf16.msra.mxu0 0
        %1685 = vmatprep.subr.bf16.mxu0 0
        %1686 = vmatpush2.bf16.msra.mxu0 0
        %1687 = vmatprep.subr.bf16.mxu0 0
        %1688 = vmatpush2.bf16.msra.mxu0 0
        %1689 = vmatprep.subr.bf16.mxu0 0
        %1690 = vmatpush2.bf16.msra.mxu0 0
        %1691 = vmatprep.subr.bf16.mxu0 0
        %1692 = vmatpush2.bf16.msra.mxu0 0
        %1693 = vmatprep.subr.bf16.mxu0 0
        %1694 = vmatpush2.bf16.msra.mxu0 0
        %1695 = vmatprep.subr.bf16.mxu0 0
        %1696 = vmatpush2.bf16.msra.mxu0 0
        %1697 = vmatprep.subr.bf16.mxu0 0
        %1698 = vmatpush2.bf16.msra.mxu0 0
        %1699 = vmatprep.mubr.bf16.mxu0 0
        %1700 = vmatmul.mubr.bf16.gmra.mxu0 %v536
        %v1701 = vpop.f32.mrf.mxu0
        %v1702 = vadd.f32 %v1653, %v1701
        %v1703 = vpop.f32.mrf.mxu0
        %v1704 = vpop.f32.mrf.mxu0
        %v1705 = vpop.f32.mrf.mxu0
        %1706 = vdwg.mxu0
        %s1707 = scalar_lea.vmem %s4, 176
        %v1708 = vld [vmem:[%s1707] sm:$0xf]
        %v1709 = vld [vmem:[%s1707 + $0x4] sm:$0xf]
        %v1710 = vld [vmem:[%s1707 + $0x8] sm:$0xf]
        %v1711 = vld [vmem:[%s1707 + $0xc] sm:$0xf]
        %s1712 = scalar_lea.vmem %s5, 11
        %v1713 = vld [vmem:[%s1712] sm:$0x1]
        %v1715 = vlaneseq
        %v1716 = vshrl.u32 %v1715, 7
        %v1717 = vsub.s32 0, %v1716
        %v1718 = vrot.slane %v1713, %v1717
        %v1724 = vunpack.c.l.b16 %v1708
        %v1725 = vunpack.c.l.b16 %v1709
        %v1726 = vunpack.c.l.b16 %v1710
        %v1727 = vunpack.c.l.b16 %v1711
        %v1728 = vpack.c.b16 %v1725, %v1724
        %v1729 = vpack.c.b16 %v1727, %v1726
        %1732 = vmatprep.subr.bf16.mxu0 0
        %1733 = vmatpush1.bf16.msra.mxu0 0
        %1734 = vmatprep.subr.bf16.mxu0 0
        %1735 = vmatpush1.bf16.msra.mxu0 0
        %1736 = vmatprep.subr.bf16.mxu0 0
        %1737 = vmatpush1.bf16.msra.mxu0 0
        %1738 = vmatprep.subr.bf16.mxu0 0
        %1739 = vmatpush1.bf16.msra.mxu0 0
        %1740 = vmatprep.subr.bf16.mxu0 0
        %1741 = vmatpush1.bf16.msra.mxu0 0
        %1742 = vmatprep.subr.bf16.mxu0 0
        %1743 = vmatpush1.bf16.msra.mxu0 0
        %1744 = vmatprep.subr.bf16.mxu0 0
        %1745 = vmatpush1.bf16.msra.mxu0 %v1729
        %1746 = vmatprep.subr.bf16.mxu0 0
        %1747 = vmatpush1.bf16.msra.mxu0 %v1728
        %1748 = vmatprep.subr.bf16.mxu0 0
        %1749 = vmatpush2.bf16.msra.mxu0 0
        %1750 = vmatprep.subr.bf16.mxu0 0
        %1751 = vmatpush2.bf16.msra.mxu0 0
        %1752 = vmatprep.subr.bf16.mxu0 0
        %1753 = vmatpush2.bf16.msra.mxu0 0
        %1754 = vmatprep.subr.bf16.mxu0 0
        %1755 = vmatpush2.bf16.msra.mxu0 0
        %1756 = vmatprep.subr.bf16.mxu0 0
        %1757 = vmatpush2.bf16.msra.mxu0 0
        %1758 = vmatprep.subr.bf16.mxu0 0
        %1759 = vmatpush2.bf16.msra.mxu0 0
        %1760 = vmatprep.subr.bf16.mxu0 0
        %1761 = vmatpush2.bf16.msra.mxu0 0
        %1762 = vmatprep.subr.bf16.mxu0 0
        %1763 = vmatpush2.bf16.msra.mxu0 0
        %1764 = vmatprep.mubr.bf16.mxu0 0
        %1765 = vmatmul.mubr.bf16.gmra.mxu0 %v536
        %v1766 = vpop.f32.mrf.mxu0
        %v1767 = vadd.f32 %v1718, %v1766
        %v1768 = vpop.f32.mrf.mxu0
        %v1769 = vpop.f32.mrf.mxu0
        %v1770 = vpop.f32.mrf.mxu0
        %1771 = vdwg.mxu0
        %v1772 = vmul.f32 %v1637, 0.35355338
        %v1773 = vpack.c.bf16 %v1772, %v1772
        %v1774 = vpack.c.bf16 %v1702, %v1702
        %v1776 = vsel %vm717, %v1773, 0
        %v1779 = vsel %vm717, %v1774, 0
        %1781 = vmatprep.subr.bf16.mxu0 0
        %1782 = vmatpush1.bf16.xpose.msra.mxu0 0
        %1783 = vmatprep.subr.bf16.mxu0 0
        %1784 = vmatpush1.bf16.xpose.msra.mxu0 0
        %1785 = vmatprep.subr.bf16.mxu0 0
        %1786 = vmatpush1.bf16.xpose.msra.mxu0 0
        %1787 = vmatprep.subr.bf16.mxu0 0
        %1788 = vmatpush1.bf16.xpose.msra.mxu0 0
        %1789 = vmatprep.subr.bf16.mxu0 0
        %1790 = vmatpush1.bf16.xpose.msra.mxu0 0
        %1791 = vmatprep.subr.bf16.mxu0 0
        %1792 = vmatpush1.bf16.xpose.msra.mxu0 0
        %1793 = vmatprep.subr.bf16.mxu0 0
        %1794 = vmatpush1.bf16.xpose.msra.mxu0 0
        %1795 = vmatprep.subr.bf16.mxu0 0
        %1796 = vmatpush1.bf16.xpose.msra.mxu0 %v1779
        %1797 = vmatprep.subr.bf16.mxu0 0
        %1798 = vmatpush2.bf16.xpose.msra.mxu0 0
        %1799 = vmatprep.subr.bf16.mxu0 0
        %1800 = vmatpush2.bf16.xpose.msra.mxu0 0
        %1801 = vmatprep.subr.bf16.mxu0 0
        %1802 = vmatpush2.bf16.xpose.msra.mxu0 0
        %1803 = vmatprep.subr.bf16.mxu0 0
        %1804 = vmatpush2.bf16.xpose.msra.mxu0 0
        %1805 = vmatprep.subr.bf16.mxu0 0
        %1806 = vmatpush2.bf16.xpose.msra.mxu0 0
        %1807 = vmatprep.subr.bf16.mxu0 0
        %1808 = vmatpush2.bf16.xpose.msra.mxu0 0
        %1809 = vmatprep.subr.bf16.mxu0 0
        %1810 = vmatpush2.bf16.xpose.msra.mxu0 0
        %1811 = vmatprep.subr.bf16.mxu0 0
        %1812 = vmatpush2.bf16.xpose.msra.mxu0 0
        %1813 = vmatprep.mubr.bf16.mxu0 0
        %1814 = vmatmul.mubr.bf16.gmra.mxu0 %v1776
        %v1815 = vpop.f32.mrf.mxu0
        %v1816 = vadd.f32 %v715, %v1815
        %v1817 = vpop.f32.mrf.mxu0
        %v1818 = vpop.f32.mrf.mxu0
        %v1819 = vpop.f32.mrf.mxu0
        %1820 = vdwg.mxu0
        %v1821 = vsel %vm717, %v1816, -inf
        %1822 = vmax.xlane.f32.xlu0 %v1821
        %v1823 = vpop.xlane.xlu0 %1822
        %v1824 = vsub.f32 %v1816, %v1823
        %v1825 = vmul.f32 %v1824, 1.442695
        %v1826 = vpow.pop %v1825
        %v1827 = vsel %vm717, %v1826, 0.0
        %1828 = vadd.xlane.f32.xlu0 %v1827
        %v1829 = vpop.xlane.xlu0 %1828
        %v1830 = vrcp.pop %v1829
        %v1831 = vmul.f32 %v1826, %v1830
        %v1832 = vpack.c.bf16 %v1831, %v1831
        %v1833 = vpack.c.bf16 %v1767, %v1767
        %v1835 = vsel %vm717, %v1832, 0
        %v1838 = vsel %vm780, %v1833, 0
        %1840 = vmatprep.subr.bf16.mxu0 0
        %1841 = vmatpush1.bf16.msra.mxu0 0
        %1842 = vmatprep.subr.bf16.mxu0 0
        %1843 = vmatpush1.bf16.msra.mxu0 0
        %1844 = vmatprep.subr.bf16.mxu0 0
        %1845 = vmatpush1.bf16.msra.mxu0 0
        %1846 = vmatprep.subr.bf16.mxu0 0
        %1847 = vmatpush1.bf16.msra.mxu0 0
        %1848 = vmatprep.subr.bf16.mxu0 0
        %1849 = vmatpush1.bf16.msra.mxu0 0
        %1850 = vmatprep.subr.bf16.mxu0 0
        %1851 = vmatpush1.bf16.msra.mxu0 0
        %1852 = vmatprep.subr.bf16.mxu0 0
        %1853 = vmatpush1.bf16.msra.mxu0 0
        %1854 = vmatprep.subr.bf16.mxu0 0
        %1855 = vmatpush1.bf16.msra.mxu0 %v1838
        %1856 = vmatprep.subr.bf16.mxu0 0
        %1857 = vmatpush2.bf16.msra.mxu0 0
        %1858 = vmatprep.subr.bf16.mxu0 0
        %1859 = vmatpush2.bf16.msra.mxu0 0
        %1860 = vmatprep.subr.bf16.mxu0 0
        %1861 = vmatpush2.bf16.msra.mxu0 0
        %1862 = vmatprep.subr.bf16.mxu0 0
        %1863 = vmatpush2.bf16.msra.mxu0 0
        %1864 = vmatprep.subr.bf16.mxu0 0
        %1865 = vmatpush2.bf16.msra.mxu0 0
        %1866 = vmatprep.subr.bf16.mxu0 0
        %1867 = vmatpush2.bf16.msra.mxu0 0
        %1868 = vmatprep.subr.bf16.mxu0 0
        %1869 = vmatpush2.bf16.msra.mxu0 0
        %1870 = vmatprep.subr.bf16.mxu0 0
        %1871 = vmatpush2.bf16.msra.mxu0 0
        %1872 = vmatprep.mubr.bf16.mxu0 0
        %1873 = vmatmul.mubr.bf16.gmra.mxu0 %v1835
        %v1874 = vpop.f32.mrf.mxu0
        %v1875 = vadd.f32 0.0, %v1874
        %v1876 = vpop.f32.mrf.mxu0
        %v1877 = vpop.f32.mrf.mxu0
        %v1878 = vpop.f32.mrf.mxu0
        %1879 = vdwg.mxu0
        %s1880 = scalar_lea.vmem %s6, 12
        %v1881 = vld [vmem:[%s1880] sm:$0xf]
        %v1882 = vpack.c.bf16 %v1875, %v1875
        %v1884 = vsel %vm717, %v1882, 0
        %v1887 = vsel %vm780, %v1881, 0
        %1889 = vmatprep.subr.bf16.mxu0 0
        %1890 = vmatpush1.bf16.msra.mxu0 0
        %1891 = vmatprep.subr.bf16.mxu0 0
        %1892 = vmatpush1.bf16.msra.mxu0 0
        %1893 = vmatprep.subr.bf16.mxu0 0
        %1894 = vmatpush1.bf16.msra.mxu0 0
        %1895 = vmatprep.subr.bf16.mxu0 0
        %1896 = vmatpush1.bf16.msra.mxu0 0
        %1897 = vmatprep.subr.bf16.mxu0 0
        %1898 = vmatpush1.bf16.msra.mxu0 0
        %1899 = vmatprep.subr.bf16.mxu0 0
        %1900 = vmatpush1.bf16.msra.mxu0 0
        %1901 = vmatprep.subr.bf16.mxu0 0
        %1902 = vmatpush1.bf16.msra.mxu0 0
        %1903 = vmatprep.subr.bf16.mxu0 0
        %1904 = vmatpush1.bf16.msra.mxu0 %v1887
        %1905 = vmatprep.subr.bf16.mxu0 0
        %1906 = vmatpush2.bf16.msra.mxu0 0
        %1907 = vmatprep.subr.bf16.mxu0 0
        %1908 = vmatpush2.bf16.msra.mxu0 0
        %1909 = vmatprep.subr.bf16.mxu0 0
        %1910 = vmatpush2.bf16.msra.mxu0 0
        %1911 = vmatprep.subr.bf16.mxu0 0
        %1912 = vmatpush2.bf16.msra.mxu0 0
        %1913 = vmatprep.subr.bf16.mxu0 0
        %1914 = vmatpush2.bf16.msra.mxu0 0
        %1915 = vmatprep.subr.bf16.mxu0 0
        %1916 = vmatpush2.bf16.msra.mxu0 0
        %1917 = vmatprep.subr.bf16.mxu0 0
        %1918 = vmatpush2.bf16.msra.mxu0 0
        %1919 = vmatprep.subr.bf16.mxu0 0
        %1920 = vmatpush2.bf16.msra.mxu0 0
        %1921 = vmatprep.mubr.bf16.mxu0 0
        %1922 = vmatmul.mubr.bf16.gmra.mxu0 %v1884
        %v1923 = vpop.f32.mrf.mxu0
        %v1924 = vadd.f32 0.0, %v1923
        %v1925 = vpop.f32.mrf.mxu0
        %v1926 = vpop.f32.mrf.mxu0
        %v1927 = vpop.f32.mrf.mxu0
        %1928 = vdwg.mxu0
        %v1929 = vadd.f32 %v1576, %v1924
        %v1930 = vlaneseq
        %v1931 = vshrl.u32 %v1930, 7
        %v1932 = vsub.s32 0, %v1931
        %v1933 = vrot.slane %v510, %v1932
        %v1934 = vadd.f32 %v1929, %v1933
        %v1935 = vadd.f32 %v1934, %v509
        %v1936 = vsel %vm485, %v1935, 0.0
        %1937 = vadd.xlane.f32.xlu0 %v1936
        %v1938 = vpop.xlane.xlu0 %1937
        %v1939 = vmul.f32 %v1938, %v489
        %v1940 = vsub.f32 %v1935, %v1939
        %v1941 = vmul.f32 %v1940, %v1940
        %v1942 = vsel %vm485, %v1941, 0.0
        %1943 = vadd.xlane.f32.xlu0 %v1942
        %v1944 = vpop.xlane.xlu0 %1943
        %v1945 = vmul.f32 %v1944, %v489
        %v1946 = vadd.f32 %v1945, 1e-12
        %v1947 = vrsqrt.pop %v1946
        %v1948 = vmul.f32 %v1940, %v1947
        %v1949 = vlaneseq
        %v1950 = vshrl.u32 %v1949, 7
        %v1951 = vsub.s32 1, %v1950
        %v1952 = vrot.slane %v510, %v1951
        %v1953 = vmul.f32 %v1948, %v1952
        %v1954 = vlaneseq
        %v1955 = vshrl.u32 %v1954, 7
        %v1956 = vsub.s32 2, %v1955
        %v1957 = vrot.slane %v510, %v1956
        %v1958 = vadd.f32 %v1953, %v1957
        %v1959 = vld [vmem:[%s7] sm:$0xf]
        %v1960 = vld [vmem:[%s7 + $0x4] sm:$0xf]
        %v1961 = vld [vmem:[%s7 + $0x8] sm:$0xf]
        %v1962 = vld [vmem:[%s7 + $0xc] sm:$0xf]
        %v1963 = vpack.c.bf16 %v1958, %v1958
        %v1964 = vlaneseq
        %v1965 = vshrl.u32 %v1964, 7
        %v1966 = vsub.s32 3, %v1965
        %v1967 = vrot.slane %v510, %v1966
        %v1972 = vunpack.c.l.b16 %v1959
        %v1973 = vunpack.c.l.b16 %v1960
        %v1974 = vunpack.c.l.b16 %v1961
        %v1975 = vunpack.c.l.b16 %v1962
        %v1976 = vpack.c.b16 %v1973, %v1972
        %v1977 = vpack.c.b16 %v1975, %v1974
        %v1981 = vsel %vm485, %v1963, 0
        %1983 = vmatprep.subr.bf16.mxu0 0
        %1984 = vmatpush1.bf16.msra.mxu0 0
        %1985 = vmatprep.subr.bf16.mxu0 0
        %1986 = vmatpush1.bf16.msra.mxu0 0
        %1987 = vmatprep.subr.bf16.mxu0 0
        %1988 = vmatpush1.bf16.msra.mxu0 0
        %1989 = vmatprep.subr.bf16.mxu0 0
        %1990 = vmatpush1.bf16.msra.mxu0 0
        %1991 = vmatprep.subr.bf16.mxu0 0
        %1992 = vmatpush1.bf16.msra.mxu0 0
        %1993 = vmatprep.subr.bf16.mxu0 0
        %1994 = vmatpush1.bf16.msra.mxu0 0
        %1995 = vmatprep.subr.bf16.mxu0 0
        %1996 = vmatpush1.bf16.msra.mxu0 %v1977
        %1997 = vmatprep.subr.bf16.mxu0 0
        %1998 = vmatpush1.bf16.msra.mxu0 %v1976
        %1999 = vmatprep.subr.bf16.mxu0 0
        %2000 = vmatpush2.bf16.msra.mxu0 0
        %2001 = vmatprep.subr.bf16.mxu0 0
        %2002 = vmatpush2.bf16.msra.mxu0 0
        %2003 = vmatprep.subr.bf16.mxu0 0
        %2004 = vmatpush2.bf16.msra.mxu0 0
        %2005 = vmatprep.subr.bf16.mxu0 0
        %2006 = vmatpush2.bf16.msra.mxu0 0
        %2007 = vmatprep.subr.bf16.mxu0 0
        %2008 = vmatpush2.bf16.msra.mxu0 0
        %2009 = vmatprep.subr.bf16.mxu0 0
        %2010 = vmatpush2.bf16.msra.mxu0 0
        %2011 = vmatprep.subr.bf16.mxu0 0
        %2012 = vmatpush2.bf16.msra.mxu0 0
        %2013 = vmatprep.subr.bf16.mxu0 0
        %2014 = vmatpush2.bf16.msra.mxu0 0
        %2015 = vmatprep.mubr.bf16.mxu0 0
        %2016 = vmatmul.mubr.bf16.gmra.mxu0 %v1981
        %v2017 = vpop.f32.mrf.mxu0
        %v2018 = vadd.f32 %v1967, %v2017
        %v2019 = vpop.f32.mrf.mxu0
        %v2020 = vpop.f32.mrf.mxu0
        %v2021 = vpop.f32.mrf.mxu0
        %2022 = vdwg.mxu0
        %v2023 = vmul.f32 %v2018, 0.5
        %v2024 = vmul.f32 %v2018, 0.044715
        %v2025 = vmul.f32 %v2024, %v2018
        %v2026 = vmul.f32 %v2025, %v2018
        %v2027 = vadd.f32 %v2018, %v2026
        %v2028 = vmul.f32 %v2027, 0.7978846
        %v2029 = vtanh.pop %v2028
        %v2030 = vadd.f32 %v2029, 1.0
        %v2031 = vmul.f32 %v2023, %v2030
        %v2032 = vld [vmem:[%s8] sm:$0xf]
        %v2033 = vld [vmem:[%s8 + $0x4] sm:$0xf]
        %v2034 = vld [vmem:[%s8 + $0x8] sm:$0xf]
        %v2035 = vld [vmem:[%s8 + $0xc] sm:$0xf]
        %v2036 = vld [vmem:[%s8 + $0x10] sm:$0xf]
        %v2037 = vld [vmem:[%s8 + $0x14] sm:$0xf]
        %v2038 = vld [vmem:[%s8 + $0x18] sm:$0xf]
        %v2039 = vld [vmem:[%s8 + $0x1c] sm:$0xf]
        %v2040 = vpack.c.bf16 %v2031, %v2031
        %v2041 = vlaneseq
        %v2042 = vshrl.u32 %v2041, 7
        %v2043 = vsub.s32 4, %v2042
        %v2044 = vrot.slane %v510, %v2043
        %v2053 = vunpack.c.l.b16 %v2032
        %v2054 = vunpack.c.l.b16 %v2033
        %v2055 = vunpack.c.l.b16 %v2034
        %v2056 = vunpack.c.l.b16 %v2035
        %v2057 = vunpack.c.l.b16 %v2036
        %v2058 = vunpack.c.l.b16 %v2037
        %v2059 = vunpack.c.l.b16 %v2038
        %v2060 = vunpack.c.l.b16 %v2039
        %v2061 = vpack.c.b16 %v2054, %v2053
        %v2062 = vpack.c.b16 %v2056, %v2055
        %v2063 = vpack.c.b16 %v2058, %v2057
        %v2064 = vpack.c.b16 %v2060, %v2059
        %vm2069 = vcmask 523264
        %v2071 = vsel %vm2069, %v2040, 0
        %2073 = vmatprep.subr.bf16.mxu0 0
        %2074 = vmatpush1.bf16.msra.mxu0 0
        %2075 = vmatprep.subr.bf16.mxu0 0
        %2076 = vmatpush1.bf16.msra.mxu0 0
        %2077 = vmatprep.subr.bf16.mxu0 0
        %2078 = vmatpush1.bf16.msra.mxu0 0
        %2079 = vmatprep.subr.bf16.mxu0 0
        %2080 = vmatpush1.bf16.msra.mxu0 0
        %2081 = vmatprep.subr.bf16.mxu0 0
        %2082 = vmatpush1.bf16.msra.mxu0 %v2064
        %2083 = vmatprep.subr.bf16.mxu0 0
        %2084 = vmatpush1.bf16.msra.mxu0 %v2063
        %2085 = vmatprep.subr.bf16.mxu0 0
        %2086 = vmatpush1.bf16.msra.mxu0 %v2062
        %2087 = vmatprep.subr.bf16.mxu0 0
        %2088 = vmatpush1.bf16.msra.mxu0 %v2061
        %2089 = vmatprep.subr.bf16.mxu0 0
        %2090 = vmatpush2.bf16.msra.mxu0 0
        %2091 = vmatprep.subr.bf16.mxu0 0
        %2092 = vmatpush2.bf16.msra.mxu0 0
        %2093 = vmatprep.subr.bf16.mxu0 0
        %2094 = vmatpush2.bf16.msra.mxu0 0
        %2095 = vmatprep.subr.bf16.mxu0 0
        %2096 = vmatpush2.bf16.msra.mxu0 0
        %2097 = vmatprep.subr.bf16.mxu0 0
        %2098 = vmatpush2.bf16.msra.mxu0 0
        %2099 = vmatprep.subr.bf16.mxu0 0
        %2100 = vmatpush2.bf16.msra.mxu0 0
        %2101 = vmatprep.subr.bf16.mxu0 0
        %2102 = vmatpush2.bf16.msra.mxu0 0
        %2103 = vmatprep.subr.bf16.mxu0 0
        %2104 = vmatpush2.bf16.msra.mxu0 0
        %2105 = vmatprep.mubr.bf16.mxu0 0
        %2106 = vmatmul.mubr.bf16.gmra.mxu0 %v2071
        %v2107 = vpop.f32.mrf.mxu0
        %v2108 = vadd.f32 %v2044, %v2107
        %v2109 = vpop.f32.mrf.mxu0
        %v2110 = vpop.f32.mrf.mxu0
        %v2111 = vpop.f32.mrf.mxu0
        %2112 = vdwg.mxu0
        %v2113 = vadd.f32 %v2108, %v1958
        %v2114 = vsel %vm485, %v2113, 0.0
        %2115 = vadd.xlane.f32.xlu0 %v2114
        %v2116 = vpop.xlane.xlu0 %2115
        %v2117 = vmul.f32 %v2116, %v489
        %v2118 = vsub.f32 %v2113, %v2117
        %v2119 = vmul.f32 %v2118, %v2118
        %v2120 = vsel %vm485, %v2119, 0.0
        %2121 = vadd.xlane.f32.xlu0 %v2120
        %v2122 = vpop.xlane.xlu0 %2121
        %v2123 = vmul.f32 %v2122, %v489
        %v2124 = vadd.f32 %v2123, 1e-12
        %v2125 = vrsqrt.pop %v2124
        %v2126 = vmul.f32 %v2118, %v2125
        %v2127 = vlaneseq
        %v2128 = vshrl.u32 %v2127, 7
        %v2129 = vsub.s32 5, %v2128
        %v2130 = vrot.slane %v510, %v2129
        %v2131 = vmul.f32 %v2126, %v2130
        %v2132 = vlaneseq
        %v2133 = vshrl.u32 %v2132, 7
        %v2134 = vsub.s32 6, %v2133
        %v2135 = vrot.slane %v510, %v2134
        %v2136 = vadd.f32 %v2131, %v2135
        %s2137 = scalar_lea.vmem %s9, 8
        %v2138 = vld [vmem:[%s2137] sm:$0x7f]
        %v2139 = vpack.c.bf16 %v2136, %v2136
        %s2140 = scalar_lea.vmem %s4, 192
        %v2141 = vld [vmem:[%s2140] sm:$0xf]
        %v2142 = vld [vmem:[%s2140 + $0x4] sm:$0xf]
        %v2143 = vld [vmem:[%s2140 + $0x8] sm:$0xf]
        %v2144 = vld [vmem:[%s2140 + $0xc] sm:$0xf]
        %s2145 = scalar_lea.vmem %s5, 12
        %v2146 = vld [vmem:[%s2145] sm:$0x1]
        %v2148 = vlaneseq
        %v2149 = vshrl.u32 %v2148, 7
        %v2150 = vsub.s32 0, %v2149
        %v2151 = vrot.slane %v2146, %v2150
        %v2157 = vunpack.c.l.b16 %v2141
        %v2158 = vunpack.c.l.b16 %v2142
        %v2159 = vunpack.c.l.b16 %v2143
        %v2160 = vunpack.c.l.b16 %v2144
        %v2161 = vpack.c.b16 %v2158, %v2157
        %v2162 = vpack.c.b16 %v2160, %v2159
        %v2166 = vsel %vm485, %v2139, 0
        %2168 = vmatprep.subr.bf16.mxu0 0
        %2169 = vmatpush1.bf16.msra.mxu0 0
        %2170 = vmatprep.subr.bf16.mxu0 0
        %2171 = vmatpush1.bf16.msra.mxu0 0
        %2172 = vmatprep.subr.bf16.mxu0 0
        %2173 = vmatpush1.bf16.msra.mxu0 0
        %2174 = vmatprep.subr.bf16.mxu0 0
        %2175 = vmatpush1.bf16.msra.mxu0 0
        %2176 = vmatprep.subr.bf16.mxu0 0
        %2177 = vmatpush1.bf16.msra.mxu0 0
        %2178 = vmatprep.subr.bf16.mxu0 0
        %2179 = vmatpush1.bf16.msra.mxu0 0
        %2180 = vmatprep.subr.bf16.mxu0 0
        %2181 = vmatpush1.bf16.msra.mxu0 %v2162
        %2182 = vmatprep.subr.bf16.mxu0 0
        %2183 = vmatpush1.bf16.msra.mxu0 %v2161
        %2184 = vmatprep.subr.bf16.mxu0 0
        %2185 = vmatpush2.bf16.msra.mxu0 0
        %2186 = vmatprep.subr.bf16.mxu0 0
        %2187 = vmatpush2.bf16.msra.mxu0 0
        %2188 = vmatprep.subr.bf16.mxu0 0
        %2189 = vmatpush2.bf16.msra.mxu0 0
        %2190 = vmatprep.subr.bf16.mxu0 0
        %2191 = vmatpush2.bf16.msra.mxu0 0
        %2192 = vmatprep.subr.bf16.mxu0 0
        %2193 = vmatpush2.bf16.msra.mxu0 0
        %2194 = vmatprep.subr.bf16.mxu0 0
        %2195 = vmatpush2.bf16.msra.mxu0 0
        %2196 = vmatprep.subr.bf16.mxu0 0
        %2197 = vmatpush2.bf16.msra.mxu0 0
        %2198 = vmatprep.subr.bf16.mxu0 0
        %2199 = vmatpush2.bf16.msra.mxu0 0
        %2200 = vmatprep.mubr.bf16.mxu0 0
        %2201 = vmatmul.mubr.bf16.gmra.mxu0 %v2166
        %v2202 = vpop.f32.mrf.mxu0
        %v2203 = vadd.f32 %v2151, %v2202
        %v2204 = vpop.f32.mrf.mxu0
        %v2205 = vpop.f32.mrf.mxu0
        %v2206 = vpop.f32.mrf.mxu0
        %2207 = vdwg.mxu0
        %s2208 = scalar_lea.vmem %s4, 256
        %v2209 = vld [vmem:[%s2208] sm:$0xf]
        %v2210 = vld [vmem:[%s2208 + $0x4] sm:$0xf]
        %v2211 = vld [vmem:[%s2208 + $0x8] sm:$0xf]
        %v2212 = vld [vmem:[%s2208 + $0xc] sm:$0xf]
        %s2213 = scalar_lea.vmem %s5, 16
        %v2214 = vld [vmem:[%s2213] sm:$0x1]
        %v2216 = vlaneseq
        %v2217 = vshrl.u32 %v2216, 7
        %v2218 = vsub.s32 0, %v2217
        %v2219 = vrot.slane %v2214, %v2218
        %v2225 = vunpack.c.l.b16 %v2209
        %v2226 = vunpack.c.l.b16 %v2210
        %v2227 = vunpack.c.l.b16 %v2211
        %v2228 = vunpack.c.l.b16 %v2212
        %v2229 = vpack.c.b16 %v2226, %v2225
        %v2230 = vpack.c.b16 %v2228, %v2227
        %2233 = vmatprep.subr.bf16.mxu0 0
        %2234 = vmatpush1.bf16.msra.mxu0 0
        %2235 = vmatprep.subr.bf16.mxu0 0
        %2236 = vmatpush1.bf16.msra.mxu0 0
        %2237 = vmatprep.subr.bf16.mxu0 0
        %2238 = vmatpush1.bf16.msra.mxu0 0
        %2239 = vmatprep.subr.bf16.mxu0 0
        %2240 = vmatpush1.bf16.msra.mxu0 0
        %2241 = vmatprep.subr.bf16.mxu0 0
        %2242 = vmatpush1.bf16.msra.mxu0 0
        %2243 = vmatprep.subr.bf16.mxu0 0
        %2244 = vmatpush1.bf16.msra.mxu0 0
        %2245 = vmatprep.subr.bf16.mxu0 0
        %2246 = vmatpush1.bf16.msra.mxu0 %v2230
        %2247 = vmatprep.subr.bf16.mxu0 0
        %2248 = vmatpush1.bf16.msra.mxu0 %v2229
        %2249 = vmatprep.subr.bf16.mxu0 0
        %2250 = vmatpush2.bf16.msra.mxu0 0
        %2251 = vmatprep.subr.bf16.mxu0 0
        %2252 = vmatpush2.bf16.msra.mxu0 0
        %2253 = vmatprep.subr.bf16.mxu0 0
        %2254 = vmatpush2.bf16.msra.mxu0 0
        %2255 = vmatprep.subr.bf16.mxu0 0
        %2256 = vmatpush2.bf16.msra.mxu0 0
        %2257 = vmatprep.subr.bf16.mxu0 0
        %2258 = vmatpush2.bf16.msra.mxu0 0
        %2259 = vmatprep.subr.bf16.mxu0 0
        %2260 = vmatpush2.bf16.msra.mxu0 0
        %2261 = vmatprep.subr.bf16.mxu0 0
        %2262 = vmatpush2.bf16.msra.mxu0 0
        %2263 = vmatprep.subr.bf16.mxu0 0
        %2264 = vmatpush2.bf16.msra.mxu0 0
        %2265 = vmatprep.mubr.bf16.mxu0 0
        %2266 = vmatmul.mubr.bf16.gmra.mxu0 %v2166
        %v2267 = vpop.f32.mrf.mxu0
        %v2268 = vadd.f32 %v2219, %v2267
        %v2269 = vpop.f32.mrf.mxu0
        %v2270 = vpop.f32.mrf.mxu0
        %v2271 = vpop.f32.mrf.mxu0
        %2272 = vdwg.mxu0
        %s2273 = scalar_lea.vmem %s4, 320
        %v2274 = vld [vmem:[%s2273] sm:$0xf]
        %v2275 = vld [vmem:[%s2273 + $0x4] sm:$0xf]
        %v2276 = vld [vmem:[%s2273 + $0x8] sm:$0xf]
        %v2277 = vld [vmem:[%s2273 + $0xc] sm:$0xf]
        %s2278 = scalar_lea.vmem %s5, 20
        %v2279 = vld [vmem:[%s2278] sm:$0x1]
        %v2281 = vlaneseq
        %v2282 = vshrl.u32 %v2281, 7
        %v2283 = vsub.s32 0, %v2282
        %v2284 = vrot.slane %v2279, %v2283
        %v2290 = vunpack.c.l.b16 %v2274
        %v2291 = vunpack.c.l.b16 %v2275
        %v2292 = vunpack.c.l.b16 %v2276
        %v2293 = vunpack.c.l.b16 %v2277
        %v2294 = vpack.c.b16 %v2291, %v2290
        %v2295 = vpack.c.b16 %v2293, %v2292
        %2298 = vmatprep.subr.bf16.mxu0 0
        %2299 = vmatpush1.bf16.msra.mxu0 0
        %2300 = vmatprep.subr.bf16.mxu0 0
        %2301 = vmatpush1.bf16.msra.mxu0 0
        %2302 = vmatprep.subr.bf16.mxu0 0
        %2303 = vmatpush1.bf16.msra.mxu0 0
        %2304 = vmatprep.subr.bf16.mxu0 0
        %2305 = vmatpush1.bf16.msra.mxu0 0
        %2306 = vmatprep.subr.bf16.mxu0 0
        %2307 = vmatpush1.bf16.msra.mxu0 0
        %2308 = vmatprep.subr.bf16.mxu0 0
        %2309 = vmatpush1.bf16.msra.mxu0 0
        %2310 = vmatprep.subr.bf16.mxu0 0
        %2311 = vmatpush1.bf16.msra.mxu0 %v2295
        %2312 = vmatprep.subr.bf16.mxu0 0
        %2313 = vmatpush1.bf16.msra.mxu0 %v2294
        %2314 = vmatprep.subr.bf16.mxu0 0
        %2315 = vmatpush2.bf16.msra.mxu0 0
        %2316 = vmatprep.subr.bf16.mxu0 0
        %2317 = vmatpush2.bf16.msra.mxu0 0
        %2318 = vmatprep.subr.bf16.mxu0 0
        %2319 = vmatpush2.bf16.msra.mxu0 0
        %2320 = vmatprep.subr.bf16.mxu0 0
        %2321 = vmatpush2.bf16.msra.mxu0 0
        %2322 = vmatprep.subr.bf16.mxu0 0
        %2323 = vmatpush2.bf16.msra.mxu0 0
        %2324 = vmatprep.subr.bf16.mxu0 0
        %2325 = vmatpush2.bf16.msra.mxu0 0
        %2326 = vmatprep.subr.bf16.mxu0 0
        %2327 = vmatpush2.bf16.msra.mxu0 0
        %2328 = vmatprep.subr.bf16.mxu0 0
        %2329 = vmatpush2.bf16.msra.mxu0 0
        %2330 = vmatprep.mubr.bf16.mxu0 0
        %2331 = vmatmul.mubr.bf16.gmra.mxu0 %v2166
        %v2332 = vpop.f32.mrf.mxu0
        %v2333 = vadd.f32 %v2284, %v2332
        %v2334 = vpop.f32.mrf.mxu0
        %v2335 = vpop.f32.mrf.mxu0
        %v2336 = vpop.f32.mrf.mxu0
        %2337 = vdwg.mxu0
        %v2338 = vmul.f32 %v2203, 0.35355338
        %v2339 = vpack.c.bf16 %v2338, %v2338
        %v2340 = vpack.c.bf16 %v2268, %v2268
        %v2342 = vsel %vm717, %v2339, 0
        %v2345 = vsel %vm717, %v2340, 0
        %2347 = vmatprep.subr.bf16.mxu0 0
        %2348 = vmatpush1.bf16.xpose.msra.mxu0 0
        %2349 = vmatprep.subr.bf16.mxu0 0
        %2350 = vmatpush1.bf16.xpose.msra.mxu0 0
        %2351 = vmatprep.subr.bf16.mxu0 0
        %2352 = vmatpush1.bf16.xpose.msra.mxu0 0
        %2353 = vmatprep.subr.bf16.mxu0 0
        %2354 = vmatpush1.bf16.xpose.msra.mxu0 0
        %2355 = vmatprep.subr.bf16.mxu0 0
        %2356 = vmatpush1.bf16.xpose.msra.mxu0 0
        %2357 = vmatprep.subr.bf16.mxu0 0
        %2358 = vmatpush1.bf16.xpose.msra.mxu0 0
        %2359 = vmatprep.subr.bf16.mxu0 0
        %2360 = vmatpush1.bf16.xpose.msra.mxu0 0
        %2361 = vmatprep.subr.bf16.mxu0 0
        %2362 = vmatpush1.bf16.xpose.msra.mxu0 %v2345
        %2363 = vmatprep.subr.bf16.mxu0 0
        %2364 = vmatpush2.bf16.xpose.msra.mxu0 0
        %2365 = vmatprep.subr.bf16.mxu0 0
        %2366 = vmatpush2.bf16.xpose.msra.mxu0 0
        %2367 = vmatprep.subr.bf16.mxu0 0
        %2368 = vmatpush2.bf16.xpose.msra.mxu0 0
        %2369 = vmatprep.subr.bf16.mxu0 0
        %2370 = vmatpush2.bf16.xpose.msra.mxu0 0
        %2371 = vmatprep.subr.bf16.mxu0 0
        %2372 = vmatpush2.bf16.xpose.msra.mxu0 0
        %2373 = vmatprep.subr.bf16.mxu0 0
        %2374 = vmatpush2.bf16.xpose.msra.mxu0 0
        %2375 = vmatprep.subr.bf16.mxu0 0
        %2376 = vmatpush2.bf16.xpose.msra.mxu0 0
        %2377 = vmatprep.subr.bf16.mxu0 0
        %2378 = vmatpush2.bf16.xpose.msra.mxu0 0
        %2379 = vmatprep.mubr.bf16.mxu0 0
        %2380 = vmatmul.mubr.bf16.gmra.mxu0 %v2342
        %v2381 = vpop.f32.mrf.mxu0
        %v2382 = vadd.f32 %v715, %v2381
        %v2383 = vpop.f32.mrf.mxu0
        %v2384 = vpop.f32.mrf.mxu0
        %v2385 = vpop.f32.mrf.mxu0
        %2386 = vdwg.mxu0
        %v2387 = vsel %vm717, %v2382, -inf
        %2388 = vmax.xlane.f32.xlu0 %v2387
        %v2389 = vpop.xlane.xlu0 %2388
        %v2390 = vsub.f32 %v2382, %v2389
        %v2391 = vmul.f32 %v2390, 1.442695
        %v2392 = vpow.pop %v2391
        %v2393 = vsel %vm717, %v2392, 0.0
        %2394 = vadd.xlane.f32.xlu0 %v2393
        %v2395 = vpop.xlane.xlu0 %2394
        %v2396 = vrcp.pop %v2395
        %v2397 = vmul.f32 %v2392, %v2396
        %v2398 = vpack.c.bf16 %v2397, %v2397
        %v2399 = vpack.c.bf16 %v2333, %v2333
        %v2401 = vsel %vm717, %v2398, 0
        %v2404 = vsel %vm780, %v2399, 0
        %2406 = vmatprep.subr.bf16.mxu0 0
        %2407 = vmatpush1.bf16.msra.mxu0 0
        %2408 = vmatprep.subr.bf16.mxu0 0
        %2409 = vmatpush1.bf16.msra.mxu0 0
        %2410 = vmatprep.subr.bf16.mxu0 0
        %2411 = vmatpush1.bf16.msra.mxu0 0
        %2412 = vmatprep.subr.bf16.mxu0 0
        %2413 = vmatpush1.bf16.msra.mxu0 0
        %2414 = vmatprep.subr.bf16.mxu0 0
        %2415 = vmatpush1.bf16.msra.mxu0 0
        %2416 = vmatprep.subr.bf16.mxu0 0
        %2417 = vmatpush1.bf16.msra.mxu0 0
        %2418 = vmatprep.subr.bf16.mxu0 0
        %2419 = vmatpush1.bf16.msra.mxu0 0
        %2420 = vmatprep.subr.bf16.mxu0 0
        %2421 = vmatpush1.bf16.msra.mxu0 %v2404
        %2422 = vmatprep.subr.bf16.mxu0 0
        %2423 = vmatpush2.bf16.msra.mxu0 0
        %2424 = vmatprep.subr.bf16.mxu0 0
        %2425 = vmatpush2.bf16.msra.mxu0 0
        %2426 = vmatprep.subr.bf16.mxu0 0
        %2427 = vmatpush2.bf16.msra.mxu0 0
        %2428 = vmatprep.subr.bf16.mxu0 0
        %2429 = vmatpush2.bf16.msra.mxu0 0
        %2430 = vmatprep.subr.bf16.mxu0 0
        %2431 = vmatpush2.bf16.msra.mxu0 0
        %2432 = vmatprep.subr.bf16.mxu0 0
        %2433 = vmatpush2.bf16.msra.mxu0 0
        %2434 = vmatprep.subr.bf16.mxu0 0
        %2435 = vmatpush2.bf16.msra.mxu0 0
        %2436 = vmatprep.subr.bf16.mxu0 0
        %2437 = vmatpush2.bf16.msra.mxu0 0
        %2438 = vmatprep.mubr.bf16.mxu0 0
        %2439 = vmatmul.mubr.bf16.gmra.mxu0 %v2401
        %v2440 = vpop.f32.mrf.mxu0
        %v2441 = vadd.f32 0.0, %v2440
        %v2442 = vpop.f32.mrf.mxu0
        %v2443 = vpop.f32.mrf.mxu0
        %v2444 = vpop.f32.mrf.mxu0
        %2445 = vdwg.mxu0
        %s2446 = scalar_lea.vmem %s6, 16
        %v2447 = vld [vmem:[%s2446] sm:$0xf]
        %v2448 = vpack.c.bf16 %v2441, %v2441
        %s2449 = scalar_lea.vmem %s4, 208
        %v2450 = vld [vmem:[%s2449] sm:$0xf]
        %v2451 = vld [vmem:[%s2449 + $0x4] sm:$0xf]
        %v2452 = vld [vmem:[%s2449 + $0x8] sm:$0xf]
        %v2453 = vld [vmem:[%s2449 + $0xc] sm:$0xf]
        %s2454 = scalar_lea.vmem %s5, 13
        %v2455 = vld [vmem:[%s2454] sm:$0x1]
        %v2457 = vlaneseq
        %v2458 = vshrl.u32 %v2457, 7
        %v2459 = vsub.s32 0, %v2458
        %v2460 = vrot.slane %v2455, %v2459
        %v2466 = vunpack.c.l.b16 %v2450
        %v2467 = vunpack.c.l.b16 %v2451
        %v2468 = vunpack.c.l.b16 %v2452
        %v2469 = vunpack.c.l.b16 %v2453
        %v2470 = vpack.c.b16 %v2467, %v2466
        %v2471 = vpack.c.b16 %v2469, %v2468
        %2474 = vmatprep.subr.bf16.mxu0 0
        %2475 = vmatpush1.bf16.msra.mxu0 0
        %2476 = vmatprep.subr.bf16.mxu0 0
        %2477 = vmatpush1.bf16.msra.mxu0 0
        %2478 = vmatprep.subr.bf16.mxu0 0
        %2479 = vmatpush1.bf16.msra.mxu0 0
        %2480 = vmatprep.subr.bf16.mxu0 0
        %2481 = vmatpush1.bf16.msra.mxu0 0
        %2482 = vmatprep.subr.bf16.mxu0 0
        %2483 = vmatpush1.bf16.msra.mxu0 0
        %2484 = vmatprep.subr.bf16.mxu0 0
        %2485 = vmatpush1.bf16.msra.mxu0 0
        %2486 = vmatprep.subr.bf16.mxu0 0
        %2487 = vmatpush1.bf16.msra.mxu0 %v2471
        %2488 = vmatprep.subr.bf16.mxu0 0
        %2489 = vmatpush1.bf16.msra.mxu0 %v2470
        %2490 = vmatprep.subr.bf16.mxu0 0
        %2491 = vmatpush2.bf16.msra.mxu0 0
        %2492 = vmatprep.subr.bf16.mxu0 0
        %2493 = vmatpush2.bf16.msra.mxu0 0
        %2494 = vmatprep.subr.bf16.mxu0 0
        %2495 = vmatpush2.bf16.msra.mxu0 0
        %2496 = vmatprep.subr.bf16.mxu0 0
        %2497 = vmatpush2.bf16.msra.mxu0 0
        %2498 = vmatprep.subr.bf16.mxu0 0
        %2499 = vmatpush2.bf16.msra.mxu0 0
        %2500 = vmatprep.subr.bf16.mxu0 0
        %2501 = vmatpush2.bf16.msra.mxu0 0
        %2502 = vmatprep.subr.bf16.mxu0 0
        %2503 = vmatpush2.bf16.msra.mxu0 0
        %2504 = vmatprep.subr.bf16.mxu0 0
        %2505 = vmatpush2.bf16.msra.mxu0 0
        %2506 = vmatprep.mubr.bf16.mxu0 0
        %2507 = vmatmul.mubr.bf16.gmra.mxu0 %v2166
        %v2508 = vpop.f32.mrf.mxu0
        %v2509 = vadd.f32 %v2460, %v2508
        %v2510 = vpop.f32.mrf.mxu0
        %v2511 = vpop.f32.mrf.mxu0
        %v2512 = vpop.f32.mrf.mxu0
        %2513 = vdwg.mxu0
        %s2514 = scalar_lea.vmem %s4, 272
        %v2515 = vld [vmem:[%s2514] sm:$0xf]
        %v2516 = vld [vmem:[%s2514 + $0x4] sm:$0xf]
        %v2517 = vld [vmem:[%s2514 + $0x8] sm:$0xf]
        %v2518 = vld [vmem:[%s2514 + $0xc] sm:$0xf]
        %s2519 = scalar_lea.vmem %s5, 17
        %v2520 = vld [vmem:[%s2519] sm:$0x1]
        %v2522 = vlaneseq
        %v2523 = vshrl.u32 %v2522, 7
        %v2524 = vsub.s32 0, %v2523
        %v2525 = vrot.slane %v2520, %v2524
        %v2531 = vunpack.c.l.b16 %v2515
        %v2532 = vunpack.c.l.b16 %v2516
        %v2533 = vunpack.c.l.b16 %v2517
        %v2534 = vunpack.c.l.b16 %v2518
        %v2535 = vpack.c.b16 %v2532, %v2531
        %v2536 = vpack.c.b16 %v2534, %v2533
        %2539 = vmatprep.subr.bf16.mxu0 0
        %2540 = vmatpush1.bf16.msra.mxu0 0
        %2541 = vmatprep.subr.bf16.mxu0 0
        %2542 = vmatpush1.bf16.msra.mxu0 0
        %2543 = vmatprep.subr.bf16.mxu0 0
        %2544 = vmatpush1.bf16.msra.mxu0 0
        %2545 = vmatprep.subr.bf16.mxu0 0
        %2546 = vmatpush1.bf16.msra.mxu0 0
        %2547 = vmatprep.subr.bf16.mxu0 0
        %2548 = vmatpush1.bf16.msra.mxu0 0
        %2549 = vmatprep.subr.bf16.mxu0 0
        %2550 = vmatpush1.bf16.msra.mxu0 0
        %2551 = vmatprep.subr.bf16.mxu0 0
        %2552 = vmatpush1.bf16.msra.mxu0 %v2536
        %2553 = vmatprep.subr.bf16.mxu0 0
        %2554 = vmatpush1.bf16.msra.mxu0 %v2535
        %2555 = vmatprep.subr.bf16.mxu0 0
        %2556 = vmatpush2.bf16.msra.mxu0 0
        %2557 = vmatprep.subr.bf16.mxu0 0
        %2558 = vmatpush2.bf16.msra.mxu0 0
        %2559 = vmatprep.subr.bf16.mxu0 0
        %2560 = vmatpush2.bf16.msra.mxu0 0
        %2561 = vmatprep.subr.bf16.mxu0 0
        %2562 = vmatpush2.bf16.msra.mxu0 0
        %2563 = vmatprep.subr.bf16.mxu0 0
        %2564 = vmatpush2.bf16.msra.mxu0 0
        %2565 = vmatprep.subr.bf16.mxu0 0
        %2566 = vmatpush2.bf16.msra.mxu0 0
        %2567 = vmatprep.subr.bf16.mxu0 0
        %2568 = vmatpush2.bf16.msra.mxu0 0
        %2569 = vmatprep.subr.bf16.mxu0 0
        %2570 = vmatpush2.bf16.msra.mxu0 0
        %2571 = vmatprep.mubr.bf16.mxu0 0
        %2572 = vmatmul.mubr.bf16.gmra.mxu0 %v2166
        %v2573 = vpop.f32.mrf.mxu0
        %v2574 = vadd.f32 %v2525, %v2573
        %v2575 = vpop.f32.mrf.mxu0
        %v2576 = vpop.f32.mrf.mxu0
        %v2577 = vpop.f32.mrf.mxu0
        %2578 = vdwg.mxu0
        %s2579 = scalar_lea.vmem %s4, 336
        %v2580 = vld [vmem:[%s2579] sm:$0xf]
        %v2581 = vld [vmem:[%s2579 + $0x4] sm:$0xf]
        %v2582 = vld [vmem:[%s2579 + $0x8] sm:$0xf]
        %v2583 = vld [vmem:[%s2579 + $0xc] sm:$0xf]
        %s2584 = scalar_lea.vmem %s5, 21
        %v2585 = vld [vmem:[%s2584] sm:$0x1]
        %v2587 = vlaneseq
        %v2588 = vshrl.u32 %v2587, 7
        %v2589 = vsub.s32 0, %v2588
        %v2590 = vrot.slane %v2585, %v2589
        %v2596 = vunpack.c.l.b16 %v2580
        %v2597 = vunpack.c.l.b16 %v2581
        %v2598 = vunpack.c.l.b16 %v2582
        %v2599 = vunpack.c.l.b16 %v2583
        %v2600 = vpack.c.b16 %v2597, %v2596
        %v2601 = vpack.c.b16 %v2599, %v2598
        %2604 = vmatprep.subr.bf16.mxu0 0
        %2605 = vmatpush1.bf16.msra.mxu0 0
        %2606 = vmatprep.subr.bf16.mxu0 0
        %2607 = vmatpush1.bf16.msra.mxu0 0
        %2608 = vmatprep.subr.bf16.mxu0 0
        %2609 = vmatpush1.bf16.msra.mxu0 0
        %2610 = vmatprep.subr.bf16.mxu0 0
        %2611 = vmatpush1.bf16.msra.mxu0 0
        %2612 = vmatprep.subr.bf16.mxu0 0
        %2613 = vmatpush1.bf16.msra.mxu0 0
        %2614 = vmatprep.subr.bf16.mxu0 0
        %2615 = vmatpush1.bf16.msra.mxu0 0
        %2616 = vmatprep.subr.bf16.mxu0 0
        %2617 = vmatpush1.bf16.msra.mxu0 %v2601
        %2618 = vmatprep.subr.bf16.mxu0 0
        %2619 = vmatpush1.bf16.msra.mxu0 %v2600
        %2620 = vmatprep.subr.bf16.mxu0 0
        %2621 = vmatpush2.bf16.msra.mxu0 0
        %2622 = vmatprep.subr.bf16.mxu0 0
        %2623 = vmatpush2.bf16.msra.mxu0 0
        %2624 = vmatprep.subr.bf16.mxu0 0
        %2625 = vmatpush2.bf16.msra.mxu0 0
        %2626 = vmatprep.subr.bf16.mxu0 0
        %2627 = vmatpush2.bf16.msra.mxu0 0
        %2628 = vmatprep.subr.bf16.mxu0 0
        %2629 = vmatpush2.bf16.msra.mxu0 0
        %2630 = vmatprep.subr.bf16.mxu0 0
        %2631 = vmatpush2.bf16.msra.mxu0 0
        %2632 = vmatprep.subr.bf16.mxu0 0
        %2633 = vmatpush2.bf16.msra.mxu0 0
        %2634 = vmatprep.subr.bf16.mxu0 0
        %2635 = vmatpush2.bf16.msra.mxu0 0
        %2636 = vmatprep.mubr.bf16.mxu0 0
        %2637 = vmatmul.mubr.bf16.gmra.mxu0 %v2166
        %v2638 = vpop.f32.mrf.mxu0
        %v2639 = vadd.f32 %v2590, %v2638
        %v2640 = vpop.f32.mrf.mxu0
        %v2641 = vpop.f32.mrf.mxu0
        %v2642 = vpop.f32.mrf.mxu0
        %2643 = vdwg.mxu0
        %v2644 = vmul.f32 %v2509, 0.35355338
        %v2645 = vpack.c.bf16 %v2644, %v2644
        %v2646 = vpack.c.bf16 %v2574, %v2574
        %v2648 = vsel %vm717, %v2645, 0
        %v2651 = vsel %vm717, %v2646, 0
        %2653 = vmatprep.subr.bf16.mxu0 0
        %2654 = vmatpush1.bf16.xpose.msra.mxu0 0
        %2655 = vmatprep.subr.bf16.mxu0 0
        %2656 = vmatpush1.bf16.xpose.msra.mxu0 0
        %2657 = vmatprep.subr.bf16.mxu0 0
        %2658 = vmatpush1.bf16.xpose.msra.mxu0 0
        %2659 = vmatprep.subr.bf16.mxu0 0
        %2660 = vmatpush1.bf16.xpose.msra.mxu0 0
        %2661 = vmatprep.subr.bf16.mxu0 0
        %2662 = vmatpush1.bf16.xpose.msra.mxu0 0
        %2663 = vmatprep.subr.bf16.mxu0 0
        %2664 = vmatpush1.bf16.xpose.msra.mxu0 0
        %2665 = vmatprep.subr.bf16.mxu0 0
        %2666 = vmatpush1.bf16.xpose.msra.mxu0 0
        %2667 = vmatprep.subr.bf16.mxu0 0
        %2668 = vmatpush1.bf16.xpose.msra.mxu0 %v2651
        %2669 = vmatprep.subr.bf16.mxu0 0
        %2670 = vmatpush2.bf16.xpose.msra.mxu0 0
        %2671 = vmatprep.subr.bf16.mxu0 0
        %2672 = vmatpush2.bf16.xpose.msra.mxu0 0
        %2673 = vmatprep.subr.bf16.mxu0 0
        %2674 = vmatpush2.bf16.xpose.msra.mxu0 0
        %2675 = vmatprep.subr.bf16.mxu0 0
        %2676 = vmatpush2.bf16.xpose.msra.mxu0 0
        %2677 = vmatprep.subr.bf16.mxu0 0
        %2678 = vmatpush2.bf16.xpose.msra.mxu0 0
        %2679 = vmatprep.subr.bf16.mxu0 0
        %2680 = vmatpush2.bf16.xpose.msra.mxu0 0
        %2681 = vmatprep.subr.bf16.mxu0 0
        %2682 = vmatpush2.bf16.xpose.msra.mxu0 0
        %2683 = vmatprep.subr.bf16.mxu0 0
        %2684 = vmatpush2.bf16.xpose.msra.mxu0 0
        %2685 = vmatprep.mubr.bf16.mxu0 0
        %2686 = vmatmul.mubr.bf16.gmra.mxu0 %v2648
        %v2687 = vpop.f32.mrf.mxu0
        %v2688 = vadd.f32 %v715, %v2687
        %v2689 = vpop.f32.mrf.mxu0
        %v2690 = vpop.f32.mrf.mxu0
        %v2691 = vpop.f32.mrf.mxu0
        %2692 = vdwg.mxu0
        %v2693 = vsel %vm717, %v2688, -inf
        %2694 = vmax.xlane.f32.xlu0 %v2693
        %v2695 = vpop.xlane.xlu0 %2694
        %v2696 = vsub.f32 %v2688, %v2695
        %v2697 = vmul.f32 %v2696, 1.442695
        %v2698 = vpow.pop %v2697
        %v2699 = vsel %vm717, %v2698, 0.0
        %2700 = vadd.xlane.f32.xlu0 %v2699
        %v2701 = vpop.xlane.xlu0 %2700
        %v2702 = vrcp.pop %v2701
        %v2703 = vmul.f32 %v2698, %v2702
        %v2704 = vpack.c.bf16 %v2703, %v2703
        %v2705 = vpack.c.bf16 %v2639, %v2639
        %v2707 = vsel %vm717, %v2704, 0
        %v2710 = vsel %vm780, %v2705, 0
        %2712 = vmatprep.subr.bf16.mxu0 0
        %2713 = vmatpush1.bf16.msra.mxu0 0
        %2714 = vmatprep.subr.bf16.mxu0 0
        %2715 = vmatpush1.bf16.msra.mxu0 0
        %2716 = vmatprep.subr.bf16.mxu0 0
        %2717 = vmatpush1.bf16.msra.mxu0 0
        %2718 = vmatprep.subr.bf16.mxu0 0
        %2719 = vmatpush1.bf16.msra.mxu0 0
        %2720 = vmatprep.subr.bf16.mxu0 0
        %2721 = vmatpush1.bf16.msra.mxu0 0
        %2722 = vmatprep.subr.bf16.mxu0 0
        %2723 = vmatpush1.bf16.msra.mxu0 0
        %2724 = vmatprep.subr.bf16.mxu0 0
        %2725 = vmatpush1.bf16.msra.mxu0 0
        %2726 = vmatprep.subr.bf16.mxu0 0
        %2727 = vmatpush1.bf16.msra.mxu0 %v2710
        %2728 = vmatprep.subr.bf16.mxu0 0
        %2729 = vmatpush2.bf16.msra.mxu0 0
        %2730 = vmatprep.subr.bf16.mxu0 0
        %2731 = vmatpush2.bf16.msra.mxu0 0
        %2732 = vmatprep.subr.bf16.mxu0 0
        %2733 = vmatpush2.bf16.msra.mxu0 0
        %2734 = vmatprep.subr.bf16.mxu0 0
        %2735 = vmatpush2.bf16.msra.mxu0 0
        %2736 = vmatprep.subr.bf16.mxu0 0
        %2737 = vmatpush2.bf16.msra.mxu0 0
        %2738 = vmatprep.subr.bf16.mxu0 0
        %2739 = vmatpush2.bf16.msra.mxu0 0
        %2740 = vmatprep.subr.bf16.mxu0 0
        %2741 = vmatpush2.bf16.msra.mxu0 0
        %2742 = vmatprep.subr.bf16.mxu0 0
        %2743 = vmatpush2.bf16.msra.mxu0 0
        %2744 = vmatprep.mubr.bf16.mxu0 0
        %2745 = vmatmul.mubr.bf16.gmra.mxu0 %v2707
        %v2746 = vpop.f32.mrf.mxu0
        %v2747 = vadd.f32 0.0, %v2746
        %v2748 = vpop.f32.mrf.mxu0
        %v2749 = vpop.f32.mrf.mxu0
        %v2750 = vpop.f32.mrf.mxu0
        %2751 = vdwg.mxu0
        %s2752 = scalar_lea.vmem %s6, 20
        %v2753 = vld [vmem:[%s2752] sm:$0xf]
        %v2754 = vpack.c.bf16 %v2747, %v2747
        %v2756 = vsel %vm717, %v2754, 0
        %v2759 = vsel %vm780, %v2753, 0
        %2761 = vmatprep.subr.bf16.mxu0 0
        %2762 = vmatpush1.bf16.msra.mxu0 0
        %2763 = vmatprep.subr.bf16.mxu0 0
        %2764 = vmatpush1.bf16.msra.mxu0 0
        %2765 = vmatprep.subr.bf16.mxu0 0
        %2766 = vmatpush1.bf16.msra.mxu0 0
        %2767 = vmatprep.subr.bf16.mxu0 0
        %2768 = vmatpush1.bf16.msra.mxu0 0
        %2769 = vmatprep.subr.bf16.mxu0 0
        %2770 = vmatpush1.bf16.msra.mxu0 0
        %2771 = vmatprep.subr.bf16.mxu0 0
        %2772 = vmatpush1.bf16.msra.mxu0 0
        %2773 = vmatprep.subr.bf16.mxu0 0
        %2774 = vmatpush1.bf16.msra.mxu0 0
        %2775 = vmatprep.subr.bf16.mxu0 0
        %2776 = vmatpush1.bf16.msra.mxu0 %v2759
        %2777 = vmatprep.subr.bf16.mxu0 0
        %2778 = vmatpush2.bf16.msra.mxu0 0
        %2779 = vmatprep.subr.bf16.mxu0 0
        %2780 = vmatpush2.bf16.msra.mxu0 0
        %2781 = vmatprep.subr.bf16.mxu0 0
        %2782 = vmatpush2.bf16.msra.mxu0 0
        %2783 = vmatprep.subr.bf16.mxu0 0
        %2784 = vmatpush2.bf16.msra.mxu0 0
        %2785 = vmatprep.subr.bf16.mxu0 0
        %2786 = vmatpush2.bf16.msra.mxu0 0
        %2787 = vmatprep.subr.bf16.mxu0 0
        %2788 = vmatpush2.bf16.msra.mxu0 0
        %2789 = vmatprep.subr.bf16.mxu0 0
        %2790 = vmatpush2.bf16.msra.mxu0 0
        %2791 = vmatprep.subr.bf16.mxu0 0
        %2792 = vmatpush2.bf16.msra.mxu0 0
        %2793 = vmatprep.mubr.bf16.mxu0 0
        %2794 = vmatmul.mubr.bf16.gmra.mxu0 %v2756
        %v2795 = vpop.f32.mrf.mxu0
        %v2796 = vadd.f32 0.0, %v2795
        %v2797 = vpop.f32.mrf.mxu0
        %v2798 = vpop.f32.mrf.mxu0
        %v2799 = vpop.f32.mrf.mxu0
        %2800 = vdwg.mxu0
        %v2802 = vsel %vm717, %v2448, 0
        %v2805 = vsel %vm780, %v2447, 0
        %2807 = vmatprep.subr.bf16.mxu0 0
        %2808 = vmatpush1.bf16.msra.mxu0 0
        %2809 = vmatprep.subr.bf16.mxu0 0
        %2810 = vmatpush1.bf16.msra.mxu0 0
        %2811 = vmatprep.subr.bf16.mxu0 0
        %2812 = vmatpush1.bf16.msra.mxu0 0
        %2813 = vmatprep.subr.bf16.mxu0 0
        %2814 = vmatpush1.bf16.msra.mxu0 0
        %2815 = vmatprep.subr.bf16.mxu0 0
        %2816 = vmatpush1.bf16.msra.mxu0 0
        %2817 = vmatprep.subr.bf16.mxu0 0
        %2818 = vmatpush1.bf16.msra.mxu0 0
        %2819 = vmatprep.subr.bf16.mxu0 0
        %2820 = vmatpush1.bf16.msra.mxu0 0
        %2821 = vmatprep.subr.bf16.mxu0 0
        %2822 = vmatpush1.bf16.msra.mxu0 %v2805
        %2823 = vmatprep.subr.bf16.mxu0 0
        %2824 = vmatpush2.bf16.msra.mxu0 0
        %2825 = vmatprep.subr.bf16.mxu0 0
        %2826 = vmatpush2.bf16.msra.mxu0 0
        %2827 = vmatprep.subr.bf16.mxu0 0
        %2828 = vmatpush2.bf16.msra.mxu0 0
        %2829 = vmatprep.subr.bf16.mxu0 0
        %2830 = vmatpush2.bf16.msra.mxu0 0
        %2831 = vmatprep.subr.bf16.mxu0 0
        %2832 = vmatpush2.bf16.msra.mxu0 0
        %2833 = vmatprep.subr.bf16.mxu0 0
        %2834 = vmatpush2.bf16.msra.mxu0 0
        %2835 = vmatprep.subr.bf16.mxu0 0
        %2836 = vmatpush2.bf16.msra.mxu0 0
        %2837 = vmatprep.subr.bf16.mxu0 0
        %2838 = vmatpush2.bf16.msra.mxu0 0
        %2839 = vmatprep.mubr.bf16.mxu0 0
        %2840 = vmatmul.mubr.bf16.gmra.mxu0 %v2802
        %v2841 = vpop.f32.mrf.mxu0
        %v2842 = vadd.f32 %v2796, %v2841
        %v2843 = vpop.f32.mrf.mxu0
        %v2844 = vpop.f32.mrf.mxu0
        %v2845 = vpop.f32.mrf.mxu0
        %2846 = vdwg.mxu0
        %s2847 = scalar_lea.vmem %s4, 224
        %v2848 = vld [vmem:[%s2847] sm:$0xf]
        %v2849 = vld [vmem:[%s2847 + $0x4] sm:$0xf]
        %v2850 = vld [vmem:[%s2847 + $0x8] sm:$0xf]
        %v2851 = vld [vmem:[%s2847 + $0xc] sm:$0xf]
        %s2852 = scalar_lea.vmem %s5, 14
        %v2853 = vld [vmem:[%s2852] sm:$0x1]
        %v2855 = vlaneseq
        %v2856 = vshrl.u32 %v2855, 7
        %v2857 = vsub.s32 0, %v2856
        %v2858 = vrot.slane %v2853, %v2857
        %v2864 = vunpack.c.l.b16 %v2848
        %v2865 = vunpack.c.l.b16 %v2849
        %v2866 = vunpack.c.l.b16 %v2850
        %v2867 = vunpack.c.l.b16 %v2851
        %v2868 = vpack.c.b16 %v2865, %v2864
        %v2869 = vpack.c.b16 %v2867, %v2866
        %2872 = vmatprep.subr.bf16.mxu0 0
        %2873 = vmatpush1.bf16.msra.mxu0 0
        %2874 = vmatprep.subr.bf16.mxu0 0
        %2875 = vmatpush1.bf16.msra.mxu0 0
        %2876 = vmatprep.subr.bf16.mxu0 0
        %2877 = vmatpush1.bf16.msra.mxu0 0
        %2878 = vmatprep.subr.bf16.mxu0 0
        %2879 = vmatpush1.bf16.msra.mxu0 0
        %2880 = vmatprep.subr.bf16.mxu0 0
        %2881 = vmatpush1.bf16.msra.mxu0 0
        %2882 = vmatprep.subr.bf16.mxu0 0
        %2883 = vmatpush1.bf16.msra.mxu0 0
        %2884 = vmatprep.subr.bf16.mxu0 0
        %2885 = vmatpush1.bf16.msra.mxu0 %v2869
        %2886 = vmatprep.subr.bf16.mxu0 0
        %2887 = vmatpush1.bf16.msra.mxu0 %v2868
        %2888 = vmatprep.subr.bf16.mxu0 0
        %2889 = vmatpush2.bf16.msra.mxu0 0
        %2890 = vmatprep.subr.bf16.mxu0 0
        %2891 = vmatpush2.bf16.msra.mxu0 0
        %2892 = vmatprep.subr.bf16.mxu0 0
        %2893 = vmatpush2.bf16.msra.mxu0 0
        %2894 = vmatprep.subr.bf16.mxu0 0
        %2895 = vmatpush2.bf16.msra.mxu0 0
        %2896 = vmatprep.subr.bf16.mxu0 0
        %2897 = vmatpush2.bf16.msra.mxu0 0
        %2898 = vmatprep.subr.bf16.mxu0 0
        %2899 = vmatpush2.bf16.msra.mxu0 0
        %2900 = vmatprep.subr.bf16.mxu0 0
        %2901 = vmatpush2.bf16.msra.mxu0 0
        %2902 = vmatprep.subr.bf16.mxu0 0
        %2903 = vmatpush2.bf16.msra.mxu0 0
        %2904 = vmatprep.mubr.bf16.mxu0 0
        %2905 = vmatmul.mubr.bf16.gmra.mxu0 %v2166
        %v2906 = vpop.f32.mrf.mxu0
        %v2907 = vadd.f32 %v2858, %v2906
        %v2908 = vpop.f32.mrf.mxu0
        %v2909 = vpop.f32.mrf.mxu0
        %v2910 = vpop.f32.mrf.mxu0
        %2911 = vdwg.mxu0
        %s2912 = scalar_lea.vmem %s4, 288
        %v2913 = vld [vmem:[%s2912] sm:$0xf]
        %v2914 = vld [vmem:[%s2912 + $0x4] sm:$0xf]
        %v2915 = vld [vmem:[%s2912 + $0x8] sm:$0xf]
        %v2916 = vld [vmem:[%s2912 + $0xc] sm:$0xf]
        %s2917 = scalar_lea.vmem %s5, 18
        %v2918 = vld [vmem:[%s2917] sm:$0x1]
        %v2920 = vlaneseq
        %v2921 = vshrl.u32 %v2920, 7
        %v2922 = vsub.s32 0, %v2921
        %v2923 = vrot.slane %v2918, %v2922
        %v2929 = vunpack.c.l.b16 %v2913
        %v2930 = vunpack.c.l.b16 %v2914
        %v2931 = vunpack.c.l.b16 %v2915
        %v2932 = vunpack.c.l.b16 %v2916
        %v2933 = vpack.c.b16 %v2930, %v2929
        %v2934 = vpack.c.b16 %v2932, %v2931
        %2937 = vmatprep.subr.bf16.mxu0 0
        %2938 = vmatpush1.bf16.msra.mxu0 0
        %2939 = vmatprep.subr.bf16.mxu0 0
        %2940 = vmatpush1.bf16.msra.mxu0 0
        %2941 = vmatprep.subr.bf16.mxu0 0
        %2942 = vmatpush1.bf16.msra.mxu0 0
        %2943 = vmatprep.subr.bf16.mxu0 0
        %2944 = vmatpush1.bf16.msra.mxu0 0
        %2945 = vmatprep.subr.bf16.mxu0 0
        %2946 = vmatpush1.bf16.msra.mxu0 0
        %2947 = vmatprep.subr.bf16.mxu0 0
        %2948 = vmatpush1.bf16.msra.mxu0 0
        %2949 = vmatprep.subr.bf16.mxu0 0
        %2950 = vmatpush1.bf16.msra.mxu0 %v2934
        %2951 = vmatprep.subr.bf16.mxu0 0
        %2952 = vmatpush1.bf16.msra.mxu0 %v2933
        %2953 = vmatprep.subr.bf16.mxu0 0
        %2954 = vmatpush2.bf16.msra.mxu0 0
        %2955 = vmatprep.subr.bf16.mxu0 0
        %2956 = vmatpush2.bf16.msra.mxu0 0
        %2957 = vmatprep.subr.bf16.mxu0 0
        %2958 = vmatpush2.bf16.msra.mxu0 0
        %2959 = vmatprep.subr.bf16.mxu0 0
        %2960 = vmatpush2.bf16.msra.mxu0 0
        %2961 = vmatprep.subr.bf16.mxu0 0
        %2962 = vmatpush2.bf16.msra.mxu0 0
        %2963 = vmatprep.subr.bf16.mxu0 0
        %2964 = vmatpush2.bf16.msra.mxu0 0
        %2965 = vmatprep.subr.bf16.mxu0 0
        %2966 = vmatpush2.bf16.msra.mxu0 0
        %2967 = vmatprep.subr.bf16.mxu0 0
        %2968 = vmatpush2.bf16.msra.mxu0 0
        %2969 = vmatprep.mubr.bf16.mxu0 0
        %2970 = vmatmul.mubr.bf16.gmra.mxu0 %v2166
        %v2971 = vpop.f32.mrf.mxu0
        %v2972 = vadd.f32 %v2923, %v2971
        %v2973 = vpop.f32.mrf.mxu0
        %v2974 = vpop.f32.mrf.mxu0
        %v2975 = vpop.f32.mrf.mxu0
        %2976 = vdwg.mxu0
        %s2977 = scalar_lea.vmem %s4, 352
        %v2978 = vld [vmem:[%s2977] sm:$0xf]
        %v2979 = vld [vmem:[%s2977 + $0x4] sm:$0xf]
        %v2980 = vld [vmem:[%s2977 + $0x8] sm:$0xf]
        %v2981 = vld [vmem:[%s2977 + $0xc] sm:$0xf]
        %s2982 = scalar_lea.vmem %s5, 22
        %v2983 = vld [vmem:[%s2982] sm:$0x1]
        %v2985 = vlaneseq
        %v2986 = vshrl.u32 %v2985, 7
        %v2987 = vsub.s32 0, %v2986
        %v2988 = vrot.slane %v2983, %v2987
        %v2994 = vunpack.c.l.b16 %v2978
        %v2995 = vunpack.c.l.b16 %v2979
        %v2996 = vunpack.c.l.b16 %v2980
        %v2997 = vunpack.c.l.b16 %v2981
        %v2998 = vpack.c.b16 %v2995, %v2994
        %v2999 = vpack.c.b16 %v2997, %v2996
        %3002 = vmatprep.subr.bf16.mxu0 0
        %3003 = vmatpush1.bf16.msra.mxu0 0
        %3004 = vmatprep.subr.bf16.mxu0 0
        %3005 = vmatpush1.bf16.msra.mxu0 0
        %3006 = vmatprep.subr.bf16.mxu0 0
        %3007 = vmatpush1.bf16.msra.mxu0 0
        %3008 = vmatprep.subr.bf16.mxu0 0
        %3009 = vmatpush1.bf16.msra.mxu0 0
        %3010 = vmatprep.subr.bf16.mxu0 0
        %3011 = vmatpush1.bf16.msra.mxu0 0
        %3012 = vmatprep.subr.bf16.mxu0 0
        %3013 = vmatpush1.bf16.msra.mxu0 0
        %3014 = vmatprep.subr.bf16.mxu0 0
        %3015 = vmatpush1.bf16.msra.mxu0 %v2999
        %3016 = vmatprep.subr.bf16.mxu0 0
        %3017 = vmatpush1.bf16.msra.mxu0 %v2998
        %3018 = vmatprep.subr.bf16.mxu0 0
        %3019 = vmatpush2.bf16.msra.mxu0 0
        %3020 = vmatprep.subr.bf16.mxu0 0
        %3021 = vmatpush2.bf16.msra.mxu0 0
        %3022 = vmatprep.subr.bf16.mxu0 0
        %3023 = vmatpush2.bf16.msra.mxu0 0
        %3024 = vmatprep.subr.bf16.mxu0 0
        %3025 = vmatpush2.bf16.msra.mxu0 0
        %3026 = vmatprep.subr.bf16.mxu0 0
        %3027 = vmatpush2.bf16.msra.mxu0 0
        %3028 = vmatprep.subr.bf16.mxu0 0
        %3029 = vmatpush2.bf16.msra.mxu0 0
        %3030 = vmatprep.subr.bf16.mxu0 0
        %3031 = vmatpush2.bf16.msra.mxu0 0
        %3032 = vmatprep.subr.bf16.mxu0 0
        %3033 = vmatpush2.bf16.msra.mxu0 0
        %3034 = vmatprep.mubr.bf16.mxu0 0
        %3035 = vmatmul.mubr.bf16.gmra.mxu0 %v2166
        %v3036 = vpop.f32.mrf.mxu0
        %v3037 = vadd.f32 %v2988, %v3036
        %v3038 = vpop.f32.mrf.mxu0
        %v3039 = vpop.f32.mrf.mxu0
        %v3040 = vpop.f32.mrf.mxu0
        %3041 = vdwg.mxu0
        %v3042 = vmul.f32 %v2907, 0.35355338
        %v3043 = vpack.c.bf16 %v3042, %v3042
        %v3044 = vpack.c.bf16 %v2972, %v2972
        %v3046 = vsel %vm717, %v3043, 0
        %v3049 = vsel %vm717, %v3044, 0
        %3051 = vmatprep.subr.bf16.mxu0 0
        %3052 = vmatpush1.bf16.xpose.msra.mxu0 0
        %3053 = vmatprep.subr.bf16.mxu0 0
        %3054 = vmatpush1.bf16.xpose.msra.mxu0 0
        %3055 = vmatprep.subr.bf16.mxu0 0
        %3056 = vmatpush1.bf16.xpose.msra.mxu0 0
        %3057 = vmatprep.subr.bf16.mxu0 0
        %3058 = vmatpush1.bf16.xpose.msra.mxu0 0
        %3059 = vmatprep.subr.bf16.mxu0 0
        %3060 = vmatpush1.bf16.xpose.msra.mxu0 0
        %3061 = vmatprep.subr.bf16.mxu0 0
        %3062 = vmatpush1.bf16.xpose.msra.mxu0 0
        %3063 = vmatprep.subr.bf16.mxu0 0
        %3064 = vmatpush1.bf16.xpose.msra.mxu0 0
        %3065 = vmatprep.subr.bf16.mxu0 0
        %3066 = vmatpush1.bf16.xpose.msra.mxu0 %v3049
        %3067 = vmatprep.subr.bf16.mxu0 0
        %3068 = vmatpush2.bf16.xpose.msra.mxu0 0
        %3069 = vmatprep.subr.bf16.mxu0 0
        %3070 = vmatpush2.bf16.xpose.msra.mxu0 0
        %3071 = vmatprep.subr.bf16.mxu0 0
        %3072 = vmatpush2.bf16.xpose.msra.mxu0 0
        %3073 = vmatprep.subr.bf16.mxu0 0
        %3074 = vmatpush2.bf16.xpose.msra.mxu0 0
        %3075 = vmatprep.subr.bf16.mxu0 0
        %3076 = vmatpush2.bf16.xpose.msra.mxu0 0
        %3077 = vmatprep.subr.bf16.mxu0 0
        %3078 = vmatpush2.bf16.xpose.msra.mxu0 0
        %3079 = vmatprep.subr.bf16.mxu0 0
        %3080 = vmatpush2.bf16.xpose.msra.mxu0 0
        %3081 = vmatprep.subr.bf16.mxu0 0
        %3082 = vmatpush2.bf16.xpose.msra.mxu0 0
        %3083 = vmatprep.mubr.bf16.mxu0 0
        %3084 = vmatmul.mubr.bf16.gmra.mxu0 %v3046
        %v3085 = vpop.f32.mrf.mxu0
        %v3086 = vadd.f32 %v715, %v3085
        %v3087 = vpop.f32.mrf.mxu0
        %v3088 = vpop.f32.mrf.mxu0
        %v3089 = vpop.f32.mrf.mxu0
        %3090 = vdwg.mxu0
        %v3091 = vsel %vm717, %v3086, -inf
        %3092 = vmax.xlane.f32.xlu0 %v3091
        %v3093 = vpop.xlane.xlu0 %3092
        %v3094 = vsub.f32 %v3086, %v3093
        %v3095 = vmul.f32 %v3094, 1.442695
        %v3096 = vpow.pop %v3095
        %v3097 = vsel %vm717, %v3096, 0.0
        %3098 = vadd.xlane.f32.xlu0 %v3097
        %v3099 = vpop.xlane.xlu0 %3098
        %v3100 = vrcp.pop %v3099
        %v3101 = vmul.f32 %v3096, %v3100
        %v3102 = vpack.c.bf16 %v3101, %v3101
        %v3103 = vpack.c.bf16 %v3037, %v3037
        %v3105 = vsel %vm717, %v3102, 0
        %v3108 = vsel %vm780, %v3103, 0
        %3110 = vmatprep.subr.bf16.mxu0 0
        %3111 = vmatpush1.bf16.msra.mxu0 0
        %3112 = vmatprep.subr.bf16.mxu0 0
        %3113 = vmatpush1.bf16.msra.mxu0 0
        %3114 = vmatprep.subr.bf16.mxu0 0
        %3115 = vmatpush1.bf16.msra.mxu0 0
        %3116 = vmatprep.subr.bf16.mxu0 0
        %3117 = vmatpush1.bf16.msra.mxu0 0
        %3118 = vmatprep.subr.bf16.mxu0 0
        %3119 = vmatpush1.bf16.msra.mxu0 0
        %3120 = vmatprep.subr.bf16.mxu0 0
        %3121 = vmatpush1.bf16.msra.mxu0 0
        %3122 = vmatprep.subr.bf16.mxu0 0
        %3123 = vmatpush1.bf16.msra.mxu0 0
        %3124 = vmatprep.subr.bf16.mxu0 0
        %3125 = vmatpush1.bf16.msra.mxu0 %v3108
        %3126 = vmatprep.subr.bf16.mxu0 0
        %3127 = vmatpush2.bf16.msra.mxu0 0
        %3128 = vmatprep.subr.bf16.mxu0 0
        %3129 = vmatpush2.bf16.msra.mxu0 0
        %3130 = vmatprep.subr.bf16.mxu0 0
        %3131 = vmatpush2.bf16.msra.mxu0 0
        %3132 = vmatprep.subr.bf16.mxu0 0
        %3133 = vmatpush2.bf16.msra.mxu0 0
        %3134 = vmatprep.subr.bf16.mxu0 0
        %3135 = vmatpush2.bf16.msra.mxu0 0
        %3136 = vmatprep.subr.bf16.mxu0 0
        %3137 = vmatpush2.bf16.msra.mxu0 0
        %3138 = vmatprep.subr.bf16.mxu0 0
        %3139 = vmatpush2.bf16.msra.mxu0 0
        %3140 = vmatprep.subr.bf16.mxu0 0
        %3141 = vmatpush2.bf16.msra.mxu0 0
        %3142 = vmatprep.mubr.bf16.mxu0 0
        %3143 = vmatmul.mubr.bf16.gmra.mxu0 %v3105
        %v3144 = vpop.f32.mrf.mxu0
        %v3145 = vadd.f32 0.0, %v3144
        %v3146 = vpop.f32.mrf.mxu0
        %v3147 = vpop.f32.mrf.mxu0
        %v3148 = vpop.f32.mrf.mxu0
        %3149 = vdwg.mxu0
        %s3150 = scalar_lea.vmem %s6, 24
        %v3151 = vld [vmem:[%s3150] sm:$0xf]
        %v3152 = vpack.c.bf16 %v3145, %v3145
        %v3154 = vsel %vm717, %v3152, 0
        %v3157 = vsel %vm780, %v3151, 0
        %3159 = vmatprep.subr.bf16.mxu0 0
        %3160 = vmatpush1.bf16.msra.mxu0 0
        %3161 = vmatprep.subr.bf16.mxu0 0
        %3162 = vmatpush1.bf16.msra.mxu0 0
        %3163 = vmatprep.subr.bf16.mxu0 0
        %3164 = vmatpush1.bf16.msra.mxu0 0
        %3165 = vmatprep.subr.bf16.mxu0 0
        %3166 = vmatpush1.bf16.msra.mxu0 0
        %3167 = vmatprep.subr.bf16.mxu0 0
        %3168 = vmatpush1.bf16.msra.mxu0 0
        %3169 = vmatprep.subr.bf16.mxu0 0
        %3170 = vmatpush1.bf16.msra.mxu0 0
        %3171 = vmatprep.subr.bf16.mxu0 0
        %3172 = vmatpush1.bf16.msra.mxu0 0
        %3173 = vmatprep.subr.bf16.mxu0 0
        %3174 = vmatpush1.bf16.msra.mxu0 %v3157
        %3175 = vmatprep.subr.bf16.mxu0 0
        %3176 = vmatpush2.bf16.msra.mxu0 0
        %3177 = vmatprep.subr.bf16.mxu0 0
        %3178 = vmatpush2.bf16.msra.mxu0 0
        %3179 = vmatprep.subr.bf16.mxu0 0
        %3180 = vmatpush2.bf16.msra.mxu0 0
        %3181 = vmatprep.subr.bf16.mxu0 0
        %3182 = vmatpush2.bf16.msra.mxu0 0
        %3183 = vmatprep.subr.bf16.mxu0 0
        %3184 = vmatpush2.bf16.msra.mxu0 0
        %3185 = vmatprep.subr.bf16.mxu0 0
        %3186 = vmatpush2.bf16.msra.mxu0 0
        %3187 = vmatprep.subr.bf16.mxu0 0
        %3188 = vmatpush2.bf16.msra.mxu0 0
        %3189 = vmatprep.subr.bf16.mxu0 0
        %3190 = vmatpush2.bf16.msra.mxu0 0
        %3191 = vmatprep.mubr.bf16.mxu0 0
        %3192 = vmatmul.mubr.bf16.gmra.mxu0 %v3154
        %v3193 = vpop.f32.mrf.mxu0
        %v3194 = vadd.f32 0.0, %v3193
        %v3195 = vpop.f32.mrf.mxu0
        %v3196 = vpop.f32.mrf.mxu0
        %v3197 = vpop.f32.mrf.mxu0
        %3198 = vdwg.mxu0
        %v3199 = vadd.f32 %v2842, %v3194
        %s3200 = scalar_lea.vmem %s4, 240
        %v3201 = vld [vmem:[%s3200] sm:$0xf]
        %v3202 = vld [vmem:[%s3200 + $0x4] sm:$0xf]
        %v3203 = vld [vmem:[%s3200 + $0x8] sm:$0xf]
        %v3204 = vld [vmem:[%s3200 + $0xc] sm:$0xf]
        %s3205 = scalar_lea.vmem %s5, 15
        %v3206 = vld [vmem:[%s3205] sm:$0x1]
        %v3208 = vlaneseq
        %v3209 = vshrl.u32 %v3208, 7
        %v3210 = vsub.s32 0, %v3209
        %v3211 = vrot.slane %v3206, %v3210
        %v3217 = vunpack.c.l.b16 %v3201
        %v3218 = vunpack.c.l.b16 %v3202
        %v3219 = vunpack.c.l.b16 %v3203
        %v3220 = vunpack.c.l.b16 %v3204
        %v3221 = vpack.c.b16 %v3218, %v3217
        %v3222 = vpack.c.b16 %v3220, %v3219
        %3225 = vmatprep.subr.bf16.mxu0 0
        %3226 = vmatpush1.bf16.msra.mxu0 0
        %3227 = vmatprep.subr.bf16.mxu0 0
        %3228 = vmatpush1.bf16.msra.mxu0 0
        %3229 = vmatprep.subr.bf16.mxu0 0
        %3230 = vmatpush1.bf16.msra.mxu0 0
        %3231 = vmatprep.subr.bf16.mxu0 0
        %3232 = vmatpush1.bf16.msra.mxu0 0
        %3233 = vmatprep.subr.bf16.mxu0 0
        %3234 = vmatpush1.bf16.msra.mxu0 0
        %3235 = vmatprep.subr.bf16.mxu0 0
        %3236 = vmatpush1.bf16.msra.mxu0 0
        %3237 = vmatprep.subr.bf16.mxu0 0
        %3238 = vmatpush1.bf16.msra.mxu0 %v3222
        %3239 = vmatprep.subr.bf16.mxu0 0
        %3240 = vmatpush1.bf16.msra.mxu0 %v3221
        %3241 = vmatprep.subr.bf16.mxu0 0
        %3242 = vmatpush2.bf16.msra.mxu0 0
        %3243 = vmatprep.subr.bf16.mxu0 0
        %3244 = vmatpush2.bf16.msra.mxu0 0
        %3245 = vmatprep.subr.bf16.mxu0 0
        %3246 = vmatpush2.bf16.msra.mxu0 0
        %3247 = vmatprep.subr.bf16.mxu0 0
        %3248 = vmatpush2.bf16.msra.mxu0 0
        %3249 = vmatprep.subr.bf16.mxu0 0
        %3250 = vmatpush2.bf16.msra.mxu0 0
        %3251 = vmatprep.subr.bf16.mxu0 0
        %3252 = vmatpush2.bf16.msra.mxu0 0
        %3253 = vmatprep.subr.bf16.mxu0 0
        %3254 = vmatpush2.bf16.msra.mxu0 0
        %3255 = vmatprep.subr.bf16.mxu0 0
        %3256 = vmatpush2.bf16.msra.mxu0 0
        %3257 = vmatprep.mubr.bf16.mxu0 0
        %3258 = vmatmul.mubr.bf16.gmra.mxu0 %v2166
        %v3259 = vpop.f32.mrf.mxu0
        %v3260 = vadd.f32 %v3211, %v3259
        %v3261 = vpop.f32.mrf.mxu0
        %v3262 = vpop.f32.mrf.mxu0
        %v3263 = vpop.f32.mrf.mxu0
        %3264 = vdwg.mxu0
        %s3265 = scalar_lea.vmem %s4, 304
        %v3266 = vld [vmem:[%s3265] sm:$0xf]
        %v3267 = vld [vmem:[%s3265 + $0x4] sm:$0xf]
        %v3268 = vld [vmem:[%s3265 + $0x8] sm:$0xf]
        %v3269 = vld [vmem:[%s3265 + $0xc] sm:$0xf]
        %s3270 = scalar_lea.vmem %s5, 19
        %v3271 = vld [vmem:[%s3270] sm:$0x1]
        %v3273 = vlaneseq
        %v3274 = vshrl.u32 %v3273, 7
        %v3275 = vsub.s32 0, %v3274
        %v3276 = vrot.slane %v3271, %v3275
        %v3282 = vunpack.c.l.b16 %v3266
        %v3283 = vunpack.c.l.b16 %v3267
        %v3284 = vunpack.c.l.b16 %v3268
        %v3285 = vunpack.c.l.b16 %v3269
        %v3286 = vpack.c.b16 %v3283, %v3282
        %v3287 = vpack.c.b16 %v3285, %v3284
        %3290 = vmatprep.subr.bf16.mxu0 0
        %3291 = vmatpush1.bf16.msra.mxu0 0
        %3292 = vmatprep.subr.bf16.mxu0 0
        %3293 = vmatpush1.bf16.msra.mxu0 0
        %3294 = vmatprep.subr.bf16.mxu0 0
        %3295 = vmatpush1.bf16.msra.mxu0 0
        %3296 = vmatprep.subr.bf16.mxu0 0
        %3297 = vmatpush1.bf16.msra.mxu0 0
        %3298 = vmatprep.subr.bf16.mxu0 0
        %3299 = vmatpush1.bf16.msra.mxu0 0
        %3300 = vmatprep.subr.bf16.mxu0 0
        %3301 = vmatpush1.bf16.msra.mxu0 0
        %3302 = vmatprep.subr.bf16.mxu0 0
        %3303 = vmatpush1.bf16.msra.mxu0 %v3287
        %3304 = vmatprep.subr.bf16.mxu0 0
        %3305 = vmatpush1.bf16.msra.mxu0 %v3286
        %3306 = vmatprep.subr.bf16.mxu0 0
        %3307 = vmatpush2.bf16.msra.mxu0 0
        %3308 = vmatprep.subr.bf16.mxu0 0
        %3309 = vmatpush2.bf16.msra.mxu0 0
        %3310 = vmatprep.subr.bf16.mxu0 0
        %3311 = vmatpush2.bf16.msra.mxu0 0
        %3312 = vmatprep.subr.bf16.mxu0 0
        %3313 = vmatpush2.bf16.msra.mxu0 0
        %3314 = vmatprep.subr.bf16.mxu0 0
        %3315 = vmatpush2.bf16.msra.mxu0 0
        %3316 = vmatprep.subr.bf16.mxu0 0
        %3317 = vmatpush2.bf16.msra.mxu0 0
        %3318 = vmatprep.subr.bf16.mxu0 0
        %3319 = vmatpush2.bf16.msra.mxu0 0
        %3320 = vmatprep.subr.bf16.mxu0 0
        %3321 = vmatpush2.bf16.msra.mxu0 0
        %3322 = vmatprep.mubr.bf16.mxu0 0
        %3323 = vmatmul.mubr.bf16.gmra.mxu0 %v2166
        %v3324 = vpop.f32.mrf.mxu0
        %v3325 = vadd.f32 %v3276, %v3324
        %v3326 = vpop.f32.mrf.mxu0
        %v3327 = vpop.f32.mrf.mxu0
        %v3328 = vpop.f32.mrf.mxu0
        %3329 = vdwg.mxu0
        %s3330 = scalar_lea.vmem %s4, 368
        %v3331 = vld [vmem:[%s3330] sm:$0xf]
        %v3332 = vld [vmem:[%s3330 + $0x4] sm:$0xf]
        %v3333 = vld [vmem:[%s3330 + $0x8] sm:$0xf]
        %v3334 = vld [vmem:[%s3330 + $0xc] sm:$0xf]
        %s3335 = scalar_lea.vmem %s5, 23
        %v3336 = vld [vmem:[%s3335] sm:$0x1]
        %v3338 = vlaneseq
        %v3339 = vshrl.u32 %v3338, 7
        %v3340 = vsub.s32 0, %v3339
        %v3341 = vrot.slane %v3336, %v3340
        %v3347 = vunpack.c.l.b16 %v3331
        %v3348 = vunpack.c.l.b16 %v3332
        %v3349 = vunpack.c.l.b16 %v3333
        %v3350 = vunpack.c.l.b16 %v3334
        %v3351 = vpack.c.b16 %v3348, %v3347
        %v3352 = vpack.c.b16 %v3350, %v3349
        %3355 = vmatprep.subr.bf16.mxu0 0
        %3356 = vmatpush1.bf16.msra.mxu0 0
        %3357 = vmatprep.subr.bf16.mxu0 0
        %3358 = vmatpush1.bf16.msra.mxu0 0
        %3359 = vmatprep.subr.bf16.mxu0 0
        %3360 = vmatpush1.bf16.msra.mxu0 0
        %3361 = vmatprep.subr.bf16.mxu0 0
        %3362 = vmatpush1.bf16.msra.mxu0 0
        %3363 = vmatprep.subr.bf16.mxu0 0
        %3364 = vmatpush1.bf16.msra.mxu0 0
        %3365 = vmatprep.subr.bf16.mxu0 0
        %3366 = vmatpush1.bf16.msra.mxu0 0
        %3367 = vmatprep.subr.bf16.mxu0 0
        %3368 = vmatpush1.bf16.msra.mxu0 %v3352
        %3369 = vmatprep.subr.bf16.mxu0 0
        %3370 = vmatpush1.bf16.msra.mxu0 %v3351
        %3371 = vmatprep.subr.bf16.mxu0 0
        %3372 = vmatpush2.bf16.msra.mxu0 0
        %3373 = vmatprep.subr.bf16.mxu0 0
        %3374 = vmatpush2.bf16.msra.mxu0 0
        %3375 = vmatprep.subr.bf16.mxu0 0
        %3376 = vmatpush2.bf16.msra.mxu0 0
        %3377 = vmatprep.subr.bf16.mxu0 0
        %3378 = vmatpush2.bf16.msra.mxu0 0
        %3379 = vmatprep.subr.bf16.mxu0 0
        %3380 = vmatpush2.bf16.msra.mxu0 0
        %3381 = vmatprep.subr.bf16.mxu0 0
        %3382 = vmatpush2.bf16.msra.mxu0 0
        %3383 = vmatprep.subr.bf16.mxu0 0
        %3384 = vmatpush2.bf16.msra.mxu0 0
        %3385 = vmatprep.subr.bf16.mxu0 0
        %3386 = vmatpush2.bf16.msra.mxu0 0
        %3387 = vmatprep.mubr.bf16.mxu0 0
        %3388 = vmatmul.mubr.bf16.gmra.mxu0 %v2166
        %v3389 = vpop.f32.mrf.mxu0
        %v3390 = vadd.f32 %v3341, %v3389
        %v3391 = vpop.f32.mrf.mxu0
        %v3392 = vpop.f32.mrf.mxu0
        %v3393 = vpop.f32.mrf.mxu0
        %3394 = vdwg.mxu0
        %v3395 = vmul.f32 %v3260, 0.35355338
        %v3396 = vpack.c.bf16 %v3395, %v3395
        %v3397 = vpack.c.bf16 %v3325, %v3325
        %v3399 = vsel %vm717, %v3396, 0
        %v3402 = vsel %vm717, %v3397, 0
        %3404 = vmatprep.subr.bf16.mxu0 0
        %3405 = vmatpush1.bf16.xpose.msra.mxu0 0
        %3406 = vmatprep.subr.bf16.mxu0 0
        %3407 = vmatpush1.bf16.xpose.msra.mxu0 0
        %3408 = vmatprep.subr.bf16.mxu0 0
        %3409 = vmatpush1.bf16.xpose.msra.mxu0 0
        %3410 = vmatprep.subr.bf16.mxu0 0
        %3411 = vmatpush1.bf16.xpose.msra.mxu0 0
        %3412 = vmatprep.subr.bf16.mxu0 0
        %3413 = vmatpush1.bf16.xpose.msra.mxu0 0
        %3414 = vmatprep.subr.bf16.mxu0 0
        %3415 = vmatpush1.bf16.xpose.msra.mxu0 0
        %3416 = vmatprep.subr.bf16.mxu0 0
        %3417 = vmatpush1.bf16.xpose.msra.mxu0 0
        %3418 = vmatprep.subr.bf16.mxu0 0
        %3419 = vmatpush1.bf16.xpose.msra.mxu0 %v3402
        %3420 = vmatprep.subr.bf16.mxu0 0
        %3421 = vmatpush2.bf16.xpose.msra.mxu0 0
        %3422 = vmatprep.subr.bf16.mxu0 0
        %3423 = vmatpush2.bf16.xpose.msra.mxu0 0
        %3424 = vmatprep.subr.bf16.mxu0 0
        %3425 = vmatpush2.bf16.xpose.msra.mxu0 0
        %3426 = vmatprep.subr.bf16.mxu0 0
        %3427 = vmatpush2.bf16.xpose.msra.mxu0 0
        %3428 = vmatprep.subr.bf16.mxu0 0
        %3429 = vmatpush2.bf16.xpose.msra.mxu0 0
        %3430 = vmatprep.subr.bf16.mxu0 0
        %3431 = vmatpush2.bf16.xpose.msra.mxu0 0
        %3432 = vmatprep.subr.bf16.mxu0 0
        %3433 = vmatpush2.bf16.xpose.msra.mxu0 0
        %3434 = vmatprep.subr.bf16.mxu0 0
        %3435 = vmatpush2.bf16.xpose.msra.mxu0 0
        %3436 = vmatprep.mubr.bf16.mxu0 0
        %3437 = vmatmul.mubr.bf16.gmra.mxu0 %v3399
        %v3438 = vpop.f32.mrf.mxu0
        %v3439 = vadd.f32 %v715, %v3438
        %v3440 = vpop.f32.mrf.mxu0
        %v3441 = vpop.f32.mrf.mxu0
        %v3442 = vpop.f32.mrf.mxu0
        %3443 = vdwg.mxu0
        %v3444 = vsel %vm717, %v3439, -inf
        %3445 = vmax.xlane.f32.xlu0 %v3444
        %v3446 = vpop.xlane.xlu0 %3445
        %v3447 = vsub.f32 %v3439, %v3446
        %v3448 = vmul.f32 %v3447, 1.442695
        %v3449 = vpow.pop %v3448
        %v3450 = vsel %vm717, %v3449, 0.0
        %3451 = vadd.xlane.f32.xlu0 %v3450
        %v3452 = vpop.xlane.xlu0 %3451
        %v3453 = vrcp.pop %v3452
        %v3454 = vmul.f32 %v3449, %v3453
        %v3455 = vpack.c.bf16 %v3454, %v3454
        %v3456 = vpack.c.bf16 %v3390, %v3390
        %v3458 = vsel %vm717, %v3455, 0
        %v3461 = vsel %vm780, %v3456, 0
        %3463 = vmatprep.subr.bf16.mxu0 0
        %3464 = vmatpush1.bf16.msra.mxu0 0
        %3465 = vmatprep.subr.bf16.mxu0 0
        %3466 = vmatpush1.bf16.msra.mxu0 0
        %3467 = vmatprep.subr.bf16.mxu0 0
        %3468 = vmatpush1.bf16.msra.mxu0 0
        %3469 = vmatprep.subr.bf16.mxu0 0
        %3470 = vmatpush1.bf16.msra.mxu0 0
        %3471 = vmatprep.subr.bf16.mxu0 0
        %3472 = vmatpush1.bf16.msra.mxu0 0
        %3473 = vmatprep.subr.bf16.mxu0 0
        %3474 = vmatpush1.bf16.msra.mxu0 0
        %3475 = vmatprep.subr.bf16.mxu0 0
        %3476 = vmatpush1.bf16.msra.mxu0 0
        %3477 = vmatprep.subr.bf16.mxu0 0
        %3478 = vmatpush1.bf16.msra.mxu0 %v3461
        %3479 = vmatprep.subr.bf16.mxu0 0
        %3480 = vmatpush2.bf16.msra.mxu0 0
        %3481 = vmatprep.subr.bf16.mxu0 0
        %3482 = vmatpush2.bf16.msra.mxu0 0
        %3483 = vmatprep.subr.bf16.mxu0 0
        %3484 = vmatpush2.bf16.msra.mxu0 0
        %3485 = vmatprep.subr.bf16.mxu0 0
        %3486 = vmatpush2.bf16.msra.mxu0 0
        %3487 = vmatprep.subr.bf16.mxu0 0
        %3488 = vmatpush2.bf16.msra.mxu0 0
        %3489 = vmatprep.subr.bf16.mxu0 0
        %3490 = vmatpush2.bf16.msra.mxu0 0
        %3491 = vmatprep.subr.bf16.mxu0 0
        %3492 = vmatpush2.bf16.msra.mxu0 0
        %3493 = vmatprep.subr.bf16.mxu0 0
        %3494 = vmatpush2.bf16.msra.mxu0 0
        %3495 = vmatprep.mubr.bf16.mxu0 0
        %3496 = vmatmul.mubr.bf16.gmra.mxu0 %v3458
        %v3497 = vpop.f32.mrf.mxu0
        %v3498 = vadd.f32 0.0, %v3497
        %v3499 = vpop.f32.mrf.mxu0
        %v3500 = vpop.f32.mrf.mxu0
        %v3501 = vpop.f32.mrf.mxu0
        %3502 = vdwg.mxu0
        %s3503 = scalar_lea.vmem %s6, 28
        %v3504 = vld [vmem:[%s3503] sm:$0xf]
        %v3505 = vpack.c.bf16 %v3498, %v3498
        %v3507 = vsel %vm717, %v3505, 0
        %v3510 = vsel %vm780, %v3504, 0
        %3512 = vmatprep.subr.bf16.mxu0 0
        %3513 = vmatpush1.bf16.msra.mxu0 0
        %3514 = vmatprep.subr.bf16.mxu0 0
        %3515 = vmatpush1.bf16.msra.mxu0 0
        %3516 = vmatprep.subr.bf16.mxu0 0
        %3517 = vmatpush1.bf16.msra.mxu0 0
        %3518 = vmatprep.subr.bf16.mxu0 0
        %3519 = vmatpush1.bf16.msra.mxu0 0
        %3520 = vmatprep.subr.bf16.mxu0 0
        %3521 = vmatpush1.bf16.msra.mxu0 0
        %3522 = vmatprep.subr.bf16.mxu0 0
        %3523 = vmatpush1.bf16.msra.mxu0 0
        %3524 = vmatprep.subr.bf16.mxu0 0
        %3525 = vmatpush1.bf16.msra.mxu0 0
        %3526 = vmatprep.subr.bf16.mxu0 0
        %3527 = vmatpush1.bf16.msra.mxu0 %v3510
        %3528 = vmatprep.subr.bf16.mxu0 0
        %3529 = vmatpush2.bf16.msra.mxu0 0
        %3530 = vmatprep.subr.bf16.mxu0 0
        %3531 = vmatpush2.bf16.msra.mxu0 0
        %3532 = vmatprep.subr.bf16.mxu0 0
        %3533 = vmatpush2.bf16.msra.mxu0 0
        %3534 = vmatprep.subr.bf16.mxu0 0
        %3535 = vmatpush2.bf16.msra.mxu0 0
        %3536 = vmatprep.subr.bf16.mxu0 0
        %3537 = vmatpush2.bf16.msra.mxu0 0
        %3538 = vmatprep.subr.bf16.mxu0 0
        %3539 = vmatpush2.bf16.msra.mxu0 0
        %3540 = vmatprep.subr.bf16.mxu0 0
        %3541 = vmatpush2.bf16.msra.mxu0 0
        %3542 = vmatprep.subr.bf16.mxu0 0
        %3543 = vmatpush2.bf16.msra.mxu0 0
        %3544 = vmatprep.mubr.bf16.mxu0 0
        %3545 = vmatmul.mubr.bf16.gmra.mxu0 %v3507
        %v3546 = vpop.f32.mrf.mxu0
        %v3547 = vadd.f32 0.0, %v3546
        %v3548 = vpop.f32.mrf.mxu0
        %v3549 = vpop.f32.mrf.mxu0
        %v3550 = vpop.f32.mrf.mxu0
        %3551 = vdwg.mxu0
        %v3552 = vadd.f32 %v3199, %v3547
        %v3553 = vlaneseq
        %v3554 = vshrl.u32 %v3553, 7
        %v3555 = vsub.s32 0, %v3554
        %v3556 = vrot.slane %v2138, %v3555
        %v3557 = vadd.f32 %v3552, %v3556
        %v3558 = vadd.f32 %v3557, %v2136
        %v3559 = vsel %vm485, %v3558, 0.0
        %3560 = vadd.xlane.f32.xlu0 %v3559
        %v3561 = vpop.xlane.xlu0 %3560
        %v3562 = vmul.f32 %v3561, %v489
        %v3563 = vsub.f32 %v3558, %v3562
        %v3564 = vmul.f32 %v3563, %v3563
        %v3565 = vsel %vm485, %v3564, 0.0
        %3566 = vadd.xlane.f32.xlu0 %v3565
        %v3567 = vpop.xlane.xlu0 %3566
        %v3568 = vmul.f32 %v3567, %v489
        %v3569 = vadd.f32 %v3568, 1e-12
        %v3570 = vrsqrt.pop %v3569
        %v3571 = vmul.f32 %v3563, %v3570
        %v3572 = vlaneseq
        %v3573 = vshrl.u32 %v3572, 7
        %v3574 = vsub.s32 1, %v3573
        %v3575 = vrot.slane %v2138, %v3574
        %v3576 = vmul.f32 %v3571, %v3575
        %v3577 = vlaneseq
        %v3578 = vshrl.u32 %v3577, 7
        %v3579 = vsub.s32 2, %v3578
        %v3580 = vrot.slane %v2138, %v3579
        %v3581 = vadd.f32 %v3576, %v3580
        %s3582 = scalar_lea.vmem %s7, 16
        %v3583 = vld [vmem:[%s3582] sm:$0xf]
        %v3584 = vld [vmem:[%s3582 + $0x4] sm:$0xf]
        %v3585 = vld [vmem:[%s3582 + $0x8] sm:$0xf]
        %v3586 = vld [vmem:[%s3582 + $0xc] sm:$0xf]
        %v3587 = vpack.c.bf16 %v3581, %v3581
        %v3588 = vlaneseq
        %v3589 = vshrl.u32 %v3588, 7
        %v3590 = vsub.s32 3, %v3589
        %v3591 = vrot.slane %v2138, %v3590
        %v3596 = vunpack.c.l.b16 %v3583
        %v3597 = vunpack.c.l.b16 %v3584
        %v3598 = vunpack.c.l.b16 %v3585
        %v3599 = vunpack.c.l.b16 %v3586
        %v3600 = vpack.c.b16 %v3597, %v3596
        %v3601 = vpack.c.b16 %v3599, %v3598
        %v3605 = vsel %vm485, %v3587, 0
        %3607 = vmatprep.subr.bf16.mxu0 0
        %3608 = vmatpush1.bf16.msra.mxu0 0
        %3609 = vmatprep.subr.bf16.mxu0 0
        %3610 = vmatpush1.bf16.msra.mxu0 0
        %3611 = vmatprep.subr.bf16.mxu0 0
        %3612 = vmatpush1.bf16.msra.mxu0 0
        %3613 = vmatprep.subr.bf16.mxu0 0
        %3614 = vmatpush1.bf16.msra.mxu0 0
        %3615 = vmatprep.subr.bf16.mxu0 0
        %3616 = vmatpush1.bf16.msra.mxu0 0
        %3617 = vmatprep.subr.bf16.mxu0 0
        %3618 = vmatpush1.bf16.msra.mxu0 0
        %3619 = vmatprep.subr.bf16.mxu0 0
        %3620 = vmatpush1.bf16.msra.mxu0 %v3601
        %3621 = vmatprep.subr.bf16.mxu0 0
        %3622 = vmatpush1.bf16.msra.mxu0 %v3600
        %3623 = vmatprep.subr.bf16.mxu0 0
        %3624 = vmatpush2.bf16.msra.mxu0 0
        %3625 = vmatprep.subr.bf16.mxu0 0
        %3626 = vmatpush2.bf16.msra.mxu0 0
        %3627 = vmatprep.subr.bf16.mxu0 0
        %3628 = vmatpush2.bf16.msra.mxu0 0
        %3629 = vmatprep.subr.bf16.mxu0 0
        %3630 = vmatpush2.bf16.msra.mxu0 0
        %3631 = vmatprep.subr.bf16.mxu0 0
        %3632 = vmatpush2.bf16.msra.mxu0 0
        %3633 = vmatprep.subr.bf16.mxu0 0
        %3634 = vmatpush2.bf16.msra.mxu0 0
        %3635 = vmatprep.subr.bf16.mxu0 0
        %3636 = vmatpush2.bf16.msra.mxu0 0
        %3637 = vmatprep.subr.bf16.mxu0 0
        %3638 = vmatpush2.bf16.msra.mxu0 0
        %3639 = vmatprep.mubr.bf16.mxu0 0
        %3640 = vmatmul.mubr.bf16.gmra.mxu0 %v3605
        %v3641 = vpop.f32.mrf.mxu0
        %v3642 = vadd.f32 %v3591, %v3641
        %v3643 = vpop.f32.mrf.mxu0
        %v3644 = vpop.f32.mrf.mxu0
        %v3645 = vpop.f32.mrf.mxu0
        %3646 = vdwg.mxu0
        %v3647 = vmul.f32 %v3642, 0.5
        %v3648 = vmul.f32 %v3642, 0.044715
        %v3649 = vmul.f32 %v3648, %v3642
        %v3650 = vmul.f32 %v3649, %v3642
        %v3651 = vadd.f32 %v3642, %v3650
        %v3652 = vmul.f32 %v3651, 0.7978846
        %v3653 = vtanh.pop %v3652
        %v3654 = vadd.f32 %v3653, 1.0
        %v3655 = vmul.f32 %v3647, %v3654
        %s3656 = scalar_lea.vmem %s8, 32
        %v3657 = vld [vmem:[%s3656] sm:$0xf]
        %v3658 = vld [vmem:[%s3656 + $0x4] sm:$0xf]
        %v3659 = vld [vmem:[%s3656 + $0x8] sm:$0xf]
        %v3660 = vld [vmem:[%s3656 + $0xc] sm:$0xf]
        %v3661 = vld [vmem:[%s3656 + $0x10] sm:$0xf]
        %v3662 = vld [vmem:[%s3656 + $0x14] sm:$0xf]
        %v3663 = vld [vmem:[%s3656 + $0x18] sm:$0xf]
        %v3664 = vld [vmem:[%s3656 + $0x1c] sm:$0xf]
        %v3665 = vpack.c.bf16 %v3655, %v3655
        %v3666 = vlaneseq
        %v3667 = vshrl.u32 %v3666, 7
        %v3668 = vsub.s32 4, %v3667
        %v3669 = vrot.slane %v2138, %v3668
        %v3678 = vunpack.c.l.b16 %v3657
        %v3679 = vunpack.c.l.b16 %v3658
        %v3680 = vunpack.c.l.b16 %v3659
        %v3681 = vunpack.c.l.b16 %v3660
        %v3682 = vunpack.c.l.b16 %v3661
        %v3683 = vunpack.c.l.b16 %v3662
        %v3684 = vunpack.c.l.b16 %v3663
        %v3685 = vunpack.c.l.b16 %v3664
        %v3686 = vpack.c.b16 %v3679, %v3678
        %v3687 = vpack.c.b16 %v3681, %v3680
        %v3688 = vpack.c.b16 %v3683, %v3682
        %v3689 = vpack.c.b16 %v3685, %v3684
        %v3695 = vsel %vm2069, %v3665, 0
        %3697 = vmatprep.subr.bf16.mxu0 0
        %3698 = vmatpush1.bf16.msra.mxu0 0
        %3699 = vmatprep.subr.bf16.mxu0 0
        %3700 = vmatpush1.bf16.msra.mxu0 0
        %3701 = vmatprep.subr.bf16.mxu0 0
        %3702 = vmatpush1.bf16.msra.mxu0 0
        %3703 = vmatprep.subr.bf16.mxu0 0
        %3704 = vmatpush1.bf16.msra.mxu0 0
        %3705 = vmatprep.subr.bf16.mxu0 0
        %3706 = vmatpush1.bf16.msra.mxu0 %v3689
        %3707 = vmatprep.subr.bf16.mxu0 0
        %3708 = vmatpush1.bf16.msra.mxu0 %v3688
        %3709 = vmatprep.subr.bf16.mxu0 0
        %3710 = vmatpush1.bf16.msra.mxu0 %v3687
        %3711 = vmatprep.subr.bf16.mxu0 0
        %3712 = vmatpush1.bf16.msra.mxu0 %v3686
        %3713 = vmatprep.subr.bf16.mxu0 0
        %3714 = vmatpush2.bf16.msra.mxu0 0
        %3715 = vmatprep.subr.bf16.mxu0 0
        %3716 = vmatpush2.bf16.msra.mxu0 0
        %3717 = vmatprep.subr.bf16.mxu0 0
        %3718 = vmatpush2.bf16.msra.mxu0 0
        %3719 = vmatprep.subr.bf16.mxu0 0
        %3720 = vmatpush2.bf16.msra.mxu0 0
        %3721 = vmatprep.subr.bf16.mxu0 0
        %3722 = vmatpush2.bf16.msra.mxu0 0
        %3723 = vmatprep.subr.bf16.mxu0 0
        %3724 = vmatpush2.bf16.msra.mxu0 0
        %3725 = vmatprep.subr.bf16.mxu0 0
        %3726 = vmatpush2.bf16.msra.mxu0 0
        %3727 = vmatprep.subr.bf16.mxu0 0
        %3728 = vmatpush2.bf16.msra.mxu0 0
        %3729 = vmatprep.mubr.bf16.mxu0 0
        %3730 = vmatmul.mubr.bf16.gmra.mxu0 %v3695
        %v3731 = vpop.f32.mrf.mxu0
        %v3732 = vadd.f32 %v3669, %v3731
        %v3733 = vpop.f32.mrf.mxu0
        %v3734 = vpop.f32.mrf.mxu0
        %v3735 = vpop.f32.mrf.mxu0
        %3736 = vdwg.mxu0
        %v3737 = vadd.f32 %v3732, %v3581
        %v3738 = vsel %vm485, %v3737, 0.0
        %3739 = vadd.xlane.f32.xlu0 %v3738
        %v3740 = vpop.xlane.xlu0 %3739
        %v3741 = vmul.f32 %v3740, %v489
        %v3742 = vsub.f32 %v3737, %v3741
        %v3743 = vmul.f32 %v3742, %v3742
        %v3744 = vsel %vm485, %v3743, 0.0
        %3745 = vadd.xlane.f32.xlu0 %v3744
        %v3746 = vpop.xlane.xlu0 %3745
        %v3747 = vmul.f32 %v3746, %v489
        %v3748 = vadd.f32 %v3747, 1e-12
        %v3749 = vrsqrt.pop %v3748
        %v3750 = vmul.f32 %v3742, %v3749
        %v3751 = vlaneseq
        %v3752 = vshrl.u32 %v3751, 7
        %v3753 = vsub.s32 5, %v3752
        %v3754 = vrot.slane %v2138, %v3753
        %v3755 = vmul.f32 %v3750, %v3754
        %v3756 = vlaneseq
        %v3757 = vshrl.u32 %v3756, 7
        %v3758 = vsub.s32 6, %v3757
        %v3759 = vrot.slane %v2138, %v3758
        %v3760 = vadd.f32 %v3755, %v3759
        %v3761 = vld [vmem:[%s10] sm:$0xf]
        %v3762 = vld [vmem:[%s10 + $0x4] sm:$0xf]
        %v3763 = vld [vmem:[%s10 + $0x8] sm:$0xf]
        %v3764 = vld [vmem:[%s10 + $0xc] sm:$0xf]
        %v3765 = vpack.c.bf16 %v3760, %v3760
        %v3770 = vunpack.c.l.b16 %v3761
        %v3771 = vunpack.c.l.b16 %v3762
        %v3772 = vunpack.c.l.b16 %v3763
        %v3773 = vunpack.c.l.b16 %v3764
        %v3774 = vpack.c.b16 %v3771, %v3770
        %v3775 = vpack.c.b16 %v3773, %v3772
        %v3779 = vrot.slane %v482, 2
        %v3782 = vsel %vm485, %v3765, 0
        %3784 = vmatprep.subr.bf16.mxu0 0
        %3785 = vmatpush1.bf16.msra.mxu0 0
        %3786 = vmatprep.subr.bf16.mxu0 0
        %3787 = vmatpush1.bf16.msra.mxu0 0
        %3788 = vmatprep.subr.bf16.mxu0 0
        %3789 = vmatpush1.bf16.msra.mxu0 0
        %3790 = vmatprep.subr.bf16.mxu0 0
        %3791 = vmatpush1.bf16.msra.mxu0 0
        %3792 = vmatprep.subr.bf16.mxu0 0
        %3793 = vmatpush1.bf16.msra.mxu0 0
        %3794 = vmatprep.subr.bf16.mxu0 0
        %3795 = vmatpush1.bf16.msra.mxu0 0
        %3796 = vmatprep.subr.bf16.mxu0 0
        %3797 = vmatpush1.bf16.msra.mxu0 %v3775
        %3798 = vmatprep.subr.bf16.mxu0 0
        %3799 = vmatpush1.bf16.msra.mxu0 %v3774
        %3800 = vmatprep.subr.bf16.mxu0 0
        %3801 = vmatpush2.bf16.msra.mxu0 0
        %3802 = vmatprep.subr.bf16.mxu0 0
        %3803 = vmatpush2.bf16.msra.mxu0 0
        %3804 = vmatprep.subr.bf16.mxu0 0
        %3805 = vmatpush2.bf16.msra.mxu0 0
        %3806 = vmatprep.subr.bf16.mxu0 0
        %3807 = vmatpush2.bf16.msra.mxu0 0
        %3808 = vmatprep.subr.bf16.mxu0 0
        %3809 = vmatpush2.bf16.msra.mxu0 0
        %3810 = vmatprep.subr.bf16.mxu0 0
        %3811 = vmatpush2.bf16.msra.mxu0 0
        %3812 = vmatprep.subr.bf16.mxu0 0
        %3813 = vmatpush2.bf16.msra.mxu0 0
        %3814 = vmatprep.subr.bf16.mxu0 0
        %3815 = vmatpush2.bf16.msra.mxu0 0
        %3816 = vmatprep.mubr.bf16.mxu0 0
        %3817 = vmatmul.mubr.bf16.gmra.mxu0 %v3782
        %v3818 = vpop.f32.mrf.mxu0
        %v3819 = vadd.f32 %v3779, %v3818
        %v3820 = vpop.f32.mrf.mxu0
        %v3821 = vpop.f32.mrf.mxu0
        %v3822 = vpop.f32.mrf.mxu0
        %3823 = vdwg.mxu0
        %v3824 = vtanh.pop %v3819
        %s3825 = scalar_lea.vmem %s10, 32
        %v3826 = vld [vmem:[%s3825] sm:$0xf]
        %v3827 = vld [vmem:[%s3825 + $0x4] sm:$0xf]
        %v3828 = vld [vmem:[%s3825 + $0x8] sm:$0xf]
        %v3829 = vld [vmem:[%s3825 + $0xc] sm:$0xf]
        %v3830 = vpack.c.bf16 %v3824, %v3824
        %v3835 = vunpack.c.l.b16 %v3826
        %v3836 = vunpack.c.l.b16 %v3827
        %v3837 = vunpack.c.l.b16 %v3828
        %v3838 = vunpack.c.l.b16 %v3829
        %v3839 = vpack.c.b16 %v3836, %v3835
        %v3840 = vpack.c.b16 %v3838, %v3837
        %v3843 = vrot.slane %v482, 6
        %v3846 = vsel %vm485, %v3830, 0
        %3848 = vmatprep.subr.bf16.mxu0 0
        %3849 = vmatpush1.bf16.msra.mxu0 0
        %3850 = vmatprep.subr.bf16.mxu0 0
        %3851 = vmatpush1.bf16.msra.mxu0 0
        %3852 = vmatprep.subr.bf16.mxu0 0
        %3853 = vmatpush1.bf16.msra.mxu0 0
        %3854 = vmatprep.subr.bf16.mxu0 0
        %3855 = vmatpush1.bf16.msra.mxu0 0
        %3856 = vmatprep.subr.bf16.mxu0 0
        %3857 = vmatpush1.bf16.msra.mxu0 0
        %3858 = vmatprep.subr.bf16.mxu0 0
        %3859 = vmatpush1.bf16.msra.mxu0 0
        %3860 = vmatprep.subr.bf16.mxu0 0
        %3861 = vmatpush1.bf16.msra.mxu0 %v3840
        %3862 = vmatprep.subr.bf16.mxu0 0
        %3863 = vmatpush1.bf16.msra.mxu0 %v3839
        %3864 = vmatprep.subr.bf16.mxu0 0
        %3865 = vmatpush2.bf16.msra.mxu0 0
        %3866 = vmatprep.subr.bf16.mxu0 0
        %3867 = vmatpush2.bf16.msra.mxu0 0
        %3868 = vmatprep.subr.bf16.mxu0 0
        %3869 = vmatpush2.bf16.msra.mxu0 0
        %3870 = vmatprep.subr.bf16.mxu0 0
        %3871 = vmatpush2.bf16.msra.mxu0 0
        %3872 = vmatprep.subr.bf16.mxu0 0
        %3873 = vmatpush2.bf16.msra.mxu0 0
        %3874 = vmatprep.subr.bf16.mxu0 0
        %3875 = vmatpush2.bf16.msra.mxu0 0
        %3876 = vmatprep.subr.bf16.mxu0 0
        %3877 = vmatpush2.bf16.msra.mxu0 0
        %3878 = vmatprep.subr.bf16.mxu0 0
        %3879 = vmatpush2.bf16.msra.mxu0 0
        %3880 = vmatprep.mubr.bf16.mxu0 0
        %3881 = vmatmul.mubr.bf16.gmra.mxu0 %v3846
        %v3882 = vpop.f32.mrf.mxu0
        %v3883 = vadd.f32 %v3843, %v3882
        %v3884 = vpop.f32.mrf.mxu0
        %v3885 = vpop.f32.mrf.mxu0
        %v3886 = vpop.f32.mrf.mxu0
        %3887 = vdwg.mxu0
        %s3888 = scalar_lea.vmem %s10, 16
        %v3889 = vld [vmem:[%s3888] sm:$0xf]
        %v3890 = vld [vmem:[%s3888 + $0x4] sm:$0xf]
        %v3891 = vld [vmem:[%s3888 + $0x8] sm:$0xf]
        %v3892 = vld [vmem:[%s3888 + $0xc] sm:$0xf]
        %v3893 = vlaneseq
        %v3894 = vshrl.u32 %v3893, 7
        %v3895 = vsub.s32 3, %v3894
        %v3896 = vrot.slane %v482, %v3895
        %v3901 = vunpack.c.l.b16 %v3889
        %v3902 = vunpack.c.l.b16 %v3890
        %v3903 = vunpack.c.l.b16 %v3891
        %v3904 = vunpack.c.l.b16 %v3892
        %v3905 = vpack.c.b16 %v3902, %v3901
        %v3906 = vpack.c.b16 %v3904, %v3903
        %3909 = vmatprep.subr.bf16.mxu0 0
        %3910 = vmatpush1.bf16.msra.mxu0 0
        %3911 = vmatprep.subr.bf16.mxu0 0
        %3912 = vmatpush1.bf16.msra.mxu0 0
        %3913 = vmatprep.subr.bf16.mxu0 0
        %3914 = vmatpush1.bf16.msra.mxu0 0
        %3915 = vmatprep.subr.bf16.mxu0 0
        %3916 = vmatpush1.bf16.msra.mxu0 0
        %3917 = vmatprep.subr.bf16.mxu0 0
        %3918 = vmatpush1.bf16.msra.mxu0 0
        %3919 = vmatprep.subr.bf16.mxu0 0
        %3920 = vmatpush1.bf16.msra.mxu0 0
        %3921 = vmatprep.subr.bf16.mxu0 0
        %3922 = vmatpush1.bf16.msra.mxu0 %v3906
        %3923 = vmatprep.subr.bf16.mxu0 0
        %3924 = vmatpush1.bf16.msra.mxu0 %v3905
        %3925 = vmatprep.subr.bf16.mxu0 0
        %3926 = vmatpush2.bf16.msra.mxu0 0
        %3927 = vmatprep.subr.bf16.mxu0 0
        %3928 = vmatpush2.bf16.msra.mxu0 0
        %3929 = vmatprep.subr.bf16.mxu0 0
        %3930 = vmatpush2.bf16.msra.mxu0 0
        %3931 = vmatprep.subr.bf16.mxu0 0
        %3932 = vmatpush2.bf16.msra.mxu0 0
        %3933 = vmatprep.subr.bf16.mxu0 0
        %3934 = vmatpush2.bf16.msra.mxu0 0
        %3935 = vmatprep.subr.bf16.mxu0 0
        %3936 = vmatpush2.bf16.msra.mxu0 0
        %3937 = vmatprep.subr.bf16.mxu0 0
        %3938 = vmatpush2.bf16.msra.mxu0 0
        %3939 = vmatprep.subr.bf16.mxu0 0
        %3940 = vmatpush2.bf16.msra.mxu0 0
        %3941 = vmatprep.mubr.bf16.mxu0 0
        %3942 = vmatmul.mubr.bf16.gmra.mxu0 %v3782
        %v3943 = vpop.f32.mrf.mxu0
        %v3944 = vadd.f32 %v3896, %v3943
        %v3945 = vpop.f32.mrf.mxu0
        %v3946 = vpop.f32.mrf.mxu0
        %v3947 = vpop.f32.mrf.mxu0
        %3948 = vdwg.mxu0
        %v3949 = vmul.f32 %v3944, 0.5
        %v3950 = vmul.f32 %v3944, 0.044715
        %v3951 = vmul.f32 %v3950, %v3944
        %v3952 = vmul.f32 %v3951, %v3944
        %v3953 = vadd.f32 %v3944, %v3952
        %v3954 = vmul.f32 %v3953, 0.7978846
        %v3955 = vtanh.pop %v3954
        %v3956 = vadd.f32 %v3955, 1.0
        %v3957 = vmul.f32 %v3949, %v3956
        %v3958 = vsel %vm485, %v3957, 0.0
        %3959 = vadd.xlane.f32.xlu0 %v3958
        %v3960 = vpop.xlane.xlu0 %3959
        %v3961 = vmul.f32 %v3960, %v489
        %v3962 = vsub.f32 %v3957, %v3961
        %v3963 = vmul.f32 %v3962, %v3962
        %v3964 = vsel %vm485, %v3963, 0.0
        %3965 = vadd.xlane.f32.xlu0 %v3964
        %v3966 = vpop.xlane.xlu0 %3965
        %v3967 = vmul.f32 %v3966, %v489
        %v3968 = vadd.f32 %v3967, 1e-12
        %v3969 = vrsqrt.pop %v3968
        %v3970 = vmul.f32 %v3962, %v3969
        %v3971 = vlaneseq
        %v3972 = vshrl.u32 %v3971, 7
        %v3973 = vsub.s32 4, %v3972
        %v3974 = vrot.slane %v482, %v3973
        %v3975 = vmul.f32 %v3970, %v3974
        %v3976 = vlaneseq
        %v3977 = vshrl.u32 %v3976, 7
        %v3978 = vsub.s32 5, %v3977
        %v3979 = vrot.slane %v482, %v3978
        %v3980 = vadd.f32 %v3975, %v3979
        %v3981 = vld [vmem:[%s12] sm:$0xf]
        %v3982 = vld [vmem:[%s12 + $0x4] sm:$0xf]
        %v3983 = vld [vmem:[%s12 + $0x8] sm:$0xf]
        %v3984 = vld [vmem:[%s12 + $0xc] sm:$0xf]
        %v3985 = vld [vmem:[%s12 + $0x10] sm:$0xf]
        %v3986 = vld [vmem:[%s12 + $0x14] sm:$0xf]
        %v3987 = vld [vmem:[%s12 + $0x18] sm:$0xf]
        %v3988 = vld [vmem:[%s12 + $0x1c] sm:$0xf]
        %v3989 = vld [vmem:[%s12 + $0x20] sm:$0xf]
        %v3990 = vld [vmem:[%s12 + $0x24] sm:$0xf]
        %v3991 = vld [vmem:[%s12 + $0x28] sm:$0xf]
        %v3992 = vld [vmem:[%s12 + $0x2c] sm:$0xf]
        %v3993 = vld [vmem:[%s12 + $0x30] sm:$0xf]
        %v3994 = vld [vmem:[%s12 + $0x34] sm:$0xf]
        %v3995 = vld [vmem:[%s12 + $0x38] sm:$0xf]
        %v3996 = vld [vmem:[%s12 + $0x3c] sm:$0xf]
        %v3997 = vpack.c.bf16 %v3980, %v3980
        %v3998 = vlaneseq
        %v3999 = vshrl.u32 %v3998, 7
        %v4000 = vsub.s32 7, %v3999
        %v4001 = vrot.slane %v482, %v4000
        %v4018 = vunpack.c.l.b16 %v3981
        %v4019 = vunpack.c.l.b16 %v3982
        %v4020 = vunpack.c.l.b16 %v3983
        %v4021 = vunpack.c.l.b16 %v3984
        %v4022 = vunpack.c.l.b16 %v3985
        %v4023 = vunpack.c.l.b16 %v3986
        %v4024 = vunpack.c.l.b16 %v3987
        %v4025 = vunpack.c.l.b16 %v3988
        %v4026 = vunpack.c.l.b16 %v3989
        %v4027 = vunpack.c.l.b16 %v3990
        %v4028 = vunpack.c.l.b16 %v3991
        %v4029 = vunpack.c.l.b16 %v3992
        %v4030 = vunpack.c.l.b16 %v3993
        %v4031 = vunpack.c.l.b16 %v3994
        %v4032 = vunpack.c.l.b16 %v3995
        %v4033 = vunpack.c.l.b16 %v3996
        %v4034 = vpack.c.b16 %v4019, %v4018
        %v4035 = vpack.c.b16 %v4021, %v4020
        %v4036 = vpack.c.b16 %v4023, %v4022
        %v4037 = vpack.c.b16 %v4025, %v4024
        %v4038 = vpack.c.b16 %v4027, %v4026
        %v4039 = vpack.c.b16 %v4029, %v4028
        %v4040 = vpack.c.b16 %v4031, %v4030
        %v4041 = vpack.c.b16 %v4033, %v4032
        %v4043 = vsel %vm485, %v3997, 0
        %v4046 = vsel %vm485, %v4034, 0
        %v4049 = vsel %vm485, %v4035, 0
        %v4052 = vsel %vm485, %v4036, 0
        %v4055 = vsel %vm485, %v4037, 0
        %v4058 = vsel %vm485, %v4038, 0
        %v4061 = vsel %vm485, %v4039, 0
        %v4064 = vsel %vm485, %v4040, 0
        %v4067 = vsel %vm485, %v4041, 0
        %4069 = vmatprep.subr.bf16.mxu0 0
        %4070 = vmatpush1.bf16.xpose.msra.mxu0 %v4067
        %4071 = vmatprep.subr.bf16.mxu0 0
        %4072 = vmatpush1.bf16.xpose.msra.mxu0 %v4064
        %4073 = vmatprep.subr.bf16.mxu0 0
        %4074 = vmatpush1.bf16.xpose.msra.mxu0 %v4061
        %4075 = vmatprep.subr.bf16.mxu0 0
        %4076 = vmatpush1.bf16.xpose.msra.mxu0 %v4058
        %4077 = vmatprep.subr.bf16.mxu0 0
        %4078 = vmatpush1.bf16.xpose.msra.mxu0 %v4055
        %4079 = vmatprep.subr.bf16.mxu0 0
        %4080 = vmatpush1.bf16.xpose.msra.mxu0 %v4052
        %4081 = vmatprep.subr.bf16.mxu0 0
        %4082 = vmatpush1.bf16.xpose.msra.mxu0 %v4049
        %4083 = vmatprep.subr.bf16.mxu0 0
        %4084 = vmatpush1.bf16.xpose.msra.mxu0 %v4046
        %4085 = vmatprep.subr.bf16.mxu0 0
        %4086 = vmatpush2.bf16.xpose.msra.mxu0 0
        %4087 = vmatprep.subr.bf16.mxu0 0
        %4088 = vmatpush2.bf16.xpose.msra.mxu0 0
        %4089 = vmatprep.subr.bf16.mxu0 0
        %4090 = vmatpush2.bf16.xpose.msra.mxu0 0
        %4091 = vmatprep.subr.bf16.mxu0 0
        %4092 = vmatpush2.bf16.xpose.msra.mxu0 0
        %4093 = vmatprep.subr.bf16.mxu0 0
        %4094 = vmatpush2.bf16.xpose.msra.mxu0 0
        %4095 = vmatprep.subr.bf16.mxu0 0
        %4096 = vmatpush2.bf16.xpose.msra.mxu0 0
        %4097 = vmatprep.subr.bf16.mxu0 0
        %4098 = vmatpush2.bf16.xpose.msra.mxu0 0
        %4099 = vmatprep.subr.bf16.mxu0 0
        %4100 = vmatpush2.bf16.xpose.msra.mxu0 0
        %4101 = vmatprep.mubr.bf16.mxu0 0
        %4102 = vmatmul.mubr.bf16.gmra.mxu0 %v4043
        %v4103 = vpop.f32.mrf.mxu0
        %v4104 = vadd.f32 %v4001, %v4103
        %v4105 = vpop.f32.mrf.mxu0
        %v4106 = vpop.f32.mrf.mxu0
        %v4107 = vpop.f32.mrf.mxu0
        %4108 = vdwg.mxu0
        %v4109 = vld [vmem:[%s477] sm:$0xff]
        %4110 = vmax.xlane.f32.xlu0 %v4104
        %v4111 = vpop.xlane.xlu0 %4110
        %v4112 = vsub.f32 %v4104, %v4111
        %v4113 = vmul.f32 %v4112, 1.442695
        %v4114 = vpow.pop %v4113
        %4115 = vadd.xlane.f32.xlu0 %v4114
        %v4116 = vpop.xlane.xlu0 %4115
        %v4117 = vlog2.pop %v4116
        %v4118 = vmul.f32 %v4117, 0.6931472
        %v4119 = vadd.f32 %v4118, %v4111
        %v4120 = vlaneseq
        %v4121 = vand.u32 %v4120, 127
        %4122 = vset.pattern.permute.xlu0 0
        %4123 = vperm.xlu0 %4122, %v4109
        %v4124 = vpop.permute.xlu0 %4123
        %vm4125 = vcmp.eq.s32.totalorder %v4121, %v4124
        %v4126 = vsel %vm4125, %v4104, 0.0
        %4127 = vadd.xlane.f32.xlu0 %v4126
        %v4128 = vpop.xlane.xlu0 %4127
        %vm4129 = vcmp.ne.s32.totalorder %v4109, 4294967295
        %v4130 = vsel %vm4129, 1, 0
        %v4131 = vcvt.s32.f32 %v4130
        %v4132 = vsub.f32 %v4119, %v4128
        %v4133 = vmul.f32 %v4132, %v4131
        %vm4134 = vcmask 7168
        %v4135 = vsel %vm4134, %v4133, 0.0
        %4136 = vadd.xlane.f32.xlu0 %v4135
        %v4137 = vpop.xlane.xlu0 %4136
        %v4138 = vrot.slane %v4137, 4
        %v4139 = vadd.f32 %v4137, %v4138
        %v4140 = vrot.slane %v4139, 2
        %v4141 = vadd.f32 %v4139, %v4140
        %v4142 = vrot.slane %v4141, 1
        %v4143 = vadd.f32 %v4141, %v4142
        %s4144 = vtos %v4143
        %v4145 = vld [vmem:[%s480] sm:$0x1]
        %vm4146 = vcmask 8192
        %v4147 = vsel %vm4146, %v3883, -inf
        %4148 = vmax.xlane.f32.xlu0 %v4147
        %v4149 = vpop.xlane.xlu0 %4148
        %v4150 = vsub.f32 %v3883, %v4149
        %v4151 = vmul.f32 %v4150, 1.442695
        %v4152 = vpow.pop %v4151
        %v4153 = vsel %vm4146, %v4152, 0.0
        %4154 = vadd.xlane.f32.xlu0 %v4153
        %v4155 = vpop.xlane.xlu0 %4154
        %v4156 = vlog2.pop %v4155
        %v4157 = vmul.f32 %v4156, 0.6931472
        %v4158 = vadd.f32 %v4157, %v4149
        %4159 = vset.pattern.permute.xlu0 0
        %4160 = vperm.xlu0 %4159, %v4145
        %v4161 = vpop.permute.xlu0 %4160
        %v4162 = vlaneseq
        %v4163 = vshrl.u32 %v4162, 7
        %v4164 = vsub.s32 0, %v4163
        %v4165 = vrot.slane %v4161, %v4164
        %vm4166 = vcmp.eq.s32.totalorder %v4121, %v4165
        %v4167 = vsel %vm4166, %v3883, 0.0
        %v4168 = vsel %vm4146, %v4167, 0.0
        %4169 = vadd.xlane.f32.xlu0 %v4168
        %v4170 = vpop.xlane.xlu0 %4169
        %vm4171 = vcmp.ne.s32.totalorder %v4145, 4294967295
        %v4172 = vsel %vm4171, 1, 0
        %v4173 = vcvt.s32.f32 %v4172
        %v4174 = vsub.f32 %v4158, %v4170
        %v4175 = vmul.f32 %v4174, %v4173
        %v4176 = vadd.f32 %v4175, 0.0
        %s4177 = vtos %v4176
        %v4178 = vsel %vm4134, %v4131, 0.0
        %4179 = vadd.xlane.f32.xlu0 %v4178
        %v4180 = vpop.xlane.xlu0 %4179
        %v4181 = vrot.slane %v4180, 4
        %v4182 = vadd.f32 %v4180, %v4181
        %v4183 = vrot.slane %v4182, 2
        %v4184 = vadd.f32 %v4182, %v4183
        %v4185 = vrot.slane %v4184, 1
        %v4186 = vadd.f32 %v4184, %v4185
        %s4187 = vtos %v4186
        %vm4188 = vcmp.eq.s32.totalorder %v4121, 0
        %v4189 = vstv %s4144
        %v4190 = vsel %vm4188, %v4189, 0.0
        %vm4191 = vcmp.eq.s32.totalorder %v4121, 1
        %v4192 = vstv %s4177
        %v4193 = vsel %vm4191, %v4192, 0.0
        %v4194 = vadd.f32 %v4190, %v4193
        %vm4195 = vcmp.eq.s32.totalorder %v4121, 2
        %v4196 = vstv %s4187
        %v4197 = vsel %vm4195, %v4196, 0.0
        %v4198 = vadd.f32 %v4194, %v4197
        %4199 = vst [vmem:[%s466] sm:$0xff] %v4198
        %s4200 = sand.u32 %s328, 1
        %s4201 = scalar_lea.sflag [#allocation3], %s4200
        %s4202 = sand.u32 %s328, 1
        %s4203 = smul.addr %s4202, 8
        %s4204 = scalar_lea.vmem [#allocation2], %s4203
        // Predicated region
        $region73: #{tpu_custom_call.1} parent=71 // pred_check
          %p4205 = pneg %p338
        $region74: #{tpu_custom_call.1} parent=71 // pred_check_branch
          %4207 = sbr.rel (%p4205) target = $region76
        $region75: #{tpu_custom_call.1} parent=71 // pred_region
          %s4209 = ssub.s32 128, 128
          %4210 = vsyncadd %s4201, %s4209
          %s4211 = smul.addr %s27, 128
          %s4212 = scalar_lea.hbm %s13, %s4211
          %s4214 = sshll.u32 %s4204, 4
          %s4215 = int_to_ptr.vmem [resolvable:$true] %s4214
          %4217 = dma.vmem_to_hbm [thread:$0]  %s4215, 128, %s4212, %s4201
        $region76: #{tpu_custom_call.1} parent=71 // pred_fallthru
          _
      $region72: #{tpu_custom_call.1} parent=5 // pred_fallthru
        _
      %p4218 = scmp.le.s32.totalorder 2, %s22
      // Predicated region
      $region77: #{tpu_custom_call.1} parent=5 // pred_check
        %p4219 = pneg %p4218
      $region78: #{tpu_custom_call.1} parent=5 // pred_check_branch
        %4221 = sbr.rel (%p4219) target = $region80
      $region79: #{tpu_custom_call.1} parent=5 // pred_region
        %s4222 = ssub.s32 %s22, 2
        // Predicated region
        $region81: #{tpu_custom_call.1} parent=79 // pred_check
          %p4223 = pneg %p344
        $region82: #{tpu_custom_call.1} parent=79 // pred_check_branch
          %4225 = sbr.rel (%p4223) target = $region84
        $region83: #{tpu_custom_call.1} parent=79 // pred_region
          %s4226 = sand.u32 %s329, 1
          %s4227 = scalar_lea.sflag [#allocation3], %s4226
          %s4228 = sand.u32 %s329, 1
          %s4229 = smul.addr %s4228, 8
          %s4230 = scalar_lea.vmem [#allocation2], %s4229
          %4231 = dma.done %s4227, 128
        $region84: #{tpu_custom_call.1} parent=79 // pred_fallthru
          _
      $region80: #{tpu_custom_call.1} parent=5 // pred_fallthru
        _
    $region6: #{tpu_custom_call.1} parent=1 // loop_footer
      %s26 = sadd.s32 1, %s22
    $region7: #{tpu_custom_call.1} parent=1 // loop_footer_branch
      %21 = sbr.rel target = $region3
    $region8: #{tpu_custom_call.1} parent=1 // loop_exit
      _
    %4232 = vsyncpa [#allocation3], 1
    %s4233 = scalar_lea.sflag [#allocation3], 1
    %4234 = vsyncpa %s4233, 1

</llo_original>
